<compile_context>
chip_gen: v6e
topology: v6e:2x2x1
jax: 0.10.0
libtpu: 0.0.40
codegen_flags: <defaults>
</compile_context>

<pallas_src>
import functools

import jax
import jax.numpy as jnp
from jax.experimental import pallas as pl
from jax.experimental.pallas import tpu as pltpu


# ----------------------------- Pallas kernel --------------------------------

def _co_attention_kernel(C, rep, TB, N, Np,
                         qin_ref, kin_ref, wq_ref, wk_ref, wub_ref, o_ref):
    f32 = jnp.float32
    bf16 = jnp.bfloat16
    Cq = C + rep + 3          # [x | qcol | pre/w | q | 1]
    Ck = C + rep + 2          # [x_other | k_other | 1 | kcol]
    co = 2 * rep + 2          # [phi | g | 1 | kcol]

    qin = qin_ref[...]        # (TB, Np, Cq) f32
    kin = kin_ref[...]        # (TB, N,  Ck) f32

    # theta = x@Wx + (pre/w)*wtp + q + bt, all folded into one fat-K matmul.
    theta = jnp.dot(qin.reshape(TB * Np, Cq).astype(bf16),
                    wq_ref[...].astype(bf16),
                    preferred_element_type=f32).reshape(TB, Np, rep)

    # key-side: one matmul emits [phi | g | ones | kcol] (bias/k-add folded in,
    # ones/kcol selected from packed input channels -> no in-kernel concat).
    pg = jnp.dot(kin.reshape(TB * N, Ck).astype(bf16),
                 wk_ref[...].astype(bf16),
                 preferred_element_type=f32).reshape(TB, N, co)
    phi = pg[..., :rep]
    gext = pg[..., rep:]                       # (TB, N, rep + 2) = [g | 1 | kcol]

    # attention logits (K = rep; fine for real rep = in_channels//2; at the
    # tiny demo rep this underfills the MXU but stays correct).
    inter = jax.lax.dot_general(theta.astype(bf16), phi.astype(bf16),
                                (((2,), (2,)), ((0,), (0,))),
                                preferred_element_type=f32)      # (TB, Np, N)
    m = jnp.max(inter, axis=-1, keepdims=True)
    e = jnp.exp(inter - m)

    # one matmul yields [e@g | sum_e | e@kcol]: softmax numerators, denominator
    # and the (unnormalized) soft column index together; no NxN temporaries
    # beyond inter/e.
    p = jax.lax.dot_general(e.astype(bf16), gext.astype(bf16),
                            (((2,), (1,)), ((0,), (0,))),
                            preferred_element_type=f32)          # (TB, Np, rep+2)

    inv = pl.reciprocal(p[..., rep:rep + 1], approx=True)        # 1/sum_e (EUP)
    pall = p * inv                                               # [after | 1 | softcol]

    # BN-folded up projection + bias + (-softcol) in one small matmul; the
    # residual add also restores the query-column channel -> [out | index].
    upb = jnp.dot(pall.reshape(TB * Np, rep + 2), wub_ref[...],
                  preferred_element_type=f32).reshape(TB, Np, C + 1)
    out_ext = qin[..., :C + 1] + upb                             # (TB, Np, C+1)

    # lane-dense channels-first stores via cheap 2-D XLU transposes (the XLU is
    # otherwise idle here); replaces the old identity-matmul transpose.
    for t in range(TB):
        o_ref[t] = out_ext[t].T                                  # (C+1, Np)


# ------------------------ tiling / VMEM budgeting ----------------------------

def _rup(x, m):
    return ((x + m - 1) // m) * m


def _pb(shape, itemsize=4):
    """VMEM bytes of one buffer, padded to the native (8, 128) tiling."""
    lead = 1
    for d in shape[:-2]:
        lead *= d
    return lead * _rup(shape[-2], 8) * _rup(shape[-1], 128) * itemsize


def _vmem_estimate(TB, N, Np, C, rep):
    Cq = C + rep + 3
    Ck = C + rep + 2
    co = 2 * rep + 2
    io = 2 * (_pb((TB, Np, Cq)) + _pb((TB, N, Ck)) + _pb((TB, C + 1, Np)))
    io += _pb((Cq, rep)) + _pb((Ck, co)) + _pb((rep + 2, C + 1))
    tmp = (_pb((TB, Np, rep)) + _pb((TB, Np, rep), 2)            # theta (+bf16)
           + _pb((TB, N, co)) + _pb((TB, N, co), 2)              # pg (+bf16 slices)
           + 2 * _pb((TB, Np, N)) + _pb((TB, Np, N), 2)          # inter, e (+bf16)
           + 2 * _pb((TB, Np, rep + 2))                          # p, pall
           + 2 * _pb((TB, Np, C + 1))                            # upb, out_ext
           + _pb((TB, Np, Cq), 2) + _pb((TB, N, Ck), 2))         # input bf16 casts
    return io + tmp


def _vmem_capacity():
    try:
        return int(pltpu.get_tpu_info().vmem_capacity_bytes)
    except Exception:
        return 128 * 1024 * 1024


def _pick_tile(B2, N, Np, C, rep, budget, tb_cap=16):
    """Largest divisor of B2 (capped) fitting the budget; prefer an even grid
    >= 2 so v7x's two TensorCores split the work evenly."""
    cands = [t for t in range(1, min(B2, tb_cap) + 1)
             if B2 % t == 0 and _vmem_estimate(t, N, Np, C, rep) <= budget]
    if not cands:
        return 1
    even = [t for t in cands if (B2 // t) >= 2 and (B2 // t) % 2 == 0]
    ge2 = [t for t in cands if (B2 // t) >= 2]
    pool = even or ge2 or cands
    return max(pool)


# ------------------------------ pallas wrapper --------------------------------

def co_attention_pallas(qin, kin, kparams):
    """qin: (B2, Np, C+rep+3) query-side slab ([left; right], padded to Np);
    kin: (B2, N, C+rep+2) key-side slab (pre-swapped [right; left]).
    Returns (B2, C+1, Np): channels 0..C-1 = out + residual, channel C = index."""
    B2, Np, Cq = qin.shape
    _, N, Ck = kin.shape
    rep = kparams['wq'].shape[1]
    C = kparams['wub'].shape[1] - 1
    f32 = jnp.float32

    cap = _vmem_capacity()
    budget = int(0.35 * cap)
    TB = _pick_tile(B2, N, Np, C, rep, budget)
    grid = (B2 // TB,)

    est = _vmem_estimate(TB, N, Np, C, rep)
    vmem_limit = max(32 * 1024 * 1024, 2 * est)
    vmem_limit = min(vmem_limit, int(0.75 * cap))       # headroom (v7x: 64 MiB/TC)
    if vmem_limit < int(1.2 * est):                      # large-N fallback
        vmem_limit = min(int(0.95 * cap), int(1.3 * est))

    kernel = functools.partial(_co_attention_kernel, C, rep, TB, N, Np)

    in_specs = [
        pl.BlockSpec((TB, Np, Cq), lambda i: (i, 0, 0)),
        pl.BlockSpec((TB, N, Ck), lambda i: (i, 0, 0)),
        pl.BlockSpec((Cq, rep), lambda i: (0, 0)),
        pl.BlockSpec((Ck, 2 * rep + 2), lambda i: (0, 0)),
        pl.BlockSpec((rep + 2, C + 1), lambda i: (0, 0)),
    ]
    out_specs = pl.BlockSpec((TB, C + 1, Np), lambda i: (i, 0, 0))
    out_shape = jax.ShapeDtypeStruct((B2, C + 1, Np), f32)

    return pl.pallas_call(
        kernel,
        grid=grid,
        in_specs=in_specs,
        out_specs=out_specs,
        out_shape=out_shape,
        compiler_params=pltpu.CompilerParams(
            dimension_semantics=("parallel",),
            vmem_limit_bytes=int(vmem_limit)),
    )(qin, kin, kparams['wq'], kparams['wk'], kparams['wub'])


# ------------------------------- JAX glue ------------------------------------

def nearest_up2(x):
    # PyTorch F.interpolate(scale_factor=2, mode='nearest') for NCHW.
    return jnp.repeat(jnp.repeat(x, 2, axis=2), 2, axis=3)


def reflect_conv3x3(x, w_, b_, dilation):
    pad = dilation  # module uses padding == dilation, padding_mode='reflect'
    xp = jnp.pad(x, ((0, 0), (0, 0), (pad, pad), (pad, pad)), mode='reflect')
    y = jax.lax.conv_general_dilated(
        xp, w_, window_strides=(1, 1), padding='VALID',
        rhs_dilation=(dilation, dilation),
        dimension_numbers=('NCHW', 'OIHW', 'NCHW'))
    return y + b_[None, :, None, None]


def conv1x1(x, w_):
    return jax.lax.conv_general_dilated(
        x, w_, window_strides=(1, 1), padding='VALID',
        dimension_numbers=('NCHW', 'OIHW', 'NCHW'))


def enlarge(p, x, index):
    inp = jnp.concatenate([x, index], axis=1)
    q = jnp.concatenate([
        reflect_conv3x3(inp, p['theta_r1_w'], p['theta_r1_b'], 1),
        reflect_conv3x3(inp, p['theta_r2_w'], p['theta_r2_b'], 2),
        reflect_conv3x3(inp, p['theta_r3_w'], p['theta_r3_b'], 4)], axis=1)
    query = conv1x1(q, p['theta_r_w'])
    k = jnp.concatenate([
        reflect_conv3x3(x, p['phi_r1_w'], p['phi_r1_b'], 1),
        reflect_conv3x3(x, p['phi_r2_w'], p['phi_r2_b'], 2),
        reflect_conv3x3(x, p['phi_r3_w'], p['phi_r3_b'], 4)], axis=1)
    key = conv1x1(k, p['phi_r_w'])
    return query, key


def sample_rows(x, row_size, stride):
    b, c, h, w = x.shape
    remainder = (h - row_size) % stride
    if remainder != 0:
        x = jnp.pad(x, ((0, 0), (0, 0), (0, remainder), (0, 0)), mode='reflect')
    hp = h + remainder
    n_blocks = (hp - row_size) // stride + 1
    rows = jnp.stack(
        [x[:, :, i * stride:i * stride + row_size, :] for i in range(n_blocks)],
        axis=1)                                     # (b, n_blocks, c, row_size, w)
    return rows, remainder


def aggregate_rows(x, target_h, remainder, row_size, stride):
    # Matches the PyTorch semantics exactly (assignment then divide by count):
    # overlapping rows end up as last_value / count, as in the original module.
    b, n_blocks, c, rs, w = x.shape
    out = jnp.zeros((b, c, target_h + remainder, w), jnp.float32)
    cnt = jnp.zeros((b, c, target_h + remainder, w), jnp.float32)
    for i in range(n_blocks):
        out = out.at[:, :, i * stride:i * stride + row_size, :].set(x[:, i])
        cnt = cnt.at[:, :, i * stride:i * stride + row_size, :].add(1.0)
    out = out / cnt
    return out[:, :, :target_h, :]


def row_attention_perlevel_forward(params, left, right, pre_l, pre_r,
                                   row_size=3, stride=2):
    b, c, h, w = left.shape
    f32 = jnp.float32

    pre_l_up = nearest_up2(pre_l) * 2.0
    pre_r_up = nearest_up2(pre_r) * 2.0

    query_l, key_l = enlarge(params, left, pre_l_up / w)
    query_r, key_r = enlarge(params, right, pre_r_up / w)

    ones_img = jnp.ones((b, 1, h, w), f32)
    col_img = jnp.broadcast_to(
        jnp.arange(w, dtype=f32).reshape(1, 1, 1, w), (b, 1, h, w))

    # query-side slab [x | qcol | pre/w | query | 1], batch order [left; right]
    q_slab = jnp.concatenate([
        jnp.concatenate([left, col_img, pre_l_up / w, query_l, ones_img], axis=1),
        jnp.concatenate([right, col_img, pre_r_up / w, query_r, ones_img], axis=1),
    ], axis=0)
    # key-side slab [x | key | 1 | kcol], PRE-SWAPPED batch order [right; left]
    k_slab = jnp.concatenate([
        jnp.concatenate([right, key_r, ones_img, col_img], axis=1),
        jnp.concatenate([left, key_l, ones_img, col_img], axis=1),
    ], axis=0)

    q_rows, remainder = sample_rows(q_slab, row_size, stride)  # (2b, nb, Cq, rs, w)
    k_rows, _ = sample_rows(k_slab, row_size, stride)
    nb = q_rows.shape[1]
    N = row_size * w
    Np = _rup(N, 128)                          # lane-dense output stores

    def flat(rows):  # (B, nb, cc, rs, w) -> (B*nb, rs*w, cc)
        b_, nb_, cc, rs, ww = rows.shape
        return rows.reshape(b_ * nb_, cc, rs * ww).transpose(0, 2, 1)

    qin = flat(q_rows)
    kin = flat(k_rows)
    if Np != N:
        qin = jnp.pad(qin, ((0, 0), (0, Np - N), (0, 0)))   # padded query rows
                                                            # are discarded below

    out_all = co_attention_pallas(qin, kin, params['kernel'])  # (B2, c+1, Np)
    out_all = out_all[:, :, :N]

    B1 = b * nb
    out_left = out_all[:B1, :c, :].reshape(b, nb, c, row_size, w)
    out_right = out_all[B1:, :c, :].reshape(b, nb, c, row_size, w)
    index_l = out_all[:B1, c:, :].reshape(b, nb, 1, row_size, w)
    index_r = out_all[B1:, c:, :].reshape(b, nb, 1, row_size, w)

    final_left = aggregate_rows(out_left, h, remainder, row_size, stride)
    final_right = aggregate_rows(out_right, h, remainder, row_size, stride)
    final_left_index = aggregate_rows(index_l, h, remainder, row_size, stride)
    final_right_index = aggregate_rows(index_r, h, remainder, row_size, stride)
    return final_left, final_right, final_left_index, final_right_index


# ------------------------------- parameters ----------------------------------

def init_params(key, c, rep):
    ks = iter(jax.random.split(key, 32))
    f32 = jnp.float32

    def w_(shape, scale=0.1):
        return jax.random.normal(next(ks), shape, f32) * scale

    p = {}
    # enlarge() dilated convs (row_attention_perlevel.__init__)
    p['theta_r1_w'] = w_((rep, c + 1, 3, 3)); p['theta_r1_b'] = w_((rep,))
    p['theta_r2_w'] = w_((rep, c + 1, 3, 3)); p['theta_r2_b'] = w_((rep,))
    p['theta_r3_w'] = w_((rep, c + 1, 3, 3)); p['theta_r3_b'] = w_((rep,))
    p['theta_r_w'] = w_((rep, 3 * rep, 1, 1))                      # bias=False
    p['phi_r1_w'] = w_((rep, c, 3, 3)); p['phi_r1_b'] = w_((rep,))
    p['phi_r2_w'] = w_((rep, c, 3, 3)); p['phi_r2_b'] = w_((rep,))
    p['phi_r3_w'] = w_((rep, c, 3, 3)); p['phi_r3_b'] = w_((rep,))
    p['phi_r_w'] = w_((rep, 3 * rep, 1, 1))                        # bias=False

    # co_non_local_block 1x1 convs
    theta_w = w_((rep, c + 1, 1, 1)); theta_b = w_((rep,))
    phi_w = w_((rep, c, 1, 1)); phi_b = w_((rep,))
    g_w = w_((rep, c, 1, 1)); g_b = w_((rep,))
    up_w = w_((c, rep, 1, 1)); up_b = w_((c,))

    # BatchNorm2d(c), eval-mode running stats; the module zero-inits gamma/beta
    # so the 'up' branch contributes exactly 0 at init (kept faithfully).
    gamma = jnp.zeros((c,), f32)
    beta = jnp.zeros((c,), f32)
    run_mean = jnp.zeros((c,), f32)
    run_var = jnp.ones((c,), f32)
    eps = 1e-5
    bn_scale = gamma / jnp.sqrt(run_var + eps)
    bn_shift = beta - run_mean * bn_scale

    # ---- packed kernel slabs -------------------------------------------------
    Wx = theta_w[:, :c, 0, 0].T                       # (c, rep)
    wtp = theta_w[:, c:c + 1, 0, 0].T                 # (1, rep)  pre channel
    bt = theta_b.reshape(1, rep)
    # qin channels: [x (c), qcol (1), pre/w (1), q (rep), ones (1)]
    wq = jnp.concatenate([
        Wx,
        jnp.zeros((1, rep), f32),                     # qcol passthrough only
        wtp,
        jnp.eye(rep, dtype=f32),                      # q additive term
        bt,                                           # bias via ones channel
    ], axis=0)                                        # (c + rep + 3, rep)

    Wphi = phi_w[:, :, 0, 0].T                        # (c, rep)
    Wg = g_w[:, :, 0, 0].T                            # (c, rep)
    bphi = phi_b.reshape(1, rep)
    bg = g_b.reshape(1, rep)
    # kin channels: [x (c), k (rep), ones (1), kcol (1)]
    # wk columns:   [phi (rep), g (rep), ones-sel (1), kcol-sel (1)]
    wk = jnp.concatenate([
        jnp.concatenate([Wphi, Wg, jnp.zeros((c, 2), f32)], axis=1),
        jnp.concatenate([jnp.eye(rep, dtype=f32),
                         jnp.zeros((rep, rep + 2), f32)], axis=1),
        jnp.concatenate([bphi, bg, jnp.array([[1.0, 0.0]], dtype=f32)], axis=1),
        jnp.concatenate([jnp.zeros((1, 2 * rep), f32),
                         jnp.array([[0.0, 1.0]], dtype=f32)], axis=1),
    ], axis=0)                                        # (c + rep + 2, 2*rep + 2)

    # up projection with BN folded in, plus bias (via the "1" column of pall)
    # and the -softcol column that produces the index output.
    wup_eff = up_w[:, :, 0, 0].T * bn_scale[None, :]  # (rep, c)
    b_eff = (up_b * bn_scale + bn_shift).reshape(1, c)
    wub = jnp.concatenate([
        jnp.concatenate([wup_eff, jnp.zeros((rep, 1), f32)], axis=1),
        jnp.concatenate([b_eff, jnp.zeros((1, 1), f32)], axis=1),
        jnp.concatenate([jnp.zeros((1, c), f32), -jnp.ones((1, 1), f32)], axis=1),
    ], axis=0)                                        # (rep + 2, c + 1)

    p['kernel'] = dict(wq=wq, wk=wk, wub=wub)
    return p


# --------------------------------- main ---------------------------------------

if __name__ == "__main__":
    key = jax.random.PRNGKey(0)
    b, c, h, w = 2, 8, 8, 16          # small in_channels=8 -> rep_channels=4
    rep = c // 2

    k1, k2, k3, k4, k5 = jax.random.split(key, 5)
    left = jax.random.normal(k1, (b, c, h, w), jnp.float32)
    right = jax.random.normal(k2, (b, c, h, w), jnp.float32)
    # pre_* are half-resolution single-channel disparity maps (upsampled x2 inside)
    pre_l = jax.random.uniform(k3, (b, 1, h // 2, w // 2), jnp.float32) * (w // 2)
    pre_r = jax.random.uniform(k4, (b, 1, h // 2, w // 2), jnp.float32) * (w // 2)

    params = init_params(k5, c, rep)

    outs = row_attention_perlevel_forward(params, left, right, pre_l, pre_r,
                                          row_size=3, stride=2)
    outs = jax.block_until_ready(outs)

    fl, fr, il, ir = outs
    assert fl.shape == (b, c, h, w) and fr.shape == (b, c, h, w)
    assert il.shape == (b, 1, h, w) and ir.shape == (b, 1, h, w)
    assert bool(jnp.all(jnp.isfinite(fl))) and bool(jnp.all(jnp.isfinite(fr)))
    assert bool(jnp.all(jnp.isfinite(il))) and bool(jnp.all(jnp.isfinite(ir)))
    print("KERNEL_OK")
</pallas_src>

<mosaic_0001>
module attributes {stable_mosaic.version = 11 : i64} {
  func.func @_co_attention_kernel(%arg0: i32, %arg1: memref<8x128x15xf32, #tpu.memory_space<vmem>>, %arg2: memref<8x48x14xf32, #tpu.memory_space<vmem>>, %arg3: memref<15x4xf32, #tpu.memory_space<vmem>>, %arg4: memref<14x10xf32, #tpu.memory_space<vmem>>, %arg5: memref<6x9xf32, #tpu.memory_space<vmem>>, %arg6: memref<8x9x128xf32, #tpu.memory_space<vmem>>) attributes {dimension_semantics = [#tpu.dimension_semantics<parallel>], iteration_bounds = array<i64: 2>, scalar_prefetch = 0 : i64, scratch_operands = 0 : i64, tpu.core_type = #tpu.core_type<tc>, window_params = [{transform_indices = @transform_0, window_bounds = array<i64: 8, 128, 15>}, {transform_indices = @transform_1, window_bounds = array<i64: 8, 48, 14>}, {pipeline_mode = #tpu.pipeline_mode<synchronous>, transform_indices = @transform_2, window_bounds = array<i64: 15, 4>}, {pipeline_mode = #tpu.pipeline_mode<synchronous>, transform_indices = @transform_3, window_bounds = array<i64: 14, 10>}, {pipeline_mode = #tpu.pipeline_mode<synchronous>, transform_indices = @transform_4, window_bounds = array<i64: 6, 9>}, {transform_indices = @transform_5, window_bounds = array<i64: 8, 9, 128>}]} {
    %c0 = arith.constant 0 : index
    %c0_0 = arith.constant 0 : index
    %c0_1 = arith.constant 0 : index
    %0 = vector.load %arg1[%c0, %c0_0, %c0_1] : memref<8x128x15xf32, #tpu.memory_space<vmem>>, vector<8x128x15xf32>
    %c0_2 = arith.constant 0 : index
    %c0_3 = arith.constant 0 : index
    %c0_4 = arith.constant 0 : index
    %1 = vector.load %arg2[%c0_2, %c0_3, %c0_4] : memref<8x48x14xf32, #tpu.memory_space<vmem>>, vector<8x48x14xf32>
    %2 = vector.shape_cast %0 : vector<8x128x15xf32> to vector<1024x15xf32>
    %3 = arith.truncf %2 : vector<1024x15xf32> to vector<1024x15xbf16>
    %c0_5 = arith.constant 0 : index
    %c0_6 = arith.constant 0 : index
    %4 = vector.load %arg3[%c0_5, %c0_6] : memref<15x4xf32, #tpu.memory_space<vmem>>, vector<15x4xf32>
    %5 = arith.truncf %4 : vector<15x4xf32> to vector<15x4xbf16>
    %cst = arith.constant dense<0.000000e+00> : vector<1024x4xf32>
    %6 = tpu.matmul %3, %5, %cst {dimension_numbers = #tpu.dot_dimension_numbers<[1], [0], [0], [1], [0, 0, 1, 1], [], []>} : vector<1024x15xbf16>, vector<15x4xbf16>, vector<1024x4xf32> -> vector<1024x4xf32>
    %7 = vector.shape_cast %6 : vector<1024x4xf32> to vector<8x128x4xf32>
    %8 = vector.shape_cast %1 : vector<8x48x14xf32> to vector<384x14xf32>
    %9 = arith.truncf %8 : vector<384x14xf32> to vector<384x14xbf16>
    %c0_7 = arith.constant 0 : index
    %c0_8 = arith.constant 0 : index
    %10 = vector.load %arg4[%c0_7, %c0_8] : memref<14x10xf32, #tpu.memory_space<vmem>>, vector<14x10xf32>
    %11 = arith.truncf %10 : vector<14x10xf32> to vector<14x10xbf16>
    %cst_9 = arith.constant dense<0.000000e+00> : vector<384x10xf32>
    %12 = tpu.matmul %9, %11, %cst_9 {dimension_numbers = #tpu.dot_dimension_numbers<[1], [0], [0], [1], [0, 0, 1, 1], [], []>} : vector<384x14xbf16>, vector<14x10xbf16>, vector<384x10xf32> -> vector<384x10xf32>
    %13 = vector.shape_cast %12 : vector<384x10xf32> to vector<8x48x10xf32>
    %14 = vector.extract_strided_slice %13 {offsets = [0, 0, 0], sizes = [8, 48, 4], strides = [1, 1, 1]} : vector<8x48x10xf32> to vector<8x48x4xf32>
    %15 = vector.extract_strided_slice %13 {offsets = [0, 0, 4], sizes = [8, 48, 6], strides = [1, 1, 1]} : vector<8x48x10xf32> to vector<8x48x6xf32>
    %16 = arith.truncf %7 : vector<8x128x4xf32> to vector<8x128x4xbf16>
    %17 = arith.truncf %14 : vector<8x48x4xf32> to vector<8x48x4xbf16>
    %cst_10 = arith.constant dense<0.000000e+00> : vector<8x128x48xf32>
    %18 = tpu.matmul %16, %17, %cst_10 {dimension_numbers = #tpu.dot_dimension_numbers<[2], [2], [1], [1], [0, 0, 0, 1, 1, 1], [0], [0]>} : vector<8x128x4xbf16>, vector<8x48x4xbf16>, vector<8x128x48xf32> -> vector<8x128x48xf32>
    %cst_11 = arith.constant dense<0xFF800000> : vector<8x128xf32>
    %19 = vector.multi_reduction <maximumf>, %18, %cst_11 [2] : vector<8x128x48xf32> to vector<8x128xf32>
    %20 = vector.shape_cast %19 : vector<8x128xf32> to vector<8x128x1xf32>
    %21 = vector.broadcast %20 : vector<8x128x1xf32> to vector<8x128x48xf32>
    %22 = arith.subf %18, %21 : vector<8x128x48xf32>
    %23 = math.exp %22 : vector<8x128x48xf32>
    %24 = arith.truncf %23 : vector<8x128x48xf32> to vector<8x128x48xbf16>
    %25 = arith.truncf %15 : vector<8x48x6xf32> to vector<8x48x6xbf16>
    %cst_12 = arith.constant dense<0.000000e+00> : vector<8x128x6xf32>
    %26 = tpu.matmul %24, %25, %cst_12 {dimension_numbers = #tpu.dot_dimension_numbers<[2], [1], [1], [2], [0, 0, 0, 1, 1, 2], [0], [0]>} : vector<8x128x48xbf16>, vector<8x48x6xbf16>, vector<8x128x6xf32> -> vector<8x128x6xf32>
    %27 = vector.extract_strided_slice %26 {offsets = [0, 0, 4], sizes = [8, 128, 1], strides = [1, 1, 1]} : vector<8x128x6xf32> to vector<8x128x1xf32>
    %28 = tpu.reciprocal %27 {approx = true} : vector<8x128x1xf32> -> vector<8x128x1xf32>
    %29 = vector.broadcast %28 : vector<8x128x1xf32> to vector<8x128x6xf32>
    %30 = arith.mulf %26, %29 : vector<8x128x6xf32>
    %31 = vector.shape_cast %30 : vector<8x128x6xf32> to vector<1024x6xf32>
    %c0_13 = arith.constant 0 : index
    %c0_14 = arith.constant 0 : index
    %32 = vector.load %arg5[%c0_13, %c0_14] : memref<6x9xf32, #tpu.memory_space<vmem>>, vector<6x9xf32>
    %cst_15 = arith.constant dense<0.000000e+00> : vector<1024x9xf32>
    %33 = tpu.matmul %31, %32, %cst_15 {dimension_numbers = #tpu.dot_dimension_numbers<[1], [0], [0], [1], [0, 0, 1, 1], [], []>} : vector<1024x6xf32>, vector<6x9xf32>, vector<1024x9xf32> -> vector<1024x9xf32>
    %34 = vector.shape_cast %33 : vector<1024x9xf32> to vector<8x128x9xf32>
    %35 = vector.extract_strided_slice %0 {offsets = [0, 0, 0], sizes = [8, 128, 9], strides = [1, 1, 1]} : vector<8x128x15xf32> to vector<8x128x9xf32>
    %36 = arith.addf %35, %34 : vector<8x128x9xf32>
    %37 = vector.extract_strided_slice %36 {offsets = [0, 0, 0], sizes = [1, 128, 9], strides = [1, 1, 1]} : vector<8x128x9xf32> to vector<1x128x9xf32>
    %38 = vector.shape_cast %37 : vector<1x128x9xf32> to vector<128x9xf32>
    %39 = tpu.transpose %38, [1, 0] : vector<128x9xf32> -> vector<9x128xf32>
    %c0_16 = arith.constant 0 : index
    %c0_17 = arith.constant 0 : index
    %c0_18 = arith.constant 0 : index
    %40 = vector.load %arg6[%c0_16, %c0_17, %c0_18] : memref<8x9x128xf32, #tpu.memory_space<vmem>>, vector<1x9x128xf32>
    %41 = vector.shape_cast %40 : vector<1x9x128xf32> to vector<9x128xf32>
    %42 = vector.shape_cast %39 : vector<9x128xf32> to vector<1x9x128xf32>
    tpu.vector_store %arg6[%c0_16, %c0_17, %c0_18], %42 {strides = array<i32>} : memref<8x9x128xf32, #tpu.memory_space<vmem>>, vector<1x9x128xf32>,
    %43 = vector.extract_strided_slice %36 {offsets = [1, 0, 0], sizes = [1, 128, 9], strides = [1, 1, 1]} : vector<8x128x9xf32> to vector<1x128x9xf32>
    %44 = vector.shape_cast %43 : vector<1x128x9xf32> to vector<128x9xf32>
    %45 = tpu.transpose %44, [1, 0] : vector<128x9xf32> -> vector<9x128xf32>
    %c1 = arith.constant 1 : index
    %c0_19 = arith.constant 0 : index
    %c0_20 = arith.constant 0 : index
    %46 = vector.load %arg6[%c1, %c0_19, %c0_20] : memref<8x9x128xf32, #tpu.memory_space<vmem>>, vector<1x9x128xf32>
    %47 = vector.shape_cast %46 : vector<1x9x128xf32> to vector<9x128xf32>
    %48 = vector.shape_cast %45 : vector<9x128xf32> to vector<1x9x128xf32>
    tpu.vector_store %arg6[%c1, %c0_19, %c0_20], %48 {strides = array<i32>} : memref<8x9x128xf32, #tpu.memory_space<vmem>>, vector<1x9x128xf32>,
    %49 = vector.extract_strided_slice %36 {offsets = [2, 0, 0], sizes = [1, 128, 9], strides = [1, 1, 1]} : vector<8x128x9xf32> to vector<1x128x9xf32>
    %50 = vector.shape_cast %49 : vector<1x128x9xf32> to vector<128x9xf32>
    %51 = tpu.transpose %50, [1, 0] : vector<128x9xf32> -> vector<9x128xf32>
    %c2 = arith.constant 2 : index
    %c0_21 = arith.constant 0 : index
    %c0_22 = arith.constant 0 : index
    %52 = vector.load %arg6[%c2, %c0_21, %c0_22] : memref<8x9x128xf32, #tpu.memory_space<vmem>>, vector<1x9x128xf32>
    %53 = vector.shape_cast %52 : vector<1x9x128xf32> to vector<9x128xf32>
    %54 = vector.shape_cast %51 : vector<9x128xf32> to vector<1x9x128xf32>
    tpu.vector_store %arg6[%c2, %c0_21, %c0_22], %54 {strides = array<i32>} : memref<8x9x128xf32, #tpu.memory_space<vmem>>, vector<1x9x128xf32>,
    %55 = vector.extract_strided_slice %36 {offsets = [3, 0, 0], sizes = [1, 128, 9], strides = [1, 1, 1]} : vector<8x128x9xf32> to vector<1x128x9xf32>
    %56 = vector.shape_cast %55 : vector<1x128x9xf32> to vector<128x9xf32>
    %57 = tpu.transpose %56, [1, 0] : vector<128x9xf32> -> vector<9x128xf32>
    %c3 = arith.constant 3 : index
    %c0_23 = arith.constant 0 : index
    %c0_24 = arith.constant 0 : index
    %58 = vector.load %arg6[%c3, %c0_23, %c0_24] : memref<8x9x128xf32, #tpu.memory_space<vmem>>, vector<1x9x128xf32>
    %59 = vector.shape_cast %58 : vector<1x9x128xf32> to vector<9x128xf32>
    %60 = vector.shape_cast %57 : vector<9x128xf32> to vector<1x9x128xf32>
    tpu.vector_store %arg6[%c3, %c0_23, %c0_24], %60 {strides = array<i32>} : memref<8x9x128xf32, #tpu.memory_space<vmem>>, vector<1x9x128xf32>,
    %61 = vector.extract_strided_slice %36 {offsets = [4, 0, 0], sizes = [1, 128, 9], strides = [1, 1, 1]} : vector<8x128x9xf32> to vector<1x128x9xf32>
    %62 = vector.shape_cast %61 : vector<1x128x9xf32> to vector<128x9xf32>
    %63 = tpu.transpose %62, [1, 0] : vector<128x9xf32> -> vector<9x128xf32>
    %c4 = arith.constant 4 : index
    %c0_25 = arith.constant 0 : index
    %c0_26 = arith.constant 0 : index
    %64 = vector.load %arg6[%c4, %c0_25, %c0_26] : memref<8x9x128xf32, #tpu.memory_space<vmem>>, vector<1x9x128xf32>
    %65 = vector.shape_cast %64 : vector<1x9x128xf32> to vector<9x128xf32>
    %66 = vector.shape_cast %63 : vector<9x128xf32> to vector<1x9x128xf32>
    tpu.vector_store %arg6[%c4, %c0_25, %c0_26], %66 {strides = array<i32>} : memref<8x9x128xf32, #tpu.memory_space<vmem>>, vector<1x9x128xf32>,
    %67 = vector.extract_strided_slice %36 {offsets = [5, 0, 0], sizes = [1, 128, 9], strides = [1, 1, 1]} : vector<8x128x9xf32> to vector<1x128x9xf32>
    %68 = vector.shape_cast %67 : vector<1x128x9xf32> to vector<128x9xf32>
    %69 = tpu.transpose %68, [1, 0] : vector<128x9xf32> -> vector<9x128xf32>
    %c5 = arith.constant 5 : index
    %c0_27 = arith.constant 0 : index
    %c0_28 = arith.constant 0 : index
    %70 = vector.load %arg6[%c5, %c0_27, %c0_28] : memref<8x9x128xf32, #tpu.memory_space<vmem>>, vector<1x9x128xf32>
    %71 = vector.shape_cast %70 : vector<1x9x128xf32> to vector<9x128xf32>
    %72 = vector.shape_cast %69 : vector<9x128xf32> to vector<1x9x128xf32>
    tpu.vector_store %arg6[%c5, %c0_27, %c0_28], %72 {strides = array<i32>} : memref<8x9x128xf32, #tpu.memory_space<vmem>>, vector<1x9x128xf32>,
    %73 = vector.extract_strided_slice %36 {offsets = [6, 0, 0], sizes = [1, 128, 9], strides = [1, 1, 1]} : vector<8x128x9xf32> to vector<1x128x9xf32>
    %74 = vector.shape_cast %73 : vector<1x128x9xf32> to vector<128x9xf32>
    %75 = tpu.transpose %74, [1, 0] : vector<128x9xf32> -> vector<9x128xf32>
    %c6 = arith.constant 6 : index
    %c0_29 = arith.constant 0 : index
    %c0_30 = arith.constant 0 : index
    %76 = vector.load %arg6[%c6, %c0_29, %c0_30] : memref<8x9x128xf32, #tpu.memory_space<vmem>>, vector<1x9x128xf32>
    %77 = vector.shape_cast %76 : vector<1x9x128xf32> to vector<9x128xf32>
    %78 = vector.shape_cast %75 : vector<9x128xf32> to vector<1x9x128xf32>
    tpu.vector_store %arg6[%c6, %c0_29, %c0_30], %78 {strides = array<i32>} : memref<8x9x128xf32, #tpu.memory_space<vmem>>, vector<1x9x128xf32>,
    %79 = vector.extract_strided_slice %36 {offsets = [7, 0, 0], sizes = [1, 128, 9], strides = [1, 1, 1]} : vector<8x128x9xf32> to vector<1x128x9xf32>
    %80 = vector.shape_cast %79 : vector<1x128x9xf32> to vector<128x9xf32>
    %81 = tpu.transpose %80, [1, 0] : vector<128x9xf32> -> vector<9x128xf32>
    %c7 = arith.constant 7 : index
    %c0_31 = arith.constant 0 : index
    %c0_32 = arith.constant 0 : index
    %82 = vector.load %arg6[%c7, %c0_31, %c0_32] : memref<8x9x128xf32, #tpu.memory_space<vmem>>, vector<1x9x128xf32>
    %83 = vector.shape_cast %82 : vector<1x9x128xf32> to vector<9x128xf32>
    %84 = vector.shape_cast %81 : vector<9x128xf32> to vector<1x9x128xf32>
    tpu.vector_store %arg6[%c7, %c0_31, %c0_32], %84 {strides = array<i32>} : memref<8x9x128xf32, #tpu.memory_space<vmem>>, vector<1x9x128xf32>,
    return
  }
  func.func @transform_0(%arg0: i32) -> (i32, i32, i32) {
    %c0_i32 = arith.constant 0 : i32
    %c0_i32_0 = arith.constant 0 : i32
    %c0_i32_1 = arith.constant 0 : i32
    return %arg0, %c0_i32, %c0_i32_0 : i32, i32, i32
  }
  func.func @transform_1(%arg0: i32) -> (i32, i32, i32) {
    %c0_i32 = arith.constant 0 : i32
    %c0_i32_0 = arith.constant 0 : i32
    %c0_i32_1 = arith.constant 0 : i32
    return %arg0, %c0_i32, %c0_i32_0 : i32, i32, i32
  }
  func.func @transform_2(%arg0: i32) -> (i32, i32) {
    %c0_i32 = arith.constant 0 : i32
    %c0_i32_0 = arith.constant 0 : i32
    %c0_i32_1 = arith.constant 0 : i32
    return %c0_i32, %c0_i32_0 : i32, i32
  }
  func.func @transform_3(%arg0: i32) -> (i32, i32) {
    %c0_i32 = arith.constant 0 : i32
    %c0_i32_0 = arith.constant 0 : i32
    %c0_i32_1 = arith.constant 0 : i32
    return %c0_i32, %c0_i32_0 : i32, i32
  }
  func.func @transform_4(%arg0: i32) -> (i32, i32) {
    %c0_i32 = arith.constant 0 : i32
    %c0_i32_0 = arith.constant 0 : i32
    %c0_i32_1 = arith.constant 0 : i32
    return %c0_i32, %c0_i32_0 : i32, i32
  }
  func.func @transform_5(%arg0: i32) -> (i32, i32, i32) {
    %c0_i32 = arith.constant 0 : i32
    %c0_i32_0 = arith.constant 0 : i32
    %c0_i32_1 = arith.constant 0 : i32
    return %arg0, %c0_i32, %c0_i32_0 : i32, i32, i32
  }
}

</mosaic_0001>

<llo_original>
// kernel: tpu_custom_call.1
$region0: #{tpu_custom_call.1}
  #allocation0 [shape = 'u32[]', space=smem, size = 0x4, offset = 0x4, fixed_abs, tag = 'smem constant byte address 0x4 - core index']
  #allocation1 [shape = 'u32[144,128]{1,0:T(1,128)}', space=vmem, size = 0x12000, scoped, tag = 'internal scratch']
  %s0 = inlined_call_operand.vmem [shape: f32[16,128,15], index: 0, kind: input, shape index: {}]
  %s1 = inlined_call_operand.vmem [shape: f32[16,48,14], index: 1, kind: input, shape index: {}]
  %s2 = inlined_call_operand.vmem [shape: f32[15,4], index: 2, kind: input, shape index: {}]
  %s3 = inlined_call_operand.vmem [shape: f32[14,10], index: 3, kind: input, shape index: {}]
  %s4 = inlined_call_operand.vmem [shape: f32[6,9], index: 4, kind: input, shape index: {}]
  %s5 = inlined_call_operand.vmem [shape: f32[16,9,128], index: 5, kind: output, shape index: {}]
  %s6 = sld [smem:[#allocation0]]
  $region53: #{tpu_custom_call.1} parent=0
    _
  %s8 = ssub.s32 1, %s6
  %s9 = scalar_select 0, %s8, %s6
  loop: start=0, step=1, limit=4
  $region2: #{tpu_custom_call.1} parent=0 // loop_pre_header
    _
  $region3: #{tpu_custom_call.1} parent=0 // loop_header
    %s11 = sphi 0, %s15
    %p12 = scmp.ge.s32.totalorder %s11, 4
    %s21 = sphi 0, %s23
    %s24 = sphi 0, %s21
    %s25 = sphi 0, %s24
    %s41 = sphi 0, %s25
    %s47 = sphi 0, %s49
    %s50 = sphi 0, %s47
    %s51 = sphi 0, %s50
    %s67 = sphi 0, %s51
    %s71 = sphi 0, %s71
    %s73 = sphi 0, %s71
    %s74 = sphi 0, %s73
    %s88 = sphi 0, %s74
    %s92 = sphi 0, %s92
    %s94 = sphi 0, %s92
    %s95 = sphi 0, %s94
    %s109 = sphi 0, %s95
    %s113 = sphi 0, %s113
    %s115 = sphi 0, %s113
    %s116 = sphi 0, %s115
    %s130 = sphi 0, %s116
    %s136 = sphi 0, %s138
    %s139 = sphi 0, %s136
    %s140 = sphi 0, %s139
    %s156 = sphi 0, %s140
  $region4: #{tpu_custom_call.1} parent=0 // loop_header_branch
    %14 = sbr.rel (%p12) target = $region8
  $region5: #{tpu_custom_call.1} parent=0 // loop_body
    %s16 = ssub.s32 %s11, 1
    %s17 = ssub.s32 %s11, 2
    %s18 = sadd.s32 %s11, 1
    %s19 = ssub.s32 %s11, %s18
    %p20 = scmp.eq.s32.totalorder %s19, 0
    %s22 = sadd.s32 %s21, 1
    %s23 = scalar_select %p20, %s21, %s22
    %p26 = pneg %p20
    %p27 = scmp.eq.s32.totalorder %s11, 1
    %p28 = por %p26, %p27
    %p29 = scmp.ne.s32.totalorder %s21, %s24
    %p30 = scmp.eq.s32.totalorder %s11, 0
    %p31 = por %p29, %p30
    %p32 = scmp.ne.s32.totalorder %s21, %s24
    %p33 = scmp.eq.s32.totalorder %s16, 1
    %p34 = por %p32, %p33
    %p35 = scmp.ne.s32.totalorder %s24, %s25
    %p36 = scmp.eq.s32.totalorder %s16, 0
    %p37 = por %p35, %p36
    %p38 = scmp.ne.s32.totalorder %s24, %s25
    %p39 = scmp.eq.s32.totalorder %s17, 1
    %p40 = por %p38, %p39
    %p42 = scmp.ne.s32.totalorder %s25, %s41
    %p43 = scmp.eq.s32.totalorder %s17, 0
    %p44 = por %p42, %p43
    %s45 = ssub.s32 %s11, %s18
    %p46 = scmp.eq.s32.totalorder %s45, 0
    %s48 = sadd.s32 %s47, 1
    %s49 = scalar_select %p46, %s47, %s48
    %p52 = pneg %p46
    %p53 = scmp.eq.s32.totalorder %s11, 1
    %p54 = por %p52, %p53
    %p55 = scmp.ne.s32.totalorder %s47, %s50
    %p56 = scmp.eq.s32.totalorder %s11, 0
    %p57 = por %p55, %p56
    %p58 = scmp.ne.s32.totalorder %s47, %s50
    %p59 = scmp.eq.s32.totalorder %s16, 1
    %p60 = por %p58, %p59
    %p61 = scmp.ne.s32.totalorder %s50, %s51
    %p62 = scmp.eq.s32.totalorder %s16, 0
    %p63 = por %p61, %p62
    %p64 = scmp.ne.s32.totalorder %s50, %s51
    %p65 = scmp.eq.s32.totalorder %s17, 1
    %p66 = por %p64, %p65
    %p68 = scmp.ne.s32.totalorder %s51, %s67
    %p69 = scmp.eq.s32.totalorder %s17, 0
    %p70 = por %p68, %p69
    %s72 = sadd.s32 %s71, 1
    %p75 = scmp.eq.s32.totalorder %s11, 1
    %p76 = scmp.ne.s32.totalorder %s71, %s73
    %p77 = scmp.eq.s32.totalorder %s11, 0
    %p78 = por %p76, %p77
    %p79 = scmp.ne.s32.totalorder %s71, %s73
    %p80 = scmp.eq.s32.totalorder %s16, 1
    %p81 = por %p79, %p80
    %p82 = scmp.ne.s32.totalorder %s73, %s74
    %p83 = scmp.eq.s32.totalorder %s16, 0
    %p84 = por %p82, %p83
    %p85 = scmp.ne.s32.totalorder %s73, %s74
    %p86 = scmp.eq.s32.totalorder %s17, 1
    %p87 = por %p85, %p86
    %p89 = scmp.ne.s32.totalorder %s74, %s88
    %p90 = scmp.eq.s32.totalorder %s17, 0
    %p91 = por %p89, %p90
    %s93 = sadd.s32 %s92, 1
    %p96 = scmp.eq.s32.totalorder %s11, 1
    %p97 = scmp.ne.s32.totalorder %s92, %s94
    %p98 = scmp.eq.s32.totalorder %s11, 0
    %p99 = por %p97, %p98
    %p100 = scmp.ne.s32.totalorder %s92, %s94
    %p101 = scmp.eq.s32.totalorder %s16, 1
    %p102 = por %p100, %p101
    %p103 = scmp.ne.s32.totalorder %s94, %s95
    %p104 = scmp.eq.s32.totalorder %s16, 0
    %p105 = por %p103, %p104
    %p106 = scmp.ne.s32.totalorder %s94, %s95
    %p107 = scmp.eq.s32.totalorder %s17, 1
    %p108 = por %p106, %p107
    %p110 = scmp.ne.s32.totalorder %s95, %s109
    %p111 = scmp.eq.s32.totalorder %s17, 0
    %p112 = por %p110, %p111
    %s114 = sadd.s32 %s113, 1
    %p117 = scmp.eq.s32.totalorder %s11, 1
    %p118 = scmp.ne.s32.totalorder %s113, %s115
    %p119 = scmp.eq.s32.totalorder %s11, 0
    %p120 = por %p118, %p119
    %p121 = scmp.ne.s32.totalorder %s113, %s115
    %p122 = scmp.eq.s32.totalorder %s16, 1
    %p123 = por %p121, %p122
    %p124 = scmp.ne.s32.totalorder %s115, %s116
    %p125 = scmp.eq.s32.totalorder %s16, 0
    %p126 = por %p124, %p125
    %p127 = scmp.ne.s32.totalorder %s115, %s116
    %p128 = scmp.eq.s32.totalorder %s17, 1
    %p129 = por %p127, %p128
    %p131 = scmp.ne.s32.totalorder %s116, %s130
    %p132 = scmp.eq.s32.totalorder %s17, 0
    %p133 = por %p131, %p132
    %s134 = ssub.s32 %s11, %s18
    %p135 = scmp.eq.s32.totalorder %s134, 0
    %s137 = sadd.s32 %s136, 1
    %s138 = scalar_select %p135, %s136, %s137
    %p141 = pneg %p135
    %p142 = scmp.eq.s32.totalorder %s11, 1
    %p143 = por %p141, %p142
    %p144 = scmp.ne.s32.totalorder %s136, %s139
    %p145 = scmp.eq.s32.totalorder %s11, 0
    %p146 = por %p144, %p145
    %p147 = scmp.ne.s32.totalorder %s136, %s139
    %p148 = scmp.eq.s32.totalorder %s16, 1
    %p149 = por %p147, %p148
    %p150 = scmp.ne.s32.totalorder %s139, %s140
    %p151 = scmp.eq.s32.totalorder %s16, 0
    %p152 = por %p150, %p151
    %p153 = scmp.ne.s32.totalorder %s139, %s140
    %p154 = scmp.eq.s32.totalorder %s17, 1
    %p155 = por %p153, %p154
    %p157 = scmp.ne.s32.totalorder %s140, %s156
    %p158 = scmp.eq.s32.totalorder %s17, 0
    %p159 = por %p157, %p158
    %p160 = scmp.le.s32.totalorder 1, %s11
    %p161 = scmp.lt.s32.totalorder %s11, 3
    %p162 = pnand %p160, %p161
    %p163 = pneg %p162
    // Predicated region
    $region9: #{tpu_custom_call.1} parent=5 // pred_check
      _
    $region10: #{tpu_custom_call.1} parent=5 // pred_check_branch
      %165 = sbr.rel (%p162) target = $region12
    $region11: #{tpu_custom_call.1} parent=5 // pred_region
      %s166 = ssub.s32 %s11, 1
      // Predicated region
      $region13: #{tpu_custom_call.1} parent=11 // pred_check
        %p167 = pneg %p84
      $region14: #{tpu_custom_call.1} parent=11 // pred_check_branch
        %169 = sbr.rel (%p167) target = $region16
      $region15: #{tpu_custom_call.1} parent=11 // pred_region
        _
      $region16: #{tpu_custom_call.1} parent=11 // pred_fallthru
        _
      // Predicated region
      $region17: #{tpu_custom_call.1} parent=11 // pred_check
        %p170 = pneg %p105
      $region18: #{tpu_custom_call.1} parent=11 // pred_check_branch
        %172 = sbr.rel (%p170) target = $region20
      $region19: #{tpu_custom_call.1} parent=11 // pred_region
        _
      $region20: #{tpu_custom_call.1} parent=11 // pred_fallthru
        _
      // Predicated region
      $region21: #{tpu_custom_call.1} parent=11 // pred_check
        %p173 = pneg %p126
      $region22: #{tpu_custom_call.1} parent=11 // pred_check_branch
        %175 = sbr.rel (%p173) target = $region24
      $region23: #{tpu_custom_call.1} parent=11 // pred_region
        _
      $region24: #{tpu_custom_call.1} parent=11 // pred_fallthru
        _
    $region12: #{tpu_custom_call.1} parent=5 // pred_fallthru
      _
    %p176 = scmp.lt.s32.totalorder %s11, 2
    // Predicated region
    $region25: #{tpu_custom_call.1} parent=5 // pred_check
      %p177 = pneg %p176
    $region26: #{tpu_custom_call.1} parent=5 // pred_check_branch
      %179 = sbr.rel (%p177) target = $region28
    $region27: #{tpu_custom_call.1} parent=5 // pred_region
      // Predicated region
      $region29: #{tpu_custom_call.1} parent=27 // pred_check
        %p180 = pneg %p31
      $region30: #{tpu_custom_call.1} parent=27 // pred_check_branch
        %182 = sbr.rel (%p180) target = $region32
      $region31: #{tpu_custom_call.1} parent=27 // pred_region
        %s183 = smul.u32 8, %s11
        %p184 = scmp.lt.s32.totalorder %s183, 15
        %s185 = scalar_select %p184, %s183, 15
        %s186 = smul.addr %s185, 16
        %s187 = smul.addr %s186, 8
        %s188 = scalar_lea.vmem %s0, %s187
        %s189 = smul.u32 8, %s11
      $region32: #{tpu_custom_call.1} parent=27 // pred_fallthru
        _
      // Predicated region
      $region33: #{tpu_custom_call.1} parent=27 // pred_check
        %p190 = pneg %p57
      $region34: #{tpu_custom_call.1} parent=27 // pred_check_branch
        %192 = sbr.rel (%p190) target = $region36
      $region35: #{tpu_custom_call.1} parent=27 // pred_region
        %s193 = smul.u32 8, %s11
        %p194 = scmp.lt.s32.totalorder %s193, 15
        %s195 = scalar_select %p194, %s193, 15
        %s196 = smul.addr %s195, 6
        %s197 = smul.addr %s196, 8
        %s198 = scalar_lea.vmem %s1, %s197
        %s199 = smul.u32 8, %s11
      $region36: #{tpu_custom_call.1} parent=27 // pred_fallthru
        _
    $region28: #{tpu_custom_call.1} parent=5 // pred_fallthru
      _
    %p200 = scmp.le.s32.totalorder 1, %s11
    %p201 = scmp.lt.s32.totalorder %s11, 3
    %p202 = pnand %p200, %p201
    %p203 = pneg %p202
    // Predicated region
    $region37: #{tpu_custom_call.1} parent=5 // pred_check
      _
    $region38: #{tpu_custom_call.1} parent=5 // pred_check_branch
      %205 = sbr.rel (%p202) target = $region40
    $region39: #{tpu_custom_call.1} parent=5 // pred_region
      %s206 = ssub.s32 %s11, 1
      %s207 = smul.u32 8, %s16
      %p208 = scmp.lt.s32.totalorder %s207, 15
      %s209 = scalar_select %p208, %s207, 15
      %s210 = smul.addr %s209, 16
      %s211 = smul.addr %s210, 8
      %s212 = scalar_lea.vmem %s0, %s211
      %p213 = pneg %p37
      %p214 = pneg %p34
      %s215 = smul.u32 8, %s16
      %p216 = scmp.lt.s32.totalorder %s215, 15
      %s217 = scalar_select %p216, %s215, 15
      %s218 = smul.addr %s217, 6
      %s219 = smul.addr %s218, 8
      %s220 = scalar_lea.vmem %s1, %s219
      %p221 = pneg %p63
      %p222 = pneg %p60
      %p223 = pneg %p84
      %p224 = pneg %p81
      %p225 = pneg %p105
      %p226 = pneg %p102
      %p227 = pneg %p126
      %p228 = pneg %p123
      %p229 = pneg %p152
      %p230 = pneg %p149
      %s231 = smul.u32 8, %s16
      %p232 = scmp.lt.s32.totalorder %s231, 15
      %s233 = scalar_select %p232, %s231, 15
      %s234 = smul.addr %s233, 2
      %s235 = smul.addr %s234, 8
      %s236 = scalar_lea.vmem %s5, %s235
      %s237 = smul.u32 8, %s16
      %p238 = scmp.lt.s32.totalorder %s237, 15
      %s239 = scalar_select %p238, %s237, 15
      %s240 = smul.addr %s239, 16
      %s241 = smul.addr %s240, 8
      %s242 = scalar_lea.vmem %s0, %s241
      %s243 = smul.u32 8, %s16
      %s244 = smul.u32 8, %s16
      %p245 = scmp.lt.s32.totalorder %s244, 15
      %s246 = scalar_select %p245, %s244, 15
      %s247 = smul.addr %s246, 6
      %s248 = smul.addr %s247, 8
      %s249 = scalar_lea.vmem %s1, %s248
      %s250 = smul.u32 8, %s16
      %s251 = smul.u32 8, %s16
      %p252 = scmp.lt.s32.totalorder %s251, 15
      %s253 = scalar_select %p252, %s251, 15
      %s254 = smul.addr %s253, 2
      %s255 = smul.addr %s254, 8
      %s256 = scalar_lea.vmem %s5, %s255
      %s257 = smul.u32 8, %s16
      %v259 = vld [vmem:[%s242] sm:$0xff]
      %v260 = vld [vmem:[%s242 + $0x8] sm:$0xff]
      %v261 = vld [vmem:[%s242 + $0x10] sm:$0xff]
      %v262 = vld [vmem:[%s242 + $0x18] sm:$0xff]
      %v263 = vld [vmem:[%s242 + $0x20] sm:$0xff]
      %v264 = vld [vmem:[%s242 + $0x28] sm:$0xff]
      %v265 = vld [vmem:[%s242 + $0x30] sm:$0xff]
      %v266 = vld [vmem:[%s242 + $0x38] sm:$0xff]
      %v267 = vld [vmem:[%s242 + $0x40] sm:$0xff]
      %v268 = vld [vmem:[%s242 + $0x48] sm:$0xff]
      %v269 = vld [vmem:[%s242 + $0x50] sm:$0xff]
      %v270 = vld [vmem:[%s242 + $0x58] sm:$0xff]
      %v271 = vld [vmem:[%s242 + $0x60] sm:$0xff]
      %v272 = vld [vmem:[%s242 + $0x68] sm:$0xff]
      %v273 = vld [vmem:[%s242 + $0x70] sm:$0xff]
      %v274 = vld [vmem:[%s242 + $0x78] sm:$0xff]
      %v275 = vld [vmem:[%s242 + $0x80] sm:$0xff]
      %v276 = vld [vmem:[%s242 + $0x88] sm:$0xff]
      %v277 = vld [vmem:[%s242 + $0x90] sm:$0xff]
      %v278 = vld [vmem:[%s242 + $0x98] sm:$0xff]
      %v279 = vld [vmem:[%s242 + $0xa0] sm:$0xff]
      %v280 = vld [vmem:[%s242 + $0xa8] sm:$0xff]
      %v281 = vld [vmem:[%s242 + $0xb0] sm:$0xff]
      %v282 = vld [vmem:[%s242 + $0xb8] sm:$0xff]
      %v283 = vld [vmem:[%s242 + $0xc0] sm:$0xff]
      %v284 = vld [vmem:[%s242 + $0xc8] sm:$0xff]
      %v285 = vld [vmem:[%s242 + $0xd0] sm:$0xff]
      %v286 = vld [vmem:[%s242 + $0xd8] sm:$0xff]
      %v287 = vld [vmem:[%s242 + $0xe0] sm:$0xff]
      %v288 = vld [vmem:[%s242 + $0xe8] sm:$0xff]
      %v289 = vld [vmem:[%s242 + $0xf0] sm:$0xff]
      %v290 = vld [vmem:[%s242 + $0xf8] sm:$0xff]
      %v291 = vld [vmem:[%s242 + $0x100] sm:$0xff]
      %v292 = vld [vmem:[%s242 + $0x108] sm:$0xff]
      %v293 = vld [vmem:[%s242 + $0x110] sm:$0xff]
      %v294 = vld [vmem:[%s242 + $0x118] sm:$0xff]
      %v295 = vld [vmem:[%s242 + $0x120] sm:$0xff]
      %v296 = vld [vmem:[%s242 + $0x128] sm:$0xff]
      %v297 = vld [vmem:[%s242 + $0x130] sm:$0xff]
      %v298 = vld [vmem:[%s242 + $0x138] sm:$0xff]
      %v299 = vld [vmem:[%s242 + $0x140] sm:$0xff]
      %v300 = vld [vmem:[%s242 + $0x148] sm:$0xff]
      %v301 = vld [vmem:[%s242 + $0x150] sm:$0xff]
      %v302 = vld [vmem:[%s242 + $0x158] sm:$0xff]
      %v303 = vld [vmem:[%s242 + $0x160] sm:$0xff]
      %v304 = vld [vmem:[%s242 + $0x168] sm:$0xff]
      %v305 = vld [vmem:[%s242 + $0x170] sm:$0xff]
      %v306 = vld [vmem:[%s242 + $0x178] sm:$0xff]
      %v307 = vld [vmem:[%s242 + $0x180] sm:$0xff]
      %v308 = vld [vmem:[%s242 + $0x188] sm:$0xff]
      %v309 = vld [vmem:[%s242 + $0x190] sm:$0xff]
      %v310 = vld [vmem:[%s242 + $0x198] sm:$0xff]
      %v311 = vld [vmem:[%s242 + $0x1a0] sm:$0xff]
      %v312 = vld [vmem:[%s242 + $0x1a8] sm:$0xff]
      %v313 = vld [vmem:[%s242 + $0x1b0] sm:$0xff]
      %v314 = vld [vmem:[%s242 + $0x1b8] sm:$0xff]
      %v315 = vld [vmem:[%s242 + $0x1c0] sm:$0xff]
      %v316 = vld [vmem:[%s242 + $0x1c8] sm:$0xff]
      %v317 = vld [vmem:[%s242 + $0x1d0] sm:$0xff]
      %v318 = vld [vmem:[%s242 + $0x1d8] sm:$0xff]
      %v319 = vld [vmem:[%s242 + $0x1e0] sm:$0xff]
      %v320 = vld [vmem:[%s242 + $0x1e8] sm:$0xff]
      %v321 = vld [vmem:[%s242 + $0x1f0] sm:$0xff]
      %v322 = vld [vmem:[%s242 + $0x1f8] sm:$0xff]
      %v323 = vld [vmem:[%s242 + $0x200] sm:$0xff]
      %v324 = vld [vmem:[%s242 + $0x208] sm:$0xff]
      %v325 = vld [vmem:[%s242 + $0x210] sm:$0xff]
      %v326 = vld [vmem:[%s242 + $0x218] sm:$0xff]
      %v327 = vld [vmem:[%s242 + $0x220] sm:$0xff]
      %v328 = vld [vmem:[%s242 + $0x228] sm:$0xff]
      %v329 = vld [vmem:[%s242 + $0x230] sm:$0xff]
      %v330 = vld [vmem:[%s242 + $0x238] sm:$0xff]
      %v331 = vld [vmem:[%s242 + $0x240] sm:$0xff]
      %v332 = vld [vmem:[%s242 + $0x248] sm:$0xff]
      %v333 = vld [vmem:[%s242 + $0x250] sm:$0xff]
      %v334 = vld [vmem:[%s242 + $0x258] sm:$0xff]
      %v335 = vld [vmem:[%s242 + $0x260] sm:$0xff]
      %v336 = vld [vmem:[%s242 + $0x268] sm:$0xff]
      %v337 = vld [vmem:[%s242 + $0x270] sm:$0xff]
      %v338 = vld [vmem:[%s242 + $0x278] sm:$0xff]
      %v339 = vld [vmem:[%s242 + $0x280] sm:$0xff]
      %v340 = vld [vmem:[%s242 + $0x288] sm:$0xff]
      %v341 = vld [vmem:[%s242 + $0x290] sm:$0xff]
      %v342 = vld [vmem:[%s242 + $0x298] sm:$0xff]
      %v343 = vld [vmem:[%s242 + $0x2a0] sm:$0xff]
      %v344 = vld [vmem:[%s242 + $0x2a8] sm:$0xff]
      %v345 = vld [vmem:[%s242 + $0x2b0] sm:$0xff]
      %v346 = vld [vmem:[%s242 + $0x2b8] sm:$0xff]
      %v347 = vld [vmem:[%s242 + $0x2c0] sm:$0xff]
      %v348 = vld [vmem:[%s242 + $0x2c8] sm:$0xff]
      %v349 = vld [vmem:[%s242 + $0x2d0] sm:$0xff]
      %v350 = vld [vmem:[%s242 + $0x2d8] sm:$0xff]
      %v351 = vld [vmem:[%s242 + $0x2e0] sm:$0xff]
      %v352 = vld [vmem:[%s242 + $0x2e8] sm:$0xff]
      %v353 = vld [vmem:[%s242 + $0x2f0] sm:$0xff]
      %v354 = vld [vmem:[%s242 + $0x2f8] sm:$0xff]
      %v355 = vld [vmem:[%s242 + $0x300] sm:$0xff]
      %v356 = vld [vmem:[%s242 + $0x308] sm:$0xff]
      %v357 = vld [vmem:[%s242 + $0x310] sm:$0xff]
      %v358 = vld [vmem:[%s242 + $0x318] sm:$0xff]
      %v359 = vld [vmem:[%s242 + $0x320] sm:$0xff]
      %v360 = vld [vmem:[%s242 + $0x328] sm:$0xff]
      %v361 = vld [vmem:[%s242 + $0x330] sm:$0xff]
      %v362 = vld [vmem:[%s242 + $0x338] sm:$0xff]
      %v363 = vld [vmem:[%s242 + $0x340] sm:$0xff]
      %v364 = vld [vmem:[%s242 + $0x348] sm:$0xff]
      %v365 = vld [vmem:[%s242 + $0x350] sm:$0xff]
      %v366 = vld [vmem:[%s242 + $0x358] sm:$0xff]
      %v367 = vld [vmem:[%s242 + $0x360] sm:$0xff]
      %v368 = vld [vmem:[%s242 + $0x368] sm:$0xff]
      %v369 = vld [vmem:[%s242 + $0x370] sm:$0xff]
      %v370 = vld [vmem:[%s242 + $0x378] sm:$0xff]
      %v371 = vld [vmem:[%s242 + $0x380] sm:$0xff]
      %v372 = vld [vmem:[%s242 + $0x388] sm:$0xff]
      %v373 = vld [vmem:[%s242 + $0x390] sm:$0xff]
      %v374 = vld [vmem:[%s242 + $0x398] sm:$0xff]
      %v375 = vld [vmem:[%s242 + $0x3a0] sm:$0xff]
      %v376 = vld [vmem:[%s242 + $0x3a8] sm:$0xff]
      %v377 = vld [vmem:[%s242 + $0x3b0] sm:$0xff]
      %v378 = vld [vmem:[%s242 + $0x3b8] sm:$0xff]
      %v379 = vld [vmem:[%s242 + $0x3c0] sm:$0xff]
      %v380 = vld [vmem:[%s242 + $0x3c8] sm:$0xff]
      %v381 = vld [vmem:[%s242 + $0x3d0] sm:$0xff]
      %v382 = vld [vmem:[%s242 + $0x3d8] sm:$0xff]
      %v383 = vld [vmem:[%s242 + $0x3e0] sm:$0xff]
      %v384 = vld [vmem:[%s242 + $0x3e8] sm:$0xff]
      %v385 = vld [vmem:[%s242 + $0x3f0] sm:$0xff]
      %v386 = vld [vmem:[%s242 + $0x3f8] sm:$0xff]
      %v387 = vld [vmem:[%s249] sm:$0xff]
      %v388 = vld [vmem:[%s249 + $0x8] sm:$0xff]
      %v389 = vld [vmem:[%s249 + $0x10] sm:$0xff]
      %v390 = vld [vmem:[%s249 + $0x18] sm:$0xff]
      %v391 = vld [vmem:[%s249 + $0x20] sm:$0xff]
      %v392 = vld [vmem:[%s249 + $0x28] sm:$0xff]
      %v393 = vld [vmem:[%s249 + $0x30] sm:$0xff]
      %v394 = vld [vmem:[%s249 + $0x38] sm:$0xff]
      %v395 = vld [vmem:[%s249 + $0x40] sm:$0xff]
      %v396 = vld [vmem:[%s249 + $0x48] sm:$0xff]
      %v397 = vld [vmem:[%s249 + $0x50] sm:$0xff]
      %v398 = vld [vmem:[%s249 + $0x58] sm:$0xff]
      %v399 = vld [vmem:[%s249 + $0x60] sm:$0xff]
      %v400 = vld [vmem:[%s249 + $0x68] sm:$0xff]
      %v401 = vld [vmem:[%s249 + $0x70] sm:$0xff]
      %v402 = vld [vmem:[%s249 + $0x78] sm:$0xff]
      %v403 = vld [vmem:[%s249 + $0x80] sm:$0xff]
      %v404 = vld [vmem:[%s249 + $0x88] sm:$0xff]
      %v405 = vld [vmem:[%s249 + $0x90] sm:$0xff]
      %v406 = vld [vmem:[%s249 + $0x98] sm:$0xff]
      %v407 = vld [vmem:[%s249 + $0xa0] sm:$0xff]
      %v408 = vld [vmem:[%s249 + $0xa8] sm:$0xff]
      %v409 = vld [vmem:[%s249 + $0xb0] sm:$0xff]
      %v410 = vld [vmem:[%s249 + $0xb8] sm:$0xff]
      %v411 = vld [vmem:[%s249 + $0xc0] sm:$0xff]
      %v412 = vld [vmem:[%s249 + $0xc8] sm:$0xff]
      %v413 = vld [vmem:[%s249 + $0xd0] sm:$0xff]
      %v414 = vld [vmem:[%s249 + $0xd8] sm:$0xff]
      %v415 = vld [vmem:[%s249 + $0xe0] sm:$0xff]
      %v416 = vld [vmem:[%s249 + $0xe8] sm:$0xff]
      %v417 = vld [vmem:[%s249 + $0xf0] sm:$0xff]
      %v418 = vld [vmem:[%s249 + $0xf8] sm:$0xff]
      %v419 = vld [vmem:[%s249 + $0x100] sm:$0xff]
      %v420 = vld [vmem:[%s249 + $0x108] sm:$0xff]
      %v421 = vld [vmem:[%s249 + $0x110] sm:$0xff]
      %v422 = vld [vmem:[%s249 + $0x118] sm:$0xff]
      %v423 = vld [vmem:[%s249 + $0x120] sm:$0xff]
      %v424 = vld [vmem:[%s249 + $0x128] sm:$0xff]
      %v425 = vld [vmem:[%s249 + $0x130] sm:$0xff]
      %v426 = vld [vmem:[%s249 + $0x138] sm:$0xff]
      %v427 = vld [vmem:[%s249 + $0x140] sm:$0xff]
      %v428 = vld [vmem:[%s249 + $0x148] sm:$0xff]
      %v429 = vld [vmem:[%s249 + $0x150] sm:$0xff]
      %v430 = vld [vmem:[%s249 + $0x158] sm:$0xff]
      %v431 = vld [vmem:[%s249 + $0x160] sm:$0xff]
      %v432 = vld [vmem:[%s249 + $0x168] sm:$0xff]
      %v433 = vld [vmem:[%s249 + $0x170] sm:$0xff]
      %v434 = vld [vmem:[%s249 + $0x178] sm:$0xff]
      %v435 = vpack.c.bf16 %v260, %v259
      %v436 = vpack.c.bf16 %v262, %v261
      %v437 = vpack.c.bf16 %v264, %v263
      %v438 = vpack.c.bf16 %v266, %v265
      %v439 = vpack.c.bf16 %v268, %v267
      %v440 = vpack.c.bf16 %v270, %v269
      %v441 = vpack.c.bf16 %v272, %v271
      %v442 = vpack.c.bf16 %v274, %v273
      %v443 = vpack.c.bf16 %v276, %v275
      %v444 = vpack.c.bf16 %v278, %v277
      %v445 = vpack.c.bf16 %v280, %v279
      %v446 = vpack.c.bf16 %v282, %v281
      %v447 = vpack.c.bf16 %v284, %v283
      %v448 = vpack.c.bf16 %v286, %v285
      %v449 = vpack.c.bf16 %v288, %v287
      %v450 = vpack.c.bf16 %v290, %v289
      %v451 = vpack.c.bf16 %v292, %v291
      %v452 = vpack.c.bf16 %v294, %v293
      %v453 = vpack.c.bf16 %v296, %v295
      %v454 = vpack.c.bf16 %v298, %v297
      %v455 = vpack.c.bf16 %v300, %v299
      %v456 = vpack.c.bf16 %v302, %v301
      %v457 = vpack.c.bf16 %v304, %v303
      %v458 = vpack.c.bf16 %v306, %v305
      %v459 = vpack.c.bf16 %v308, %v307
      %v460 = vpack.c.bf16 %v310, %v309
      %v461 = vpack.c.bf16 %v312, %v311
      %v462 = vpack.c.bf16 %v314, %v313
      %v463 = vpack.c.bf16 %v316, %v315
      %v464 = vpack.c.bf16 %v318, %v317
      %v465 = vpack.c.bf16 %v320, %v319
      %v466 = vpack.c.bf16 %v322, %v321
      %v467 = vpack.c.bf16 %v324, %v323
      %v468 = vpack.c.bf16 %v326, %v325
      %v469 = vpack.c.bf16 %v328, %v327
      %v470 = vpack.c.bf16 %v330, %v329
      %v471 = vpack.c.bf16 %v332, %v331
      %v472 = vpack.c.bf16 %v334, %v333
      %v473 = vpack.c.bf16 %v336, %v335
      %v474 = vpack.c.bf16 %v338, %v337
      %v475 = vpack.c.bf16 %v340, %v339
      %v476 = vpack.c.bf16 %v342, %v341
      %v477 = vpack.c.bf16 %v344, %v343
      %v478 = vpack.c.bf16 %v346, %v345
      %v479 = vpack.c.bf16 %v348, %v347
      %v480 = vpack.c.bf16 %v350, %v349
      %v481 = vpack.c.bf16 %v352, %v351
      %v482 = vpack.c.bf16 %v354, %v353
      %v483 = vpack.c.bf16 %v356, %v355
      %v484 = vpack.c.bf16 %v358, %v357
      %v485 = vpack.c.bf16 %v360, %v359
      %v486 = vpack.c.bf16 %v362, %v361
      %v487 = vpack.c.bf16 %v364, %v363
      %v488 = vpack.c.bf16 %v366, %v365
      %v489 = vpack.c.bf16 %v368, %v367
      %v490 = vpack.c.bf16 %v370, %v369
      %v491 = vpack.c.bf16 %v372, %v371
      %v492 = vpack.c.bf16 %v374, %v373
      %v493 = vpack.c.bf16 %v376, %v375
      %v494 = vpack.c.bf16 %v378, %v377
      %v495 = vpack.c.bf16 %v380, %v379
      %v496 = vpack.c.bf16 %v382, %v381
      %v497 = vpack.c.bf16 %v384, %v383
      %v498 = vpack.c.bf16 %v386, %v385
      %v499 = vld [vmem:[%s2] sm:$0xff]
      %v500 = vld [vmem:[%s2 + $0x8] sm:$0x7f]
      %v501 = vpack.c.bf16 %v500, %v499
      %vm502 = vcmask 121856
      %v504 = vsel %vm502, %v435, 0
      %v507 = vsel %vm502, %v436, 0
      %v510 = vsel %vm502, %v437, 0
      %v513 = vsel %vm502, %v438, 0
      %v516 = vsel %vm502, %v439, 0
      %v519 = vsel %vm502, %v440, 0
      %v522 = vsel %vm502, %v441, 0
      %v525 = vsel %vm502, %v442, 0
      %v528 = vsel %vm502, %v443, 0
      %v531 = vsel %vm502, %v444, 0
      %v534 = vsel %vm502, %v445, 0
      %v537 = vsel %vm502, %v446, 0
      %v540 = vsel %vm502, %v447, 0
      %v543 = vsel %vm502, %v448, 0
      %v546 = vsel %vm502, %v449, 0
      %v549 = vsel %vm502, %v450, 0
      %v552 = vsel %vm502, %v451, 0
      %v555 = vsel %vm502, %v452, 0
      %v558 = vsel %vm502, %v453, 0
      %v561 = vsel %vm502, %v454, 0
      %v564 = vsel %vm502, %v455, 0
      %v567 = vsel %vm502, %v456, 0
      %v570 = vsel %vm502, %v457, 0
      %v573 = vsel %vm502, %v458, 0
      %v576 = vsel %vm502, %v459, 0
      %v579 = vsel %vm502, %v460, 0
      %v582 = vsel %vm502, %v461, 0
      %v585 = vsel %vm502, %v462, 0
      %v588 = vsel %vm502, %v463, 0
      %v591 = vsel %vm502, %v464, 0
      %v594 = vsel %vm502, %v465, 0
      %v597 = vsel %vm502, %v466, 0
      %v600 = vsel %vm502, %v467, 0
      %v603 = vsel %vm502, %v468, 0
      %v606 = vsel %vm502, %v469, 0
      %v609 = vsel %vm502, %v470, 0
      %v612 = vsel %vm502, %v471, 0
      %v615 = vsel %vm502, %v472, 0
      %v618 = vsel %vm502, %v473, 0
      %v621 = vsel %vm502, %v474, 0
      %v624 = vsel %vm502, %v475, 0
      %v627 = vsel %vm502, %v476, 0
      %v630 = vsel %vm502, %v477, 0
      %v633 = vsel %vm502, %v478, 0
      %v636 = vsel %vm502, %v479, 0
      %v639 = vsel %vm502, %v480, 0
      %v642 = vsel %vm502, %v481, 0
      %v645 = vsel %vm502, %v482, 0
      %v648 = vsel %vm502, %v483, 0
      %v651 = vsel %vm502, %v484, 0
      %v654 = vsel %vm502, %v485, 0
      %v657 = vsel %vm502, %v486, 0
      %v660 = vsel %vm502, %v487, 0
      %v663 = vsel %vm502, %v488, 0
      %v666 = vsel %vm502, %v489, 0
      %v669 = vsel %vm502, %v490, 0
      %v672 = vsel %vm502, %v491, 0
      %v675 = vsel %vm502, %v492, 0
      %v678 = vsel %vm502, %v493, 0
      %v681 = vsel %vm502, %v494, 0
      %v684 = vsel %vm502, %v495, 0
      %v687 = vsel %vm502, %v496, 0
      %v690 = vsel %vm502, %v497, 0
      %v693 = vsel %vm502, %v498, 0
      %vm695 = vcmask 1046528
      %vm696 = vcmask 1047552
      %v697 = vsel %vm695, 4294967295, 65535
      %v698 = vsel %vm696, %v697, 0
      %v700 = vand.u32 %v501, %v698
      %702 = vmatprep.subr.bf16.mxu0 0
      %703 = vmatpush1.bf16.msra.mxu0 0
      %704 = vmatprep.subr.bf16.mxu0 0
      %705 = vmatpush1.bf16.msra.mxu0 0
      %706 = vmatprep.subr.bf16.mxu0 0
      %707 = vmatpush1.bf16.msra.mxu0 0
      %708 = vmatprep.subr.bf16.mxu0 0
      %709 = vmatpush1.bf16.msra.mxu0 0
      %710 = vmatprep.subr.bf16.mxu0 0
      %711 = vmatpush1.bf16.msra.mxu0 0
      %712 = vmatprep.subr.bf16.mxu0 0
      %713 = vmatpush1.bf16.msra.mxu0 0
      %714 = vmatprep.subr.bf16.mxu0 0
      %715 = vmatpush1.bf16.msra.mxu0 0
      %716 = vmatprep.subr.bf16.mxu0 0
      %717 = vmatpush1.bf16.msra.mxu0 %v700
      %718 = vmatprep.subr.bf16.mxu0 0
      %719 = vmatpush2.bf16.msra.mxu0 0
      %720 = vmatprep.subr.bf16.mxu0 0
      %721 = vmatpush2.bf16.msra.mxu0 0
      %722 = vmatprep.subr.bf16.mxu0 0
      %723 = vmatpush2.bf16.msra.mxu0 0
      %724 = vmatprep.subr.bf16.mxu0 0
      %725 = vmatpush2.bf16.msra.mxu0 0
      %726 = vmatprep.subr.bf16.mxu0 0
      %727 = vmatpush2.bf16.msra.mxu0 0
      %728 = vmatprep.subr.bf16.mxu0 0
      %729 = vmatpush2.bf16.msra.mxu0 0
      %730 = vmatprep.subr.bf16.mxu0 0
      %731 = vmatpush2.bf16.msra.mxu0 0
      %732 = vmatprep.subr.bf16.mxu0 0
      %733 = vmatpush2.bf16.msra.mxu0 0
      %734 = vmatprep.mubr.bf16.mxu0 0
      %735 = vmatmul.mubr.bf16.gmra.mxu0 %v504
      %v736 = vpop.f32.mrf.mxu0
      %v737 = vadd.f32 0.0, %v736
      %v738 = vpop.f32.mrf.mxu0
      %v739 = vpop.f32.mrf.mxu0
      %v740 = vadd.f32 0.0, %v739
      %v741 = vpop.f32.mrf.mxu0
      %742 = vmatprep.mubr.bf16.mxu0 0
      %743 = vmatmul.mubr.bf16.gmra.mxu0 %v507
      %v744 = vpop.f32.mrf.mxu0
      %v745 = vadd.f32 0.0, %v744
      %v746 = vpop.f32.mrf.mxu0
      %v747 = vpop.f32.mrf.mxu0
      %v748 = vadd.f32 0.0, %v747
      %v749 = vpop.f32.mrf.mxu0
      %750 = vmatprep.mubr.bf16.mxu0 0
      %751 = vmatmul.mubr.bf16.gmra.mxu0 %v510
      %v752 = vpop.f32.mrf.mxu0
      %v753 = vadd.f32 0.0, %v752
      %v754 = vpop.f32.mrf.mxu0
      %v755 = vpop.f32.mrf.mxu0
      %v756 = vadd.f32 0.0, %v755
      %v757 = vpop.f32.mrf.mxu0
      %758 = vmatprep.mubr.bf16.mxu0 0
      %759 = vmatmul.mubr.bf16.gmra.mxu0 %v513
      %v760 = vpop.f32.mrf.mxu0
      %v761 = vadd.f32 0.0, %v760
      %v762 = vpop.f32.mrf.mxu0
      %v763 = vpop.f32.mrf.mxu0
      %v764 = vadd.f32 0.0, %v763
      %v765 = vpop.f32.mrf.mxu0
      %766 = vmatprep.mubr.bf16.mxu0 0
      %767 = vmatmul.mubr.bf16.gmra.mxu0 %v516
      %v768 = vpop.f32.mrf.mxu0
      %v769 = vadd.f32 0.0, %v768
      %v770 = vpop.f32.mrf.mxu0
      %v771 = vpop.f32.mrf.mxu0
      %v772 = vadd.f32 0.0, %v771
      %v773 = vpop.f32.mrf.mxu0
      %774 = vmatprep.mubr.bf16.mxu0 0
      %775 = vmatmul.mubr.bf16.gmra.mxu0 %v519
      %v776 = vpop.f32.mrf.mxu0
      %v777 = vadd.f32 0.0, %v776
      %v778 = vpop.f32.mrf.mxu0
      %v779 = vpop.f32.mrf.mxu0
      %v780 = vadd.f32 0.0, %v779
      %v781 = vpop.f32.mrf.mxu0
      %782 = vmatprep.mubr.bf16.mxu0 0
      %783 = vmatmul.mubr.bf16.gmra.mxu0 %v522
      %v784 = vpop.f32.mrf.mxu0
      %v785 = vadd.f32 0.0, %v784
      %v786 = vpop.f32.mrf.mxu0
      %v787 = vpop.f32.mrf.mxu0
      %v788 = vadd.f32 0.0, %v787
      %v789 = vpop.f32.mrf.mxu0
      %790 = vmatprep.mubr.bf16.mxu0 0
      %791 = vmatmul.mubr.bf16.gmra.mxu0 %v525
      %v792 = vpop.f32.mrf.mxu0
      %v793 = vadd.f32 0.0, %v792
      %v794 = vpop.f32.mrf.mxu0
      %v795 = vpop.f32.mrf.mxu0
      %v796 = vadd.f32 0.0, %v795
      %v797 = vpop.f32.mrf.mxu0
      %798 = vmatprep.mubr.bf16.mxu0 0
      %799 = vmatmul.mubr.bf16.gmra.mxu0 %v528
      %v800 = vpop.f32.mrf.mxu0
      %v801 = vadd.f32 0.0, %v800
      %v802 = vpop.f32.mrf.mxu0
      %v803 = vpop.f32.mrf.mxu0
      %v804 = vadd.f32 0.0, %v803
      %v805 = vpop.f32.mrf.mxu0
      %806 = vmatprep.mubr.bf16.mxu0 0
      %807 = vmatmul.mubr.bf16.gmra.mxu0 %v531
      %v808 = vpop.f32.mrf.mxu0
      %v809 = vadd.f32 0.0, %v808
      %v810 = vpop.f32.mrf.mxu0
      %v811 = vpop.f32.mrf.mxu0
      %v812 = vadd.f32 0.0, %v811
      %v813 = vpop.f32.mrf.mxu0
      %814 = vmatprep.mubr.bf16.mxu0 0
      %815 = vmatmul.mubr.bf16.gmra.mxu0 %v534
      %v816 = vpop.f32.mrf.mxu0
      %v817 = vadd.f32 0.0, %v816
      %v818 = vpop.f32.mrf.mxu0
      %v819 = vpop.f32.mrf.mxu0
      %v820 = vadd.f32 0.0, %v819
      %v821 = vpop.f32.mrf.mxu0
      %822 = vmatprep.mubr.bf16.mxu0 0
      %823 = vmatmul.mubr.bf16.gmra.mxu0 %v537
      %v824 = vpop.f32.mrf.mxu0
      %v825 = vadd.f32 0.0, %v824
      %v826 = vpop.f32.mrf.mxu0
      %v827 = vpop.f32.mrf.mxu0
      %v828 = vadd.f32 0.0, %v827
      %v829 = vpop.f32.mrf.mxu0
      %830 = vmatprep.mubr.bf16.mxu0 0
      %831 = vmatmul.mubr.bf16.gmra.mxu0 %v540
      %v832 = vpop.f32.mrf.mxu0
      %v833 = vadd.f32 0.0, %v832
      %v834 = vpop.f32.mrf.mxu0
      %v835 = vpop.f32.mrf.mxu0
      %v836 = vadd.f32 0.0, %v835
      %v837 = vpop.f32.mrf.mxu0
      %838 = vmatprep.mubr.bf16.mxu0 0
      %839 = vmatmul.mubr.bf16.gmra.mxu0 %v543
      %v840 = vpop.f32.mrf.mxu0
      %v841 = vadd.f32 0.0, %v840
      %v842 = vpop.f32.mrf.mxu0
      %v843 = vpop.f32.mrf.mxu0
      %v844 = vadd.f32 0.0, %v843
      %v845 = vpop.f32.mrf.mxu0
      %846 = vmatprep.mubr.bf16.mxu0 0
      %847 = vmatmul.mubr.bf16.gmra.mxu0 %v546
      %v848 = vpop.f32.mrf.mxu0
      %v849 = vadd.f32 0.0, %v848
      %v850 = vpop.f32.mrf.mxu0
      %v851 = vpop.f32.mrf.mxu0
      %v852 = vadd.f32 0.0, %v851
      %v853 = vpop.f32.mrf.mxu0
      %854 = vmatprep.mubr.bf16.mxu0 0
      %855 = vmatmul.mubr.bf16.gmra.mxu0 %v549
      %v856 = vpop.f32.mrf.mxu0
      %v857 = vadd.f32 0.0, %v856
      %v858 = vpop.f32.mrf.mxu0
      %v859 = vpop.f32.mrf.mxu0
      %v860 = vadd.f32 0.0, %v859
      %v861 = vpop.f32.mrf.mxu0
      %862 = vmatprep.mubr.bf16.mxu0 0
      %863 = vmatmul.mubr.bf16.gmra.mxu0 %v552
      %v864 = vpop.f32.mrf.mxu0
      %v865 = vadd.f32 0.0, %v864
      %v866 = vpop.f32.mrf.mxu0
      %v867 = vpop.f32.mrf.mxu0
      %v868 = vadd.f32 0.0, %v867
      %v869 = vpop.f32.mrf.mxu0
      %870 = vmatprep.mubr.bf16.mxu0 0
      %871 = vmatmul.mubr.bf16.gmra.mxu0 %v555
      %v872 = vpop.f32.mrf.mxu0
      %v873 = vadd.f32 0.0, %v872
      %v874 = vpop.f32.mrf.mxu0
      %v875 = vpop.f32.mrf.mxu0
      %v876 = vadd.f32 0.0, %v875
      %v877 = vpop.f32.mrf.mxu0
      %878 = vmatprep.mubr.bf16.mxu0 0
      %879 = vmatmul.mubr.bf16.gmra.mxu0 %v558
      %v880 = vpop.f32.mrf.mxu0
      %v881 = vadd.f32 0.0, %v880
      %v882 = vpop.f32.mrf.mxu0
      %v883 = vpop.f32.mrf.mxu0
      %v884 = vadd.f32 0.0, %v883
      %v885 = vpop.f32.mrf.mxu0
      %886 = vmatprep.mubr.bf16.mxu0 0
      %887 = vmatmul.mubr.bf16.gmra.mxu0 %v561
      %v888 = vpop.f32.mrf.mxu0
      %v889 = vadd.f32 0.0, %v888
      %v890 = vpop.f32.mrf.mxu0
      %v891 = vpop.f32.mrf.mxu0
      %v892 = vadd.f32 0.0, %v891
      %v893 = vpop.f32.mrf.mxu0
      %894 = vmatprep.mubr.bf16.mxu0 0
      %895 = vmatmul.mubr.bf16.gmra.mxu0 %v564
      %v896 = vpop.f32.mrf.mxu0
      %v897 = vadd.f32 0.0, %v896
      %v898 = vpop.f32.mrf.mxu0
      %v899 = vpop.f32.mrf.mxu0
      %v900 = vadd.f32 0.0, %v899
      %v901 = vpop.f32.mrf.mxu0
      %902 = vmatprep.mubr.bf16.mxu0 0
      %903 = vmatmul.mubr.bf16.gmra.mxu0 %v567
      %v904 = vpop.f32.mrf.mxu0
      %v905 = vadd.f32 0.0, %v904
      %v906 = vpop.f32.mrf.mxu0
      %v907 = vpop.f32.mrf.mxu0
      %v908 = vadd.f32 0.0, %v907
      %v909 = vpop.f32.mrf.mxu0
      %910 = vmatprep.mubr.bf16.mxu0 0
      %911 = vmatmul.mubr.bf16.gmra.mxu0 %v570
      %v912 = vpop.f32.mrf.mxu0
      %v913 = vadd.f32 0.0, %v912
      %v914 = vpop.f32.mrf.mxu0
      %v915 = vpop.f32.mrf.mxu0
      %v916 = vadd.f32 0.0, %v915
      %v917 = vpop.f32.mrf.mxu0
      %918 = vmatprep.mubr.bf16.mxu0 0
      %919 = vmatmul.mubr.bf16.gmra.mxu0 %v573
      %v920 = vpop.f32.mrf.mxu0
      %v921 = vadd.f32 0.0, %v920
      %v922 = vpop.f32.mrf.mxu0
      %v923 = vpop.f32.mrf.mxu0
      %v924 = vadd.f32 0.0, %v923
      %v925 = vpop.f32.mrf.mxu0
      %926 = vmatprep.mubr.bf16.mxu0 0
      %927 = vmatmul.mubr.bf16.gmra.mxu0 %v576
      %v928 = vpop.f32.mrf.mxu0
      %v929 = vadd.f32 0.0, %v928
      %v930 = vpop.f32.mrf.mxu0
      %v931 = vpop.f32.mrf.mxu0
      %v932 = vadd.f32 0.0, %v931
      %v933 = vpop.f32.mrf.mxu0
      %934 = vmatprep.mubr.bf16.mxu0 0
      %935 = vmatmul.mubr.bf16.gmra.mxu0 %v579
      %v936 = vpop.f32.mrf.mxu0
      %v937 = vadd.f32 0.0, %v936
      %v938 = vpop.f32.mrf.mxu0
      %v939 = vpop.f32.mrf.mxu0
      %v940 = vadd.f32 0.0, %v939
      %v941 = vpop.f32.mrf.mxu0
      %942 = vmatprep.mubr.bf16.mxu0 0
      %943 = vmatmul.mubr.bf16.gmra.mxu0 %v582
      %v944 = vpop.f32.mrf.mxu0
      %v945 = vadd.f32 0.0, %v944
      %v946 = vpop.f32.mrf.mxu0
      %v947 = vpop.f32.mrf.mxu0
      %v948 = vadd.f32 0.0, %v947
      %v949 = vpop.f32.mrf.mxu0
      %950 = vmatprep.mubr.bf16.mxu0 0
      %951 = vmatmul.mubr.bf16.gmra.mxu0 %v585
      %v952 = vpop.f32.mrf.mxu0
      %v953 = vadd.f32 0.0, %v952
      %v954 = vpop.f32.mrf.mxu0
      %v955 = vpop.f32.mrf.mxu0
      %v956 = vadd.f32 0.0, %v955
      %v957 = vpop.f32.mrf.mxu0
      %958 = vmatprep.mubr.bf16.mxu0 0
      %959 = vmatmul.mubr.bf16.gmra.mxu0 %v588
      %v960 = vpop.f32.mrf.mxu0
      %v961 = vadd.f32 0.0, %v960
      %v962 = vpop.f32.mrf.mxu0
      %v963 = vpop.f32.mrf.mxu0
      %v964 = vadd.f32 0.0, %v963
      %v965 = vpop.f32.mrf.mxu0
      %966 = vmatprep.mubr.bf16.mxu0 0
      %967 = vmatmul.mubr.bf16.gmra.mxu0 %v591
      %v968 = vpop.f32.mrf.mxu0
      %v969 = vadd.f32 0.0, %v968
      %v970 = vpop.f32.mrf.mxu0
      %v971 = vpop.f32.mrf.mxu0
      %v972 = vadd.f32 0.0, %v971
      %v973 = vpop.f32.mrf.mxu0
      %974 = vmatprep.mubr.bf16.mxu0 0
      %975 = vmatmul.mubr.bf16.gmra.mxu0 %v594
      %v976 = vpop.f32.mrf.mxu0
      %v977 = vadd.f32 0.0, %v976
      %v978 = vpop.f32.mrf.mxu0
      %v979 = vpop.f32.mrf.mxu0
      %v980 = vadd.f32 0.0, %v979
      %v981 = vpop.f32.mrf.mxu0
      %982 = vmatprep.mubr.bf16.mxu0 0
      %983 = vmatmul.mubr.bf16.gmra.mxu0 %v597
      %v984 = vpop.f32.mrf.mxu0
      %v985 = vadd.f32 0.0, %v984
      %v986 = vpop.f32.mrf.mxu0
      %v987 = vpop.f32.mrf.mxu0
      %v988 = vadd.f32 0.0, %v987
      %v989 = vpop.f32.mrf.mxu0
      %990 = vmatprep.mubr.bf16.mxu0 0
      %991 = vmatmul.mubr.bf16.gmra.mxu0 %v600
      %v992 = vpop.f32.mrf.mxu0
      %v993 = vadd.f32 0.0, %v992
      %v994 = vpop.f32.mrf.mxu0
      %v995 = vpop.f32.mrf.mxu0
      %v996 = vadd.f32 0.0, %v995
      %v997 = vpop.f32.mrf.mxu0
      %998 = vmatprep.mubr.bf16.mxu0 0
      %999 = vmatmul.mubr.bf16.gmra.mxu0 %v603
      %v1000 = vpop.f32.mrf.mxu0
      %v1001 = vadd.f32 0.0, %v1000
      %v1002 = vpop.f32.mrf.mxu0
      %v1003 = vpop.f32.mrf.mxu0
      %v1004 = vadd.f32 0.0, %v1003
      %v1005 = vpop.f32.mrf.mxu0
      %1006 = vmatprep.mubr.bf16.mxu0 0
      %1007 = vmatmul.mubr.bf16.gmra.mxu0 %v606
      %v1008 = vpop.f32.mrf.mxu0
      %v1009 = vadd.f32 0.0, %v1008
      %v1010 = vpop.f32.mrf.mxu0
      %v1011 = vpop.f32.mrf.mxu0
      %v1012 = vadd.f32 0.0, %v1011
      %v1013 = vpop.f32.mrf.mxu0
      %1014 = vmatprep.mubr.bf16.mxu0 0
      %1015 = vmatmul.mubr.bf16.gmra.mxu0 %v609
      %v1016 = vpop.f32.mrf.mxu0
      %v1017 = vadd.f32 0.0, %v1016
      %v1018 = vpop.f32.mrf.mxu0
      %v1019 = vpop.f32.mrf.mxu0
      %v1020 = vadd.f32 0.0, %v1019
      %v1021 = vpop.f32.mrf.mxu0
      %1022 = vmatprep.mubr.bf16.mxu0 0
      %1023 = vmatmul.mubr.bf16.gmra.mxu0 %v612
      %v1024 = vpop.f32.mrf.mxu0
      %v1025 = vadd.f32 0.0, %v1024
      %v1026 = vpop.f32.mrf.mxu0
      %v1027 = vpop.f32.mrf.mxu0
      %v1028 = vadd.f32 0.0, %v1027
      %v1029 = vpop.f32.mrf.mxu0
      %1030 = vmatprep.mubr.bf16.mxu0 0
      %1031 = vmatmul.mubr.bf16.gmra.mxu0 %v615
      %v1032 = vpop.f32.mrf.mxu0
      %v1033 = vadd.f32 0.0, %v1032
      %v1034 = vpop.f32.mrf.mxu0
      %v1035 = vpop.f32.mrf.mxu0
      %v1036 = vadd.f32 0.0, %v1035
      %v1037 = vpop.f32.mrf.mxu0
      %1038 = vmatprep.mubr.bf16.mxu0 0
      %1039 = vmatmul.mubr.bf16.gmra.mxu0 %v618
      %v1040 = vpop.f32.mrf.mxu0
      %v1041 = vadd.f32 0.0, %v1040
      %v1042 = vpop.f32.mrf.mxu0
      %v1043 = vpop.f32.mrf.mxu0
      %v1044 = vadd.f32 0.0, %v1043
      %v1045 = vpop.f32.mrf.mxu0
      %1046 = vmatprep.mubr.bf16.mxu0 0
      %1047 = vmatmul.mubr.bf16.gmra.mxu0 %v621
      %v1048 = vpop.f32.mrf.mxu0
      %v1049 = vadd.f32 0.0, %v1048
      %v1050 = vpop.f32.mrf.mxu0
      %v1051 = vpop.f32.mrf.mxu0
      %v1052 = vadd.f32 0.0, %v1051
      %v1053 = vpop.f32.mrf.mxu0
      %1054 = vmatprep.mubr.bf16.mxu0 0
      %1055 = vmatmul.mubr.bf16.gmra.mxu0 %v624
      %v1056 = vpop.f32.mrf.mxu0
      %v1057 = vadd.f32 0.0, %v1056
      %v1058 = vpop.f32.mrf.mxu0
      %v1059 = vpop.f32.mrf.mxu0
      %v1060 = vadd.f32 0.0, %v1059
      %v1061 = vpop.f32.mrf.mxu0
      %1062 = vmatprep.mubr.bf16.mxu0 0
      %1063 = vmatmul.mubr.bf16.gmra.mxu0 %v627
      %v1064 = vpop.f32.mrf.mxu0
      %v1065 = vadd.f32 0.0, %v1064
      %v1066 = vpop.f32.mrf.mxu0
      %v1067 = vpop.f32.mrf.mxu0
      %v1068 = vadd.f32 0.0, %v1067
      %v1069 = vpop.f32.mrf.mxu0
      %1070 = vmatprep.mubr.bf16.mxu0 0
      %1071 = vmatmul.mubr.bf16.gmra.mxu0 %v630
      %v1072 = vpop.f32.mrf.mxu0
      %v1073 = vadd.f32 0.0, %v1072
      %v1074 = vpop.f32.mrf.mxu0
      %v1075 = vpop.f32.mrf.mxu0
      %v1076 = vadd.f32 0.0, %v1075
      %v1077 = vpop.f32.mrf.mxu0
      %1078 = vmatprep.mubr.bf16.mxu0 0
      %1079 = vmatmul.mubr.bf16.gmra.mxu0 %v633
      %v1080 = vpop.f32.mrf.mxu0
      %v1081 = vadd.f32 0.0, %v1080
      %v1082 = vpop.f32.mrf.mxu0
      %v1083 = vpop.f32.mrf.mxu0
      %v1084 = vadd.f32 0.0, %v1083
      %v1085 = vpop.f32.mrf.mxu0
      %1086 = vmatprep.mubr.bf16.mxu0 0
      %1087 = vmatmul.mubr.bf16.gmra.mxu0 %v636
      %v1088 = vpop.f32.mrf.mxu0
      %v1089 = vadd.f32 0.0, %v1088
      %v1090 = vpop.f32.mrf.mxu0
      %v1091 = vpop.f32.mrf.mxu0
      %v1092 = vadd.f32 0.0, %v1091
      %v1093 = vpop.f32.mrf.mxu0
      %1094 = vmatprep.mubr.bf16.mxu0 0
      %1095 = vmatmul.mubr.bf16.gmra.mxu0 %v639
      %v1096 = vpop.f32.mrf.mxu0
      %v1097 = vadd.f32 0.0, %v1096
      %v1098 = vpop.f32.mrf.mxu0
      %v1099 = vpop.f32.mrf.mxu0
      %v1100 = vadd.f32 0.0, %v1099
      %v1101 = vpop.f32.mrf.mxu0
      %1102 = vmatprep.mubr.bf16.mxu0 0
      %1103 = vmatmul.mubr.bf16.gmra.mxu0 %v642
      %v1104 = vpop.f32.mrf.mxu0
      %v1105 = vadd.f32 0.0, %v1104
      %v1106 = vpop.f32.mrf.mxu0
      %v1107 = vpop.f32.mrf.mxu0
      %v1108 = vadd.f32 0.0, %v1107
      %v1109 = vpop.f32.mrf.mxu0
      %1110 = vmatprep.mubr.bf16.mxu0 0
      %1111 = vmatmul.mubr.bf16.gmra.mxu0 %v645
      %v1112 = vpop.f32.mrf.mxu0
      %v1113 = vadd.f32 0.0, %v1112
      %v1114 = vpop.f32.mrf.mxu0
      %v1115 = vpop.f32.mrf.mxu0
      %v1116 = vadd.f32 0.0, %v1115
      %v1117 = vpop.f32.mrf.mxu0
      %1118 = vmatprep.mubr.bf16.mxu0 0
      %1119 = vmatmul.mubr.bf16.gmra.mxu0 %v648
      %v1120 = vpop.f32.mrf.mxu0
      %v1121 = vadd.f32 0.0, %v1120
      %v1122 = vpop.f32.mrf.mxu0
      %v1123 = vpop.f32.mrf.mxu0
      %v1124 = vadd.f32 0.0, %v1123
      %v1125 = vpop.f32.mrf.mxu0
      %1126 = vmatprep.mubr.bf16.mxu0 0
      %1127 = vmatmul.mubr.bf16.gmra.mxu0 %v651
      %v1128 = vpop.f32.mrf.mxu0
      %v1129 = vadd.f32 0.0, %v1128
      %v1130 = vpop.f32.mrf.mxu0
      %v1131 = vpop.f32.mrf.mxu0
      %v1132 = vadd.f32 0.0, %v1131
      %v1133 = vpop.f32.mrf.mxu0
      %1134 = vmatprep.mubr.bf16.mxu0 0
      %1135 = vmatmul.mubr.bf16.gmra.mxu0 %v654
      %v1136 = vpop.f32.mrf.mxu0
      %v1137 = vadd.f32 0.0, %v1136
      %v1138 = vpop.f32.mrf.mxu0
      %v1139 = vpop.f32.mrf.mxu0
      %v1140 = vadd.f32 0.0, %v1139
      %v1141 = vpop.f32.mrf.mxu0
      %1142 = vmatprep.mubr.bf16.mxu0 0
      %1143 = vmatmul.mubr.bf16.gmra.mxu0 %v657
      %v1144 = vpop.f32.mrf.mxu0
      %v1145 = vadd.f32 0.0, %v1144
      %v1146 = vpop.f32.mrf.mxu0
      %v1147 = vpop.f32.mrf.mxu0
      %v1148 = vadd.f32 0.0, %v1147
      %v1149 = vpop.f32.mrf.mxu0
      %1150 = vmatprep.mubr.bf16.mxu0 0
      %1151 = vmatmul.mubr.bf16.gmra.mxu0 %v660
      %v1152 = vpop.f32.mrf.mxu0
      %v1153 = vadd.f32 0.0, %v1152
      %v1154 = vpop.f32.mrf.mxu0
      %v1155 = vpop.f32.mrf.mxu0
      %v1156 = vadd.f32 0.0, %v1155
      %v1157 = vpop.f32.mrf.mxu0
      %1158 = vmatprep.mubr.bf16.mxu0 0
      %1159 = vmatmul.mubr.bf16.gmra.mxu0 %v663
      %v1160 = vpop.f32.mrf.mxu0
      %v1161 = vadd.f32 0.0, %v1160
      %v1162 = vpop.f32.mrf.mxu0
      %v1163 = vpop.f32.mrf.mxu0
      %v1164 = vadd.f32 0.0, %v1163
      %v1165 = vpop.f32.mrf.mxu0
      %1166 = vmatprep.mubr.bf16.mxu0 0
      %1167 = vmatmul.mubr.bf16.gmra.mxu0 %v666
      %v1168 = vpop.f32.mrf.mxu0
      %v1169 = vadd.f32 0.0, %v1168
      %v1170 = vpop.f32.mrf.mxu0
      %v1171 = vpop.f32.mrf.mxu0
      %v1172 = vadd.f32 0.0, %v1171
      %v1173 = vpop.f32.mrf.mxu0
      %1174 = vmatprep.mubr.bf16.mxu0 0
      %1175 = vmatmul.mubr.bf16.gmra.mxu0 %v669
      %v1176 = vpop.f32.mrf.mxu0
      %v1177 = vadd.f32 0.0, %v1176
      %v1178 = vpop.f32.mrf.mxu0
      %v1179 = vpop.f32.mrf.mxu0
      %v1180 = vadd.f32 0.0, %v1179
      %v1181 = vpop.f32.mrf.mxu0
      %1182 = vmatprep.mubr.bf16.mxu0 0
      %1183 = vmatmul.mubr.bf16.gmra.mxu0 %v672
      %v1184 = vpop.f32.mrf.mxu0
      %v1185 = vadd.f32 0.0, %v1184
      %v1186 = vpop.f32.mrf.mxu0
      %v1187 = vpop.f32.mrf.mxu0
      %v1188 = vadd.f32 0.0, %v1187
      %v1189 = vpop.f32.mrf.mxu0
      %1190 = vmatprep.mubr.bf16.mxu0 0
      %1191 = vmatmul.mubr.bf16.gmra.mxu0 %v675
      %v1192 = vpop.f32.mrf.mxu0
      %v1193 = vadd.f32 0.0, %v1192
      %v1194 = vpop.f32.mrf.mxu0
      %v1195 = vpop.f32.mrf.mxu0
      %v1196 = vadd.f32 0.0, %v1195
      %v1197 = vpop.f32.mrf.mxu0
      %1198 = vmatprep.mubr.bf16.mxu0 0
      %1199 = vmatmul.mubr.bf16.gmra.mxu0 %v678
      %v1200 = vpop.f32.mrf.mxu0
      %v1201 = vadd.f32 0.0, %v1200
      %v1202 = vpop.f32.mrf.mxu0
      %v1203 = vpop.f32.mrf.mxu0
      %v1204 = vadd.f32 0.0, %v1203
      %v1205 = vpop.f32.mrf.mxu0
      %1206 = vmatprep.mubr.bf16.mxu0 0
      %1207 = vmatmul.mubr.bf16.gmra.mxu0 %v681
      %v1208 = vpop.f32.mrf.mxu0
      %v1209 = vadd.f32 0.0, %v1208
      %v1210 = vpop.f32.mrf.mxu0
      %v1211 = vpop.f32.mrf.mxu0
      %v1212 = vadd.f32 0.0, %v1211
      %v1213 = vpop.f32.mrf.mxu0
      %1214 = vmatprep.mubr.bf16.mxu0 0
      %1215 = vmatmul.mubr.bf16.gmra.mxu0 %v684
      %v1216 = vpop.f32.mrf.mxu0
      %v1217 = vadd.f32 0.0, %v1216
      %v1218 = vpop.f32.mrf.mxu0
      %v1219 = vpop.f32.mrf.mxu0
      %v1220 = vadd.f32 0.0, %v1219
      %v1221 = vpop.f32.mrf.mxu0
      %1222 = vmatprep.mubr.bf16.mxu0 0
      %1223 = vmatmul.mubr.bf16.gmra.mxu0 %v687
      %v1224 = vpop.f32.mrf.mxu0
      %v1225 = vadd.f32 0.0, %v1224
      %v1226 = vpop.f32.mrf.mxu0
      %v1227 = vpop.f32.mrf.mxu0
      %v1228 = vadd.f32 0.0, %v1227
      %v1229 = vpop.f32.mrf.mxu0
      %1230 = vmatprep.mubr.bf16.mxu0 0
      %1231 = vmatmul.mubr.bf16.gmra.mxu0 %v690
      %v1232 = vpop.f32.mrf.mxu0
      %v1233 = vadd.f32 0.0, %v1232
      %v1234 = vpop.f32.mrf.mxu0
      %v1235 = vpop.f32.mrf.mxu0
      %v1236 = vadd.f32 0.0, %v1235
      %v1237 = vpop.f32.mrf.mxu0
      %1238 = vmatprep.mubr.bf16.mxu0 0
      %1239 = vmatmul.mubr.bf16.gmra.mxu0 %v693
      %v1240 = vpop.f32.mrf.mxu0
      %v1241 = vadd.f32 0.0, %v1240
      %v1242 = vpop.f32.mrf.mxu0
      %v1243 = vpop.f32.mrf.mxu0
      %v1244 = vadd.f32 0.0, %v1243
      %v1245 = vpop.f32.mrf.mxu0
      %1246 = vdwg.mxu0
      %v1247 = vpack.c.bf16 %v388, %v387
      %v1248 = vpack.c.bf16 %v390, %v389
      %v1249 = vpack.c.bf16 %v392, %v391
      %v1250 = vpack.c.bf16 %v394, %v393
      %v1251 = vpack.c.bf16 %v396, %v395
      %v1252 = vpack.c.bf16 %v398, %v397
      %v1253 = vpack.c.bf16 %v400, %v399
      %v1254 = vpack.c.bf16 %v402, %v401
      %v1255 = vpack.c.bf16 %v404, %v403
      %v1256 = vpack.c.bf16 %v406, %v405
      %v1257 = vpack.c.bf16 %v408, %v407
      %v1258 = vpack.c.bf16 %v410, %v409
      %v1259 = vpack.c.bf16 %v412, %v411
      %v1260 = vpack.c.bf16 %v414, %v413
      %v1261 = vpack.c.bf16 %v416, %v415
      %v1262 = vpack.c.bf16 %v418, %v417
      %v1263 = vpack.c.bf16 %v420, %v419
      %v1264 = vpack.c.bf16 %v422, %v421
      %v1265 = vpack.c.bf16 %v424, %v423
      %v1266 = vpack.c.bf16 %v426, %v425
      %v1267 = vpack.c.bf16 %v428, %v427
      %v1268 = vpack.c.bf16 %v430, %v429
      %v1269 = vpack.c.bf16 %v432, %v431
      %v1270 = vpack.c.bf16 %v434, %v433
      %v1271 = vld [vmem:[%s3] sm:$0xff]
      %v1272 = vld [vmem:[%s3 + $0x8] sm:$0x3f]
      %v1273 = vpack.c.bf16 %v1272, %v1271
      %vm1274 = vcmask 113664
      %v1276 = vsel %vm1274, %v1247, 0
      %v1279 = vsel %vm1274, %v1248, 0
      %v1282 = vsel %vm1274, %v1249, 0
      %v1285 = vsel %vm1274, %v1250, 0
      %v1288 = vsel %vm1274, %v1251, 0
      %v1291 = vsel %vm1274, %v1252, 0
      %v1294 = vsel %vm1274, %v1253, 0
      %v1297 = vsel %vm1274, %v1254, 0
      %v1300 = vsel %vm1274, %v1255, 0
      %v1303 = vsel %vm1274, %v1256, 0
      %v1306 = vsel %vm1274, %v1257, 0
      %v1309 = vsel %vm1274, %v1258, 0
      %v1312 = vsel %vm1274, %v1259, 0
      %v1315 = vsel %vm1274, %v1260, 0
      %v1318 = vsel %vm1274, %v1261, 0
      %v1321 = vsel %vm1274, %v1262, 0
      %v1324 = vsel %vm1274, %v1263, 0
      %v1327 = vsel %vm1274, %v1264, 0
      %v1330 = vsel %vm1274, %v1265, 0
      %v1333 = vsel %vm1274, %v1266, 0
      %v1336 = vsel %vm1274, %v1267, 0
      %v1339 = vsel %vm1274, %v1268, 0
      %v1342 = vsel %vm1274, %v1269, 0
      %v1345 = vsel %vm1274, %v1270, 0
      %v1348 = vsel %vm695, %v1273, 0
      %1350 = vmatprep.subr.bf16.mxu0 0
      %1351 = vmatpush1.bf16.msra.mxu0 0
      %1352 = vmatprep.subr.bf16.mxu0 0
      %1353 = vmatpush1.bf16.msra.mxu0 0
      %1354 = vmatprep.subr.bf16.mxu0 0
      %1355 = vmatpush1.bf16.msra.mxu0 0
      %1356 = vmatprep.subr.bf16.mxu0 0
      %1357 = vmatpush1.bf16.msra.mxu0 0
      %1358 = vmatprep.subr.bf16.mxu0 0
      %1359 = vmatpush1.bf16.msra.mxu0 0
      %1360 = vmatprep.subr.bf16.mxu0 0
      %1361 = vmatpush1.bf16.msra.mxu0 0
      %1362 = vmatprep.subr.bf16.mxu0 0
      %1363 = vmatpush1.bf16.msra.mxu0 0
      %1364 = vmatprep.subr.bf16.mxu0 0
      %1365 = vmatpush1.bf16.msra.mxu0 %v1348
      %1366 = vmatprep.subr.bf16.mxu0 0
      %1367 = vmatpush2.bf16.msra.mxu0 0
      %1368 = vmatprep.subr.bf16.mxu0 0
      %1369 = vmatpush2.bf16.msra.mxu0 0
      %1370 = vmatprep.subr.bf16.mxu0 0
      %1371 = vmatpush2.bf16.msra.mxu0 0
      %1372 = vmatprep.subr.bf16.mxu0 0
      %1373 = vmatpush2.bf16.msra.mxu0 0
      %1374 = vmatprep.subr.bf16.mxu0 0
      %1375 = vmatpush2.bf16.msra.mxu0 0
      %1376 = vmatprep.subr.bf16.mxu0 0
      %1377 = vmatpush2.bf16.msra.mxu0 0
      %1378 = vmatprep.subr.bf16.mxu0 0
      %1379 = vmatpush2.bf16.msra.mxu0 0
      %1380 = vmatprep.subr.bf16.mxu0 0
      %1381 = vmatpush2.bf16.msra.mxu0 0
      %1382 = vmatprep.mubr.bf16.mxu0 0
      %1383 = vmatmul.mubr.bf16.gmra.mxu0 %v1276
      %v1384 = vpop.f32.mrf.mxu0
      %v1385 = vadd.f32 0.0, %v1384
      %v1386 = vpop.f32.mrf.mxu0
      %v1387 = vpop.f32.mrf.mxu0
      %v1388 = vadd.f32 0.0, %v1387
      %v1389 = vpop.f32.mrf.mxu0
      %1390 = vmatprep.mubr.bf16.mxu0 0
      %1391 = vmatmul.mubr.bf16.gmra.mxu0 %v1279
      %v1392 = vpop.f32.mrf.mxu0
      %v1393 = vadd.f32 0.0, %v1392
      %v1394 = vpop.f32.mrf.mxu0
      %v1395 = vpop.f32.mrf.mxu0
      %v1396 = vadd.f32 0.0, %v1395
      %v1397 = vpop.f32.mrf.mxu0
      %1398 = vmatprep.mubr.bf16.mxu0 0
      %1399 = vmatmul.mubr.bf16.gmra.mxu0 %v1282
      %v1400 = vpop.f32.mrf.mxu0
      %v1401 = vadd.f32 0.0, %v1400
      %v1402 = vpop.f32.mrf.mxu0
      %v1403 = vpop.f32.mrf.mxu0
      %v1404 = vadd.f32 0.0, %v1403
      %v1405 = vpop.f32.mrf.mxu0
      %1406 = vmatprep.mubr.bf16.mxu0 0
      %1407 = vmatmul.mubr.bf16.gmra.mxu0 %v1285
      %v1408 = vpop.f32.mrf.mxu0
      %v1409 = vadd.f32 0.0, %v1408
      %v1410 = vpop.f32.mrf.mxu0
      %v1411 = vpop.f32.mrf.mxu0
      %v1412 = vadd.f32 0.0, %v1411
      %v1413 = vpop.f32.mrf.mxu0
      %1414 = vmatprep.mubr.bf16.mxu0 0
      %1415 = vmatmul.mubr.bf16.gmra.mxu0 %v1288
      %v1416 = vpop.f32.mrf.mxu0
      %v1417 = vadd.f32 0.0, %v1416
      %v1418 = vpop.f32.mrf.mxu0
      %v1419 = vpop.f32.mrf.mxu0
      %v1420 = vadd.f32 0.0, %v1419
      %v1421 = vpop.f32.mrf.mxu0
      %1422 = vmatprep.mubr.bf16.mxu0 0
      %1423 = vmatmul.mubr.bf16.gmra.mxu0 %v1291
      %v1424 = vpop.f32.mrf.mxu0
      %v1425 = vadd.f32 0.0, %v1424
      %v1426 = vpop.f32.mrf.mxu0
      %v1427 = vpop.f32.mrf.mxu0
      %v1428 = vadd.f32 0.0, %v1427
      %v1429 = vpop.f32.mrf.mxu0
      %1430 = vmatprep.mubr.bf16.mxu0 0
      %1431 = vmatmul.mubr.bf16.gmra.mxu0 %v1294
      %v1432 = vpop.f32.mrf.mxu0
      %v1433 = vadd.f32 0.0, %v1432
      %v1434 = vpop.f32.mrf.mxu0
      %v1435 = vpop.f32.mrf.mxu0
      %v1436 = vadd.f32 0.0, %v1435
      %v1437 = vpop.f32.mrf.mxu0
      %1438 = vmatprep.mubr.bf16.mxu0 0
      %1439 = vmatmul.mubr.bf16.gmra.mxu0 %v1297
      %v1440 = vpop.f32.mrf.mxu0
      %v1441 = vadd.f32 0.0, %v1440
      %v1442 = vpop.f32.mrf.mxu0
      %v1443 = vpop.f32.mrf.mxu0
      %v1444 = vadd.f32 0.0, %v1443
      %v1445 = vpop.f32.mrf.mxu0
      %1446 = vmatprep.mubr.bf16.mxu0 0
      %1447 = vmatmul.mubr.bf16.gmra.mxu0 %v1300
      %v1448 = vpop.f32.mrf.mxu0
      %v1449 = vadd.f32 0.0, %v1448
      %v1450 = vpop.f32.mrf.mxu0
      %v1451 = vpop.f32.mrf.mxu0
      %v1452 = vadd.f32 0.0, %v1451
      %v1453 = vpop.f32.mrf.mxu0
      %1454 = vmatprep.mubr.bf16.mxu0 0
      %1455 = vmatmul.mubr.bf16.gmra.mxu0 %v1303
      %v1456 = vpop.f32.mrf.mxu0
      %v1457 = vadd.f32 0.0, %v1456
      %v1458 = vpop.f32.mrf.mxu0
      %v1459 = vpop.f32.mrf.mxu0
      %v1460 = vadd.f32 0.0, %v1459
      %v1461 = vpop.f32.mrf.mxu0
      %1462 = vmatprep.mubr.bf16.mxu0 0
      %1463 = vmatmul.mubr.bf16.gmra.mxu0 %v1306
      %v1464 = vpop.f32.mrf.mxu0
      %v1465 = vadd.f32 0.0, %v1464
      %v1466 = vpop.f32.mrf.mxu0
      %v1467 = vpop.f32.mrf.mxu0
      %v1468 = vadd.f32 0.0, %v1467
      %v1469 = vpop.f32.mrf.mxu0
      %1470 = vmatprep.mubr.bf16.mxu0 0
      %1471 = vmatmul.mubr.bf16.gmra.mxu0 %v1309
      %v1472 = vpop.f32.mrf.mxu0
      %v1473 = vadd.f32 0.0, %v1472
      %v1474 = vpop.f32.mrf.mxu0
      %v1475 = vpop.f32.mrf.mxu0
      %v1476 = vadd.f32 0.0, %v1475
      %v1477 = vpop.f32.mrf.mxu0
      %1478 = vmatprep.mubr.bf16.mxu0 0
      %1479 = vmatmul.mubr.bf16.gmra.mxu0 %v1312
      %v1480 = vpop.f32.mrf.mxu0
      %v1481 = vadd.f32 0.0, %v1480
      %v1482 = vpop.f32.mrf.mxu0
      %v1483 = vpop.f32.mrf.mxu0
      %v1484 = vadd.f32 0.0, %v1483
      %v1485 = vpop.f32.mrf.mxu0
      %1486 = vmatprep.mubr.bf16.mxu0 0
      %1487 = vmatmul.mubr.bf16.gmra.mxu0 %v1315
      %v1488 = vpop.f32.mrf.mxu0
      %v1489 = vadd.f32 0.0, %v1488
      %v1490 = vpop.f32.mrf.mxu0
      %v1491 = vpop.f32.mrf.mxu0
      %v1492 = vadd.f32 0.0, %v1491
      %v1493 = vpop.f32.mrf.mxu0
      %1494 = vmatprep.mubr.bf16.mxu0 0
      %1495 = vmatmul.mubr.bf16.gmra.mxu0 %v1318
      %v1496 = vpop.f32.mrf.mxu0
      %v1497 = vadd.f32 0.0, %v1496
      %v1498 = vpop.f32.mrf.mxu0
      %v1499 = vpop.f32.mrf.mxu0
      %v1500 = vadd.f32 0.0, %v1499
      %v1501 = vpop.f32.mrf.mxu0
      %1502 = vmatprep.mubr.bf16.mxu0 0
      %1503 = vmatmul.mubr.bf16.gmra.mxu0 %v1321
      %v1504 = vpop.f32.mrf.mxu0
      %v1505 = vadd.f32 0.0, %v1504
      %v1506 = vpop.f32.mrf.mxu0
      %v1507 = vpop.f32.mrf.mxu0
      %v1508 = vadd.f32 0.0, %v1507
      %v1509 = vpop.f32.mrf.mxu0
      %1510 = vmatprep.mubr.bf16.mxu0 0
      %1511 = vmatmul.mubr.bf16.gmra.mxu0 %v1324
      %v1512 = vpop.f32.mrf.mxu0
      %v1513 = vadd.f32 0.0, %v1512
      %v1514 = vpop.f32.mrf.mxu0
      %v1515 = vpop.f32.mrf.mxu0
      %v1516 = vadd.f32 0.0, %v1515
      %v1517 = vpop.f32.mrf.mxu0
      %1518 = vmatprep.mubr.bf16.mxu0 0
      %1519 = vmatmul.mubr.bf16.gmra.mxu0 %v1327
      %v1520 = vpop.f32.mrf.mxu0
      %v1521 = vadd.f32 0.0, %v1520
      %v1522 = vpop.f32.mrf.mxu0
      %v1523 = vpop.f32.mrf.mxu0
      %v1524 = vadd.f32 0.0, %v1523
      %v1525 = vpop.f32.mrf.mxu0
      %1526 = vmatprep.mubr.bf16.mxu0 0
      %1527 = vmatmul.mubr.bf16.gmra.mxu0 %v1330
      %v1528 = vpop.f32.mrf.mxu0
      %v1529 = vadd.f32 0.0, %v1528
      %v1530 = vpop.f32.mrf.mxu0
      %v1531 = vpop.f32.mrf.mxu0
      %v1532 = vadd.f32 0.0, %v1531
      %v1533 = vpop.f32.mrf.mxu0
      %1534 = vmatprep.mubr.bf16.mxu0 0
      %1535 = vmatmul.mubr.bf16.gmra.mxu0 %v1333
      %v1536 = vpop.f32.mrf.mxu0
      %v1537 = vadd.f32 0.0, %v1536
      %v1538 = vpop.f32.mrf.mxu0
      %v1539 = vpop.f32.mrf.mxu0
      %v1540 = vadd.f32 0.0, %v1539
      %v1541 = vpop.f32.mrf.mxu0
      %1542 = vmatprep.mubr.bf16.mxu0 0
      %1543 = vmatmul.mubr.bf16.gmra.mxu0 %v1336
      %v1544 = vpop.f32.mrf.mxu0
      %v1545 = vadd.f32 0.0, %v1544
      %v1546 = vpop.f32.mrf.mxu0
      %v1547 = vpop.f32.mrf.mxu0
      %v1548 = vadd.f32 0.0, %v1547
      %v1549 = vpop.f32.mrf.mxu0
      %1550 = vmatprep.mubr.bf16.mxu0 0
      %1551 = vmatmul.mubr.bf16.gmra.mxu0 %v1339
      %v1552 = vpop.f32.mrf.mxu0
      %v1553 = vadd.f32 0.0, %v1552
      %v1554 = vpop.f32.mrf.mxu0
      %v1555 = vpop.f32.mrf.mxu0
      %v1556 = vadd.f32 0.0, %v1555
      %v1557 = vpop.f32.mrf.mxu0
      %1558 = vmatprep.mubr.bf16.mxu0 0
      %1559 = vmatmul.mubr.bf16.gmra.mxu0 %v1342
      %v1560 = vpop.f32.mrf.mxu0
      %v1561 = vadd.f32 0.0, %v1560
      %v1562 = vpop.f32.mrf.mxu0
      %v1563 = vpop.f32.mrf.mxu0
      %v1564 = vadd.f32 0.0, %v1563
      %v1565 = vpop.f32.mrf.mxu0
      %1566 = vmatprep.mubr.bf16.mxu0 0
      %1567 = vmatmul.mubr.bf16.gmra.mxu0 %v1345
      %v1568 = vpop.f32.mrf.mxu0
      %v1569 = vadd.f32 0.0, %v1568
      %v1570 = vpop.f32.mrf.mxu0
      %v1571 = vpop.f32.mrf.mxu0
      %v1572 = vadd.f32 0.0, %v1571
      %v1573 = vpop.f32.mrf.mxu0
      %1574 = vdwg.mxu0
      %v1575 = vpack.c.bf16 %v740, %v737
      %v1576 = vpack.c.bf16 %v748, %v745
      %v1577 = vpack.c.bf16 %v756, %v753
      %v1578 = vpack.c.bf16 %v764, %v761
      %v1579 = vpack.c.bf16 %v772, %v769
      %v1580 = vpack.c.bf16 %v780, %v777
      %v1581 = vpack.c.bf16 %v788, %v785
      %v1582 = vpack.c.bf16 %v796, %v793
      %v1583 = vpack.c.bf16 %v804, %v801
      %v1584 = vpack.c.bf16 %v812, %v809
      %v1585 = vpack.c.bf16 %v820, %v817
      %v1586 = vpack.c.bf16 %v828, %v825
      %v1587 = vpack.c.bf16 %v836, %v833
      %v1588 = vpack.c.bf16 %v844, %v841
      %v1589 = vpack.c.bf16 %v852, %v849
      %v1590 = vpack.c.bf16 %v860, %v857
      %v1591 = vpack.c.bf16 %v868, %v865
      %v1592 = vpack.c.bf16 %v876, %v873
      %v1593 = vpack.c.bf16 %v884, %v881
      %v1594 = vpack.c.bf16 %v892, %v889
      %v1595 = vpack.c.bf16 %v900, %v897
      %v1596 = vpack.c.bf16 %v908, %v905
      %v1597 = vpack.c.bf16 %v916, %v913
      %v1598 = vpack.c.bf16 %v924, %v921
      %v1599 = vpack.c.bf16 %v932, %v929
      %v1600 = vpack.c.bf16 %v940, %v937
      %v1601 = vpack.c.bf16 %v948, %v945
      %v1602 = vpack.c.bf16 %v956, %v953
      %v1603 = vpack.c.bf16 %v964, %v961
      %v1604 = vpack.c.bf16 %v972, %v969
      %v1605 = vpack.c.bf16 %v980, %v977
      %v1606 = vpack.c.bf16 %v988, %v985
      %v1607 = vpack.c.bf16 %v996, %v993
      %v1608 = vpack.c.bf16 %v1004, %v1001
      %v1609 = vpack.c.bf16 %v1012, %v1009
      %v1610 = vpack.c.bf16 %v1020, %v1017
      %v1611 = vpack.c.bf16 %v1028, %v1025
      %v1612 = vpack.c.bf16 %v1036, %v1033
      %v1613 = vpack.c.bf16 %v1044, %v1041
      %v1614 = vpack.c.bf16 %v1052, %v1049
      %v1615 = vpack.c.bf16 %v1060, %v1057
      %v1616 = vpack.c.bf16 %v1068, %v1065
      %v1617 = vpack.c.bf16 %v1076, %v1073
      %v1618 = vpack.c.bf16 %v1084, %v1081
      %v1619 = vpack.c.bf16 %v1092, %v1089
      %v1620 = vpack.c.bf16 %v1100, %v1097
      %v1621 = vpack.c.bf16 %v1108, %v1105
      %v1622 = vpack.c.bf16 %v1116, %v1113
      %v1623 = vpack.c.bf16 %v1124, %v1121
      %v1624 = vpack.c.bf16 %v1132, %v1129
      %v1625 = vpack.c.bf16 %v1140, %v1137
      %v1626 = vpack.c.bf16 %v1148, %v1145
      %v1627 = vpack.c.bf16 %v1156, %v1153
      %v1628 = vpack.c.bf16 %v1164, %v1161
      %v1629 = vpack.c.bf16 %v1172, %v1169
      %v1630 = vpack.c.bf16 %v1180, %v1177
      %v1631 = vpack.c.bf16 %v1188, %v1185
      %v1632 = vpack.c.bf16 %v1196, %v1193
      %v1633 = vpack.c.bf16 %v1204, %v1201
      %v1634 = vpack.c.bf16 %v1212, %v1209
      %v1635 = vpack.c.bf16 %v1220, %v1217
      %v1636 = vpack.c.bf16 %v1228, %v1225
      %v1637 = vpack.c.bf16 %v1236, %v1233
      %v1638 = vpack.c.bf16 %v1244, %v1241
      %v1639 = vpack.c.bf16 %v1388, %v1385
      %v1640 = vpack.c.bf16 %v1396, %v1393
      %v1641 = vpack.c.bf16 %v1404, %v1401
      %v1642 = vpack.c.bf16 %v1412, %v1409
      %v1643 = vpack.c.bf16 %v1420, %v1417
      %v1644 = vpack.c.bf16 %v1428, %v1425
      %v1645 = vpack.c.bf16 %v1436, %v1433
      %v1646 = vpack.c.bf16 %v1444, %v1441
      %v1647 = vpack.c.bf16 %v1452, %v1449
      %v1648 = vpack.c.bf16 %v1460, %v1457
      %v1649 = vpack.c.bf16 %v1468, %v1465
      %v1650 = vpack.c.bf16 %v1476, %v1473
      %v1651 = vpack.c.bf16 %v1484, %v1481
      %v1652 = vpack.c.bf16 %v1492, %v1489
      %v1653 = vpack.c.bf16 %v1500, %v1497
      %v1654 = vpack.c.bf16 %v1508, %v1505
      %v1655 = vpack.c.bf16 %v1516, %v1513
      %v1656 = vpack.c.bf16 %v1524, %v1521
      %v1657 = vpack.c.bf16 %v1532, %v1529
      %v1658 = vpack.c.bf16 %v1540, %v1537
      %v1659 = vpack.c.bf16 %v1548, %v1545
      %v1660 = vpack.c.bf16 %v1556, %v1553
      %v1661 = vpack.c.bf16 %v1564, %v1561
      %v1662 = vpack.c.bf16 %v1572, %v1569
      %vm1663 = vcmask 31744
      %v1665 = vsel %vm1663, %v1575, 0
      %v1668 = vsel %vm1663, %v1576, 0
      %v1671 = vsel %vm1663, %v1577, 0
      %v1674 = vsel %vm1663, %v1578, 0
      %v1677 = vsel %vm1663, %v1579, 0
      %v1680 = vsel %vm1663, %v1580, 0
      %v1683 = vsel %vm1663, %v1581, 0
      %v1686 = vsel %vm1663, %v1582, 0
      %v1689 = vsel %vm1663, %v1639, 0
      %v1692 = vsel %vm1663, %v1640, 0
      %v1695 = vsel %vm1663, %v1641, 0
      %1697 = vmatprep.subr.bf16.mxu0 0
      %1698 = vmatpush1.bf16.xpose.msra.mxu0 0
      %1699 = vmatprep.subr.bf16.mxu0 0
      %1700 = vmatpush1.bf16.xpose.msra.mxu0 0
      %1701 = vmatprep.subr.bf16.mxu0 0
      %1702 = vmatpush1.bf16.xpose.msra.mxu0 0
      %1703 = vmatprep.subr.bf16.mxu0 0
      %1704 = vmatpush1.bf16.xpose.msra.mxu0 0
      %1705 = vmatprep.subr.bf16.mxu0 0
      %1706 = vmatpush1.bf16.xpose.msra.mxu0 0
      %1707 = vmatprep.subr.bf16.mxu0 0
      %1708 = vmatpush1.bf16.xpose.msra.mxu0 %v1695
      %1709 = vmatprep.subr.bf16.mxu0 0
      %1710 = vmatpush1.bf16.xpose.msra.mxu0 %v1692
      %1711 = vmatprep.subr.bf16.mxu0 0
      %1712 = vmatpush1.bf16.xpose.msra.mxu0 %v1689
      %1713 = vmatprep.subr.bf16.mxu0 0
      %1714 = vmatpush2.bf16.xpose.msra.mxu0 0
      %1715 = vmatprep.subr.bf16.mxu0 0
      %1716 = vmatpush2.bf16.xpose.msra.mxu0 0
      %1717 = vmatprep.subr.bf16.mxu0 0
      %1718 = vmatpush2.bf16.xpose.msra.mxu0 0
      %1719 = vmatprep.subr.bf16.mxu0 0
      %1720 = vmatpush2.bf16.xpose.msra.mxu0 0
      %1721 = vmatprep.subr.bf16.mxu0 0
      %1722 = vmatpush2.bf16.xpose.msra.mxu0 0
      %1723 = vmatprep.subr.bf16.mxu0 0
      %1724 = vmatpush2.bf16.xpose.msra.mxu0 0
      %1725 = vmatprep.subr.bf16.mxu0 0
      %1726 = vmatpush2.bf16.xpose.msra.mxu0 0
      %1727 = vmatprep.subr.bf16.mxu0 0
      %1728 = vmatpush2.bf16.xpose.msra.mxu0 0
      %1729 = vmatprep.mubr.bf16.mxu0 0
      %1730 = vmatmul.mubr.bf16.gmra.mxu0 %v1665
      %v1731 = vpop.f32.mrf.mxu0
      %v1732 = vadd.f32 0.0, %v1731
      %v1733 = vpop.f32.mrf.mxu0
      %v1734 = vpop.f32.mrf.mxu0
      %v1735 = vadd.f32 0.0, %v1734
      %v1736 = vpop.f32.mrf.mxu0
      %1737 = vmatprep.mubr.bf16.mxu0 0
      %1738 = vmatmul.mubr.bf16.gmra.mxu0 %v1668
      %v1739 = vpop.f32.mrf.mxu0
      %v1740 = vadd.f32 0.0, %v1739
      %v1741 = vpop.f32.mrf.mxu0
      %v1742 = vpop.f32.mrf.mxu0
      %v1743 = vadd.f32 0.0, %v1742
      %v1744 = vpop.f32.mrf.mxu0
      %1745 = vmatprep.mubr.bf16.mxu0 0
      %1746 = vmatmul.mubr.bf16.gmra.mxu0 %v1671
      %v1747 = vpop.f32.mrf.mxu0
      %v1748 = vadd.f32 0.0, %v1747
      %v1749 = vpop.f32.mrf.mxu0
      %v1750 = vpop.f32.mrf.mxu0
      %v1751 = vadd.f32 0.0, %v1750
      %v1752 = vpop.f32.mrf.mxu0
      %1753 = vmatprep.mubr.bf16.mxu0 0
      %1754 = vmatmul.mubr.bf16.gmra.mxu0 %v1674
      %v1755 = vpop.f32.mrf.mxu0
      %v1756 = vadd.f32 0.0, %v1755
      %v1757 = vpop.f32.mrf.mxu0
      %v1758 = vpop.f32.mrf.mxu0
      %v1759 = vadd.f32 0.0, %v1758
      %v1760 = vpop.f32.mrf.mxu0
      %1761 = vmatprep.mubr.bf16.mxu0 0
      %1762 = vmatmul.mubr.bf16.gmra.mxu0 %v1677
      %v1763 = vpop.f32.mrf.mxu0
      %v1764 = vadd.f32 0.0, %v1763
      %v1765 = vpop.f32.mrf.mxu0
      %v1766 = vpop.f32.mrf.mxu0
      %v1767 = vadd.f32 0.0, %v1766
      %v1768 = vpop.f32.mrf.mxu0
      %1769 = vmatprep.mubr.bf16.mxu0 0
      %1770 = vmatmul.mubr.bf16.gmra.mxu0 %v1680
      %v1771 = vpop.f32.mrf.mxu0
      %v1772 = vadd.f32 0.0, %v1771
      %v1773 = vpop.f32.mrf.mxu0
      %v1774 = vpop.f32.mrf.mxu0
      %v1775 = vadd.f32 0.0, %v1774
      %v1776 = vpop.f32.mrf.mxu0
      %1777 = vmatprep.mubr.bf16.mxu0 0
      %1778 = vmatmul.mubr.bf16.gmra.mxu0 %v1683
      %v1779 = vpop.f32.mrf.mxu0
      %v1780 = vadd.f32 0.0, %v1779
      %v1781 = vpop.f32.mrf.mxu0
      %v1782 = vpop.f32.mrf.mxu0
      %v1783 = vadd.f32 0.0, %v1782
      %v1784 = vpop.f32.mrf.mxu0
      %1785 = vmatprep.mubr.bf16.mxu0 0
      %1786 = vmatmul.mubr.bf16.gmra.mxu0 %v1686
      %v1787 = vpop.f32.mrf.mxu0
      %v1788 = vadd.f32 0.0, %v1787
      %v1789 = vpop.f32.mrf.mxu0
      %v1790 = vpop.f32.mrf.mxu0
      %v1791 = vadd.f32 0.0, %v1790
      %v1792 = vpop.f32.mrf.mxu0
      %1793 = vdwg.mxu0
      %v1795 = vsel %vm1663, %v1583, 0
      %v1798 = vsel %vm1663, %v1584, 0
      %v1801 = vsel %vm1663, %v1585, 0
      %v1804 = vsel %vm1663, %v1586, 0
      %v1807 = vsel %vm1663, %v1587, 0
      %v1810 = vsel %vm1663, %v1588, 0
      %v1813 = vsel %vm1663, %v1589, 0
      %v1816 = vsel %vm1663, %v1590, 0
      %v1819 = vsel %vm1663, %v1642, 0
      %v1822 = vsel %vm1663, %v1643, 0
      %v1825 = vsel %vm1663, %v1644, 0
      %1827 = vmatprep.subr.bf16.mxu0 0
      %1828 = vmatpush1.bf16.xpose.msra.mxu0 0
      %1829 = vmatprep.subr.bf16.mxu0 0
      %1830 = vmatpush1.bf16.xpose.msra.mxu0 0
      %1831 = vmatprep.subr.bf16.mxu0 0
      %1832 = vmatpush1.bf16.xpose.msra.mxu0 0
      %1833 = vmatprep.subr.bf16.mxu0 0
      %1834 = vmatpush1.bf16.xpose.msra.mxu0 0
      %1835 = vmatprep.subr.bf16.mxu0 0
      %1836 = vmatpush1.bf16.xpose.msra.mxu0 0
      %1837 = vmatprep.subr.bf16.mxu0 0
      %1838 = vmatpush1.bf16.xpose.msra.mxu0 %v1825
      %1839 = vmatprep.subr.bf16.mxu0 0
      %1840 = vmatpush1.bf16.xpose.msra.mxu0 %v1822
      %1841 = vmatprep.subr.bf16.mxu0 0
      %1842 = vmatpush1.bf16.xpose.msra.mxu0 %v1819
      %1843 = vmatprep.subr.bf16.mxu0 0
      %1844 = vmatpush2.bf16.xpose.msra.mxu0 0
      %1845 = vmatprep.subr.bf16.mxu0 0
      %1846 = vmatpush2.bf16.xpose.msra.mxu0 0
      %1847 = vmatprep.subr.bf16.mxu0 0
      %1848 = vmatpush2.bf16.xpose.msra.mxu0 0
      %1849 = vmatprep.subr.bf16.mxu0 0
      %1850 = vmatpush2.bf16.xpose.msra.mxu0 0
      %1851 = vmatprep.subr.bf16.mxu0 0
      %1852 = vmatpush2.bf16.xpose.msra.mxu0 0
      %1853 = vmatprep.subr.bf16.mxu0 0
      %1854 = vmatpush2.bf16.xpose.msra.mxu0 0
      %1855 = vmatprep.subr.bf16.mxu0 0
      %1856 = vmatpush2.bf16.xpose.msra.mxu0 0
      %1857 = vmatprep.subr.bf16.mxu0 0
      %1858 = vmatpush2.bf16.xpose.msra.mxu0 0
      %1859 = vmatprep.mubr.bf16.mxu0 0
      %1860 = vmatmul.mubr.bf16.gmra.mxu0 %v1795
      %v1861 = vpop.f32.mrf.mxu0
      %v1862 = vadd.f32 0.0, %v1861
      %v1863 = vpop.f32.mrf.mxu0
      %v1864 = vpop.f32.mrf.mxu0
      %v1865 = vadd.f32 0.0, %v1864
      %v1866 = vpop.f32.mrf.mxu0
      %1867 = vmatprep.mubr.bf16.mxu0 0
      %1868 = vmatmul.mubr.bf16.gmra.mxu0 %v1798
      %v1869 = vpop.f32.mrf.mxu0
      %v1870 = vadd.f32 0.0, %v1869
      %v1871 = vpop.f32.mrf.mxu0
      %v1872 = vpop.f32.mrf.mxu0
      %v1873 = vadd.f32 0.0, %v1872
      %v1874 = vpop.f32.mrf.mxu0
      %1875 = vmatprep.mubr.bf16.mxu0 0
      %1876 = vmatmul.mubr.bf16.gmra.mxu0 %v1801
      %v1877 = vpop.f32.mrf.mxu0
      %v1878 = vadd.f32 0.0, %v1877
      %v1879 = vpop.f32.mrf.mxu0
      %v1880 = vpop.f32.mrf.mxu0
      %v1881 = vadd.f32 0.0, %v1880
      %v1882 = vpop.f32.mrf.mxu0
      %1883 = vmatprep.mubr.bf16.mxu0 0
      %1884 = vmatmul.mubr.bf16.gmra.mxu0 %v1804
      %v1885 = vpop.f32.mrf.mxu0
      %v1886 = vadd.f32 0.0, %v1885
      %v1887 = vpop.f32.mrf.mxu0
      %v1888 = vpop.f32.mrf.mxu0
      %v1889 = vadd.f32 0.0, %v1888
      %v1890 = vpop.f32.mrf.mxu0
      %1891 = vmatprep.mubr.bf16.mxu0 0
      %1892 = vmatmul.mubr.bf16.gmra.mxu0 %v1807
      %v1893 = vpop.f32.mrf.mxu0
      %v1894 = vadd.f32 0.0, %v1893
      %v1895 = vpop.f32.mrf.mxu0
      %v1896 = vpop.f32.mrf.mxu0
      %v1897 = vadd.f32 0.0, %v1896
      %v1898 = vpop.f32.mrf.mxu0
      %1899 = vmatprep.mubr.bf16.mxu0 0
      %1900 = vmatmul.mubr.bf16.gmra.mxu0 %v1810
      %v1901 = vpop.f32.mrf.mxu0
      %v1902 = vadd.f32 0.0, %v1901
      %v1903 = vpop.f32.mrf.mxu0
      %v1904 = vpop.f32.mrf.mxu0
      %v1905 = vadd.f32 0.0, %v1904
      %v1906 = vpop.f32.mrf.mxu0
      %1907 = vmatprep.mubr.bf16.mxu0 0
      %1908 = vmatmul.mubr.bf16.gmra.mxu0 %v1813
      %v1909 = vpop.f32.mrf.mxu0
      %v1910 = vadd.f32 0.0, %v1909
      %v1911 = vpop.f32.mrf.mxu0
      %v1912 = vpop.f32.mrf.mxu0
      %v1913 = vadd.f32 0.0, %v1912
      %v1914 = vpop.f32.mrf.mxu0
      %1915 = vmatprep.mubr.bf16.mxu0 0
      %1916 = vmatmul.mubr.bf16.gmra.mxu0 %v1816
      %v1917 = vpop.f32.mrf.mxu0
      %v1918 = vadd.f32 0.0, %v1917
      %v1919 = vpop.f32.mrf.mxu0
      %v1920 = vpop.f32.mrf.mxu0
      %v1921 = vadd.f32 0.0, %v1920
      %v1922 = vpop.f32.mrf.mxu0
      %1923 = vdwg.mxu0
      %v1925 = vsel %vm1663, %v1591, 0
      %v1928 = vsel %vm1663, %v1592, 0
      %v1931 = vsel %vm1663, %v1593, 0
      %v1934 = vsel %vm1663, %v1594, 0
      %v1937 = vsel %vm1663, %v1595, 0
      %v1940 = vsel %vm1663, %v1596, 0
      %v1943 = vsel %vm1663, %v1597, 0
      %v1946 = vsel %vm1663, %v1598, 0
      %v1949 = vsel %vm1663, %v1645, 0
      %v1952 = vsel %vm1663, %v1646, 0
      %v1955 = vsel %vm1663, %v1647, 0
      %1957 = vmatprep.subr.bf16.mxu0 0
      %1958 = vmatpush1.bf16.xpose.msra.mxu0 0
      %1959 = vmatprep.subr.bf16.mxu0 0
      %1960 = vmatpush1.bf16.xpose.msra.mxu0 0
      %1961 = vmatprep.subr.bf16.mxu0 0
      %1962 = vmatpush1.bf16.xpose.msra.mxu0 0
      %1963 = vmatprep.subr.bf16.mxu0 0
      %1964 = vmatpush1.bf16.xpose.msra.mxu0 0
      %1965 = vmatprep.subr.bf16.mxu0 0
      %1966 = vmatpush1.bf16.xpose.msra.mxu0 0
      %1967 = vmatprep.subr.bf16.mxu0 0
      %1968 = vmatpush1.bf16.xpose.msra.mxu0 %v1955
      %1969 = vmatprep.subr.bf16.mxu0 0
      %1970 = vmatpush1.bf16.xpose.msra.mxu0 %v1952
      %1971 = vmatprep.subr.bf16.mxu0 0
      %1972 = vmatpush1.bf16.xpose.msra.mxu0 %v1949
      %1973 = vmatprep.subr.bf16.mxu0 0
      %1974 = vmatpush2.bf16.xpose.msra.mxu0 0
      %1975 = vmatprep.subr.bf16.mxu0 0
      %1976 = vmatpush2.bf16.xpose.msra.mxu0 0
      %1977 = vmatprep.subr.bf16.mxu0 0
      %1978 = vmatpush2.bf16.xpose.msra.mxu0 0
      %1979 = vmatprep.subr.bf16.mxu0 0
      %1980 = vmatpush2.bf16.xpose.msra.mxu0 0
      %1981 = vmatprep.subr.bf16.mxu0 0
      %1982 = vmatpush2.bf16.xpose.msra.mxu0 0
      %1983 = vmatprep.subr.bf16.mxu0 0
      %1984 = vmatpush2.bf16.xpose.msra.mxu0 0
      %1985 = vmatprep.subr.bf16.mxu0 0
      %1986 = vmatpush2.bf16.xpose.msra.mxu0 0
      %1987 = vmatprep.subr.bf16.mxu0 0
      %1988 = vmatpush2.bf16.xpose.msra.mxu0 0
      %1989 = vmatprep.mubr.bf16.mxu0 0
      %1990 = vmatmul.mubr.bf16.gmra.mxu0 %v1925
      %v1991 = vpop.f32.mrf.mxu0
      %v1992 = vadd.f32 0.0, %v1991
      %v1993 = vpop.f32.mrf.mxu0
      %v1994 = vpop.f32.mrf.mxu0
      %v1995 = vadd.f32 0.0, %v1994
      %v1996 = vpop.f32.mrf.mxu0
      %1997 = vmatprep.mubr.bf16.mxu0 0
      %1998 = vmatmul.mubr.bf16.gmra.mxu0 %v1928
      %v1999 = vpop.f32.mrf.mxu0
      %v2000 = vadd.f32 0.0, %v1999
      %v2001 = vpop.f32.mrf.mxu0
      %v2002 = vpop.f32.mrf.mxu0
      %v2003 = vadd.f32 0.0, %v2002
      %v2004 = vpop.f32.mrf.mxu0
      %2005 = vmatprep.mubr.bf16.mxu0 0
      %2006 = vmatmul.mubr.bf16.gmra.mxu0 %v1931
      %v2007 = vpop.f32.mrf.mxu0
      %v2008 = vadd.f32 0.0, %v2007
      %v2009 = vpop.f32.mrf.mxu0
      %v2010 = vpop.f32.mrf.mxu0
      %v2011 = vadd.f32 0.0, %v2010
      %v2012 = vpop.f32.mrf.mxu0
      %2013 = vmatprep.mubr.bf16.mxu0 0
      %2014 = vmatmul.mubr.bf16.gmra.mxu0 %v1934
      %v2015 = vpop.f32.mrf.mxu0
      %v2016 = vadd.f32 0.0, %v2015
      %v2017 = vpop.f32.mrf.mxu0
      %v2018 = vpop.f32.mrf.mxu0
      %v2019 = vadd.f32 0.0, %v2018
      %v2020 = vpop.f32.mrf.mxu0
      %2021 = vmatprep.mubr.bf16.mxu0 0
      %2022 = vmatmul.mubr.bf16.gmra.mxu0 %v1937
      %v2023 = vpop.f32.mrf.mxu0
      %v2024 = vadd.f32 0.0, %v2023
      %v2025 = vpop.f32.mrf.mxu0
      %v2026 = vpop.f32.mrf.mxu0
      %v2027 = vadd.f32 0.0, %v2026
      %v2028 = vpop.f32.mrf.mxu0
      %2029 = vmatprep.mubr.bf16.mxu0 0
      %2030 = vmatmul.mubr.bf16.gmra.mxu0 %v1940
      %v2031 = vpop.f32.mrf.mxu0
      %v2032 = vadd.f32 0.0, %v2031
      %v2033 = vpop.f32.mrf.mxu0
      %v2034 = vpop.f32.mrf.mxu0
      %v2035 = vadd.f32 0.0, %v2034
      %v2036 = vpop.f32.mrf.mxu0
      %2037 = vmatprep.mubr.bf16.mxu0 0
      %2038 = vmatmul.mubr.bf16.gmra.mxu0 %v1943
      %v2039 = vpop.f32.mrf.mxu0
      %v2040 = vadd.f32 0.0, %v2039
      %v2041 = vpop.f32.mrf.mxu0
      %v2042 = vpop.f32.mrf.mxu0
      %v2043 = vadd.f32 0.0, %v2042
      %v2044 = vpop.f32.mrf.mxu0
      %2045 = vmatprep.mubr.bf16.mxu0 0
      %2046 = vmatmul.mubr.bf16.gmra.mxu0 %v1946
      %v2047 = vpop.f32.mrf.mxu0
      %v2048 = vadd.f32 0.0, %v2047
      %v2049 = vpop.f32.mrf.mxu0
      %v2050 = vpop.f32.mrf.mxu0
      %v2051 = vadd.f32 0.0, %v2050
      %v2052 = vpop.f32.mrf.mxu0
      %2053 = vdwg.mxu0
      %v2055 = vsel %vm1663, %v1599, 0
      %v2058 = vsel %vm1663, %v1600, 0
      %v2061 = vsel %vm1663, %v1601, 0
      %v2064 = vsel %vm1663, %v1602, 0
      %v2067 = vsel %vm1663, %v1603, 0
      %v2070 = vsel %vm1663, %v1604, 0
      %v2073 = vsel %vm1663, %v1605, 0
      %v2076 = vsel %vm1663, %v1606, 0
      %v2079 = vsel %vm1663, %v1648, 0
      %v2082 = vsel %vm1663, %v1649, 0
      %v2085 = vsel %vm1663, %v1650, 0
      %2087 = vmatprep.subr.bf16.mxu0 0
      %2088 = vmatpush1.bf16.xpose.msra.mxu0 0
      %2089 = vmatprep.subr.bf16.mxu0 0
      %2090 = vmatpush1.bf16.xpose.msra.mxu0 0
      %2091 = vmatprep.subr.bf16.mxu0 0
      %2092 = vmatpush1.bf16.xpose.msra.mxu0 0
      %2093 = vmatprep.subr.bf16.mxu0 0
      %2094 = vmatpush1.bf16.xpose.msra.mxu0 0
      %2095 = vmatprep.subr.bf16.mxu0 0
      %2096 = vmatpush1.bf16.xpose.msra.mxu0 0
      %2097 = vmatprep.subr.bf16.mxu0 0
      %2098 = vmatpush1.bf16.xpose.msra.mxu0 %v2085
      %2099 = vmatprep.subr.bf16.mxu0 0
      %2100 = vmatpush1.bf16.xpose.msra.mxu0 %v2082
      %2101 = vmatprep.subr.bf16.mxu0 0
      %2102 = vmatpush1.bf16.xpose.msra.mxu0 %v2079
      %2103 = vmatprep.subr.bf16.mxu0 0
      %2104 = vmatpush2.bf16.xpose.msra.mxu0 0
      %2105 = vmatprep.subr.bf16.mxu0 0
      %2106 = vmatpush2.bf16.xpose.msra.mxu0 0
      %2107 = vmatprep.subr.bf16.mxu0 0
      %2108 = vmatpush2.bf16.xpose.msra.mxu0 0
      %2109 = vmatprep.subr.bf16.mxu0 0
      %2110 = vmatpush2.bf16.xpose.msra.mxu0 0
      %2111 = vmatprep.subr.bf16.mxu0 0
      %2112 = vmatpush2.bf16.xpose.msra.mxu0 0
      %2113 = vmatprep.subr.bf16.mxu0 0
      %2114 = vmatpush2.bf16.xpose.msra.mxu0 0
      %2115 = vmatprep.subr.bf16.mxu0 0
      %2116 = vmatpush2.bf16.xpose.msra.mxu0 0
      %2117 = vmatprep.subr.bf16.mxu0 0
      %2118 = vmatpush2.bf16.xpose.msra.mxu0 0
      %2119 = vmatprep.mubr.bf16.mxu0 0
      %2120 = vmatmul.mubr.bf16.gmra.mxu0 %v2055
      %v2121 = vpop.f32.mrf.mxu0
      %v2122 = vadd.f32 0.0, %v2121
      %v2123 = vpop.f32.mrf.mxu0
      %v2124 = vpop.f32.mrf.mxu0
      %v2125 = vadd.f32 0.0, %v2124
      %v2126 = vpop.f32.mrf.mxu0
      %2127 = vmatprep.mubr.bf16.mxu0 0
      %2128 = vmatmul.mubr.bf16.gmra.mxu0 %v2058
      %v2129 = vpop.f32.mrf.mxu0
      %v2130 = vadd.f32 0.0, %v2129
      %v2131 = vpop.f32.mrf.mxu0
      %v2132 = vpop.f32.mrf.mxu0
      %v2133 = vadd.f32 0.0, %v2132
      %v2134 = vpop.f32.mrf.mxu0
      %2135 = vmatprep.mubr.bf16.mxu0 0
      %2136 = vmatmul.mubr.bf16.gmra.mxu0 %v2061
      %v2137 = vpop.f32.mrf.mxu0
      %v2138 = vadd.f32 0.0, %v2137
      %v2139 = vpop.f32.mrf.mxu0
      %v2140 = vpop.f32.mrf.mxu0
      %v2141 = vadd.f32 0.0, %v2140
      %v2142 = vpop.f32.mrf.mxu0
      %2143 = vmatprep.mubr.bf16.mxu0 0
      %2144 = vmatmul.mubr.bf16.gmra.mxu0 %v2064
      %v2145 = vpop.f32.mrf.mxu0
      %v2146 = vadd.f32 0.0, %v2145
      %v2147 = vpop.f32.mrf.mxu0
      %v2148 = vpop.f32.mrf.mxu0
      %v2149 = vadd.f32 0.0, %v2148
      %v2150 = vpop.f32.mrf.mxu0
      %2151 = vmatprep.mubr.bf16.mxu0 0
      %2152 = vmatmul.mubr.bf16.gmra.mxu0 %v2067
      %v2153 = vpop.f32.mrf.mxu0
      %v2154 = vadd.f32 0.0, %v2153
      %v2155 = vpop.f32.mrf.mxu0
      %v2156 = vpop.f32.mrf.mxu0
      %v2157 = vadd.f32 0.0, %v2156
      %v2158 = vpop.f32.mrf.mxu0
      %2159 = vmatprep.mubr.bf16.mxu0 0
      %2160 = vmatmul.mubr.bf16.gmra.mxu0 %v2070
      %v2161 = vpop.f32.mrf.mxu0
      %v2162 = vadd.f32 0.0, %v2161
      %v2163 = vpop.f32.mrf.mxu0
      %v2164 = vpop.f32.mrf.mxu0
      %v2165 = vadd.f32 0.0, %v2164
      %v2166 = vpop.f32.mrf.mxu0
      %2167 = vmatprep.mubr.bf16.mxu0 0
      %2168 = vmatmul.mubr.bf16.gmra.mxu0 %v2073
      %v2169 = vpop.f32.mrf.mxu0
      %v2170 = vadd.f32 0.0, %v2169
      %v2171 = vpop.f32.mrf.mxu0
      %v2172 = vpop.f32.mrf.mxu0
      %v2173 = vadd.f32 0.0, %v2172
      %v2174 = vpop.f32.mrf.mxu0
      %2175 = vmatprep.mubr.bf16.mxu0 0
      %2176 = vmatmul.mubr.bf16.gmra.mxu0 %v2076
      %v2177 = vpop.f32.mrf.mxu0
      %v2178 = vadd.f32 0.0, %v2177
      %v2179 = vpop.f32.mrf.mxu0
      %v2180 = vpop.f32.mrf.mxu0
      %v2181 = vadd.f32 0.0, %v2180
      %v2182 = vpop.f32.mrf.mxu0
      %2183 = vdwg.mxu0
      %v2185 = vsel %vm1663, %v1607, 0
      %v2188 = vsel %vm1663, %v1608, 0
      %v2191 = vsel %vm1663, %v1609, 0
      %v2194 = vsel %vm1663, %v1610, 0
      %v2197 = vsel %vm1663, %v1611, 0
      %v2200 = vsel %vm1663, %v1612, 0
      %v2203 = vsel %vm1663, %v1613, 0
      %v2206 = vsel %vm1663, %v1614, 0
      %v2209 = vsel %vm1663, %v1651, 0
      %v2212 = vsel %vm1663, %v1652, 0
      %v2215 = vsel %vm1663, %v1653, 0
      %2217 = vmatprep.subr.bf16.mxu0 0
      %2218 = vmatpush1.bf16.xpose.msra.mxu0 0
      %2219 = vmatprep.subr.bf16.mxu0 0
      %2220 = vmatpush1.bf16.xpose.msra.mxu0 0
      %2221 = vmatprep.subr.bf16.mxu0 0
      %2222 = vmatpush1.bf16.xpose.msra.mxu0 0
      %2223 = vmatprep.subr.bf16.mxu0 0
      %2224 = vmatpush1.bf16.xpose.msra.mxu0 0
      %2225 = vmatprep.subr.bf16.mxu0 0
      %2226 = vmatpush1.bf16.xpose.msra.mxu0 0
      %2227 = vmatprep.subr.bf16.mxu0 0
      %2228 = vmatpush1.bf16.xpose.msra.mxu0 %v2215
      %2229 = vmatprep.subr.bf16.mxu0 0
      %2230 = vmatpush1.bf16.xpose.msra.mxu0 %v2212
      %2231 = vmatprep.subr.bf16.mxu0 0
      %2232 = vmatpush1.bf16.xpose.msra.mxu0 %v2209
      %2233 = vmatprep.subr.bf16.mxu0 0
      %2234 = vmatpush2.bf16.xpose.msra.mxu0 0
      %2235 = vmatprep.subr.bf16.mxu0 0
      %2236 = vmatpush2.bf16.xpose.msra.mxu0 0
      %2237 = vmatprep.subr.bf16.mxu0 0
      %2238 = vmatpush2.bf16.xpose.msra.mxu0 0
      %2239 = vmatprep.subr.bf16.mxu0 0
      %2240 = vmatpush2.bf16.xpose.msra.mxu0 0
      %2241 = vmatprep.subr.bf16.mxu0 0
      %2242 = vmatpush2.bf16.xpose.msra.mxu0 0
      %2243 = vmatprep.subr.bf16.mxu0 0
      %2244 = vmatpush2.bf16.xpose.msra.mxu0 0
      %2245 = vmatprep.subr.bf16.mxu0 0
      %2246 = vmatpush2.bf16.xpose.msra.mxu0 0
      %2247 = vmatprep.subr.bf16.mxu0 0
      %2248 = vmatpush2.bf16.xpose.msra.mxu0 0
      %2249 = vmatprep.mubr.bf16.mxu0 0
      %2250 = vmatmul.mubr.bf16.gmra.mxu0 %v2185
      %v2251 = vpop.f32.mrf.mxu0
      %v2252 = vadd.f32 0.0, %v2251
      %v2253 = vpop.f32.mrf.mxu0
      %v2254 = vpop.f32.mrf.mxu0
      %v2255 = vadd.f32 0.0, %v2254
      %v2256 = vpop.f32.mrf.mxu0
      %2257 = vmatprep.mubr.bf16.mxu0 0
      %2258 = vmatmul.mubr.bf16.gmra.mxu0 %v2188
      %v2259 = vpop.f32.mrf.mxu0
      %v2260 = vadd.f32 0.0, %v2259
      %v2261 = vpop.f32.mrf.mxu0
      %v2262 = vpop.f32.mrf.mxu0
      %v2263 = vadd.f32 0.0, %v2262
      %v2264 = vpop.f32.mrf.mxu0
      %2265 = vmatprep.mubr.bf16.mxu0 0
      %2266 = vmatmul.mubr.bf16.gmra.mxu0 %v2191
      %v2267 = vpop.f32.mrf.mxu0
      %v2268 = vadd.f32 0.0, %v2267
      %v2269 = vpop.f32.mrf.mxu0
      %v2270 = vpop.f32.mrf.mxu0
      %v2271 = vadd.f32 0.0, %v2270
      %v2272 = vpop.f32.mrf.mxu0
      %2273 = vmatprep.mubr.bf16.mxu0 0
      %2274 = vmatmul.mubr.bf16.gmra.mxu0 %v2194
      %v2275 = vpop.f32.mrf.mxu0
      %v2276 = vadd.f32 0.0, %v2275
      %v2277 = vpop.f32.mrf.mxu0
      %v2278 = vpop.f32.mrf.mxu0
      %v2279 = vadd.f32 0.0, %v2278
      %v2280 = vpop.f32.mrf.mxu0
      %2281 = vmatprep.mubr.bf16.mxu0 0
      %2282 = vmatmul.mubr.bf16.gmra.mxu0 %v2197
      %v2283 = vpop.f32.mrf.mxu0
      %v2284 = vadd.f32 0.0, %v2283
      %v2285 = vpop.f32.mrf.mxu0
      %v2286 = vpop.f32.mrf.mxu0
      %v2287 = vadd.f32 0.0, %v2286
      %v2288 = vpop.f32.mrf.mxu0
      %2289 = vmatprep.mubr.bf16.mxu0 0
      %2290 = vmatmul.mubr.bf16.gmra.mxu0 %v2200
      %v2291 = vpop.f32.mrf.mxu0
      %v2292 = vadd.f32 0.0, %v2291
      %v2293 = vpop.f32.mrf.mxu0
      %v2294 = vpop.f32.mrf.mxu0
      %v2295 = vadd.f32 0.0, %v2294
      %v2296 = vpop.f32.mrf.mxu0
      %2297 = vmatprep.mubr.bf16.mxu0 0
      %2298 = vmatmul.mubr.bf16.gmra.mxu0 %v2203
      %v2299 = vpop.f32.mrf.mxu0
      %v2300 = vadd.f32 0.0, %v2299
      %v2301 = vpop.f32.mrf.mxu0
      %v2302 = vpop.f32.mrf.mxu0
      %v2303 = vadd.f32 0.0, %v2302
      %v2304 = vpop.f32.mrf.mxu0
      %2305 = vmatprep.mubr.bf16.mxu0 0
      %2306 = vmatmul.mubr.bf16.gmra.mxu0 %v2206
      %v2307 = vpop.f32.mrf.mxu0
      %v2308 = vadd.f32 0.0, %v2307
      %v2309 = vpop.f32.mrf.mxu0
      %v2310 = vpop.f32.mrf.mxu0
      %v2311 = vadd.f32 0.0, %v2310
      %v2312 = vpop.f32.mrf.mxu0
      %2313 = vdwg.mxu0
      %v2315 = vsel %vm1663, %v1615, 0
      %v2318 = vsel %vm1663, %v1616, 0
      %v2321 = vsel %vm1663, %v1617, 0
      %v2324 = vsel %vm1663, %v1618, 0
      %v2327 = vsel %vm1663, %v1619, 0
      %v2330 = vsel %vm1663, %v1620, 0
      %v2333 = vsel %vm1663, %v1621, 0
      %v2336 = vsel %vm1663, %v1622, 0
      %v2339 = vsel %vm1663, %v1654, 0
      %v2342 = vsel %vm1663, %v1655, 0
      %v2345 = vsel %vm1663, %v1656, 0
      %2347 = vmatprep.subr.bf16.mxu0 0
      %2348 = vmatpush1.bf16.xpose.msra.mxu0 0
      %2349 = vmatprep.subr.bf16.mxu0 0
      %2350 = vmatpush1.bf16.xpose.msra.mxu0 0
      %2351 = vmatprep.subr.bf16.mxu0 0
      %2352 = vmatpush1.bf16.xpose.msra.mxu0 0
      %2353 = vmatprep.subr.bf16.mxu0 0
      %2354 = vmatpush1.bf16.xpose.msra.mxu0 0
      %2355 = vmatprep.subr.bf16.mxu0 0
      %2356 = vmatpush1.bf16.xpose.msra.mxu0 0
      %2357 = vmatprep.subr.bf16.mxu0 0
      %2358 = vmatpush1.bf16.xpose.msra.mxu0 %v2345
      %2359 = vmatprep.subr.bf16.mxu0 0
      %2360 = vmatpush1.bf16.xpose.msra.mxu0 %v2342
      %2361 = vmatprep.subr.bf16.mxu0 0
      %2362 = vmatpush1.bf16.xpose.msra.mxu0 %v2339
      %2363 = vmatprep.subr.bf16.mxu0 0
      %2364 = vmatpush2.bf16.xpose.msra.mxu0 0
      %2365 = vmatprep.subr.bf16.mxu0 0
      %2366 = vmatpush2.bf16.xpose.msra.mxu0 0
      %2367 = vmatprep.subr.bf16.mxu0 0
      %2368 = vmatpush2.bf16.xpose.msra.mxu0 0
      %2369 = vmatprep.subr.bf16.mxu0 0
      %2370 = vmatpush2.bf16.xpose.msra.mxu0 0
      %2371 = vmatprep.subr.bf16.mxu0 0
      %2372 = vmatpush2.bf16.xpose.msra.mxu0 0
      %2373 = vmatprep.subr.bf16.mxu0 0
      %2374 = vmatpush2.bf16.xpose.msra.mxu0 0
      %2375 = vmatprep.subr.bf16.mxu0 0
      %2376 = vmatpush2.bf16.xpose.msra.mxu0 0
      %2377 = vmatprep.subr.bf16.mxu0 0
      %2378 = vmatpush2.bf16.xpose.msra.mxu0 0
      %2379 = vmatprep.mubr.bf16.mxu0 0
      %2380 = vmatmul.mubr.bf16.gmra.mxu0 %v2315
      %v2381 = vpop.f32.mrf.mxu0
      %v2382 = vadd.f32 0.0, %v2381
      %v2383 = vpop.f32.mrf.mxu0
      %v2384 = vpop.f32.mrf.mxu0
      %v2385 = vadd.f32 0.0, %v2384
      %v2386 = vpop.f32.mrf.mxu0
      %2387 = vmatprep.mubr.bf16.mxu0 0
      %2388 = vmatmul.mubr.bf16.gmra.mxu0 %v2318
      %v2389 = vpop.f32.mrf.mxu0
      %v2390 = vadd.f32 0.0, %v2389
      %v2391 = vpop.f32.mrf.mxu0
      %v2392 = vpop.f32.mrf.mxu0
      %v2393 = vadd.f32 0.0, %v2392
      %v2394 = vpop.f32.mrf.mxu0
      %2395 = vmatprep.mubr.bf16.mxu0 0
      %2396 = vmatmul.mubr.bf16.gmra.mxu0 %v2321
      %v2397 = vpop.f32.mrf.mxu0
      %v2398 = vadd.f32 0.0, %v2397
      %v2399 = vpop.f32.mrf.mxu0
      %v2400 = vpop.f32.mrf.mxu0
      %v2401 = vadd.f32 0.0, %v2400
      %v2402 = vpop.f32.mrf.mxu0
      %2403 = vmatprep.mubr.bf16.mxu0 0
      %2404 = vmatmul.mubr.bf16.gmra.mxu0 %v2324
      %v2405 = vpop.f32.mrf.mxu0
      %v2406 = vadd.f32 0.0, %v2405
      %v2407 = vpop.f32.mrf.mxu0
      %v2408 = vpop.f32.mrf.mxu0
      %v2409 = vadd.f32 0.0, %v2408
      %v2410 = vpop.f32.mrf.mxu0
      %2411 = vmatprep.mubr.bf16.mxu0 0
      %2412 = vmatmul.mubr.bf16.gmra.mxu0 %v2327
      %v2413 = vpop.f32.mrf.mxu0
      %v2414 = vadd.f32 0.0, %v2413
      %v2415 = vpop.f32.mrf.mxu0
      %v2416 = vpop.f32.mrf.mxu0
      %v2417 = vadd.f32 0.0, %v2416
      %v2418 = vpop.f32.mrf.mxu0
      %2419 = vmatprep.mubr.bf16.mxu0 0
      %2420 = vmatmul.mubr.bf16.gmra.mxu0 %v2330
      %v2421 = vpop.f32.mrf.mxu0
      %v2422 = vadd.f32 0.0, %v2421
      %v2423 = vpop.f32.mrf.mxu0
      %v2424 = vpop.f32.mrf.mxu0
      %v2425 = vadd.f32 0.0, %v2424
      %v2426 = vpop.f32.mrf.mxu0
      %2427 = vmatprep.mubr.bf16.mxu0 0
      %2428 = vmatmul.mubr.bf16.gmra.mxu0 %v2333
      %v2429 = vpop.f32.mrf.mxu0
      %v2430 = vadd.f32 0.0, %v2429
      %v2431 = vpop.f32.mrf.mxu0
      %v2432 = vpop.f32.mrf.mxu0
      %v2433 = vadd.f32 0.0, %v2432
      %v2434 = vpop.f32.mrf.mxu0
      %2435 = vmatprep.mubr.bf16.mxu0 0
      %2436 = vmatmul.mubr.bf16.gmra.mxu0 %v2336
      %v2437 = vpop.f32.mrf.mxu0
      %v2438 = vadd.f32 0.0, %v2437
      %v2439 = vpop.f32.mrf.mxu0
      %v2440 = vpop.f32.mrf.mxu0
      %v2441 = vadd.f32 0.0, %v2440
      %v2442 = vpop.f32.mrf.mxu0
      %2443 = vdwg.mxu0
      %v2445 = vsel %vm1663, %v1623, 0
      %v2448 = vsel %vm1663, %v1624, 0
      %v2451 = vsel %vm1663, %v1625, 0
      %v2454 = vsel %vm1663, %v1626, 0
      %v2457 = vsel %vm1663, %v1627, 0
      %v2460 = vsel %vm1663, %v1628, 0
      %v2463 = vsel %vm1663, %v1629, 0
      %v2466 = vsel %vm1663, %v1630, 0
      %v2469 = vsel %vm1663, %v1657, 0
      %v2472 = vsel %vm1663, %v1658, 0
      %v2475 = vsel %vm1663, %v1659, 0
      %2477 = vmatprep.subr.bf16.mxu0 0
      %2478 = vmatpush1.bf16.xpose.msra.mxu0 0
      %2479 = vmatprep.subr.bf16.mxu0 0
      %2480 = vmatpush1.bf16.xpose.msra.mxu0 0
      %2481 = vmatprep.subr.bf16.mxu0 0
      %2482 = vmatpush1.bf16.xpose.msra.mxu0 0
      %2483 = vmatprep.subr.bf16.mxu0 0
      %2484 = vmatpush1.bf16.xpose.msra.mxu0 0
      %2485 = vmatprep.subr.bf16.mxu0 0
      %2486 = vmatpush1.bf16.xpose.msra.mxu0 0
      %2487 = vmatprep.subr.bf16.mxu0 0
      %2488 = vmatpush1.bf16.xpose.msra.mxu0 %v2475
      %2489 = vmatprep.subr.bf16.mxu0 0
      %2490 = vmatpush1.bf16.xpose.msra.mxu0 %v2472
      %2491 = vmatprep.subr.bf16.mxu0 0
      %2492 = vmatpush1.bf16.xpose.msra.mxu0 %v2469
      %2493 = vmatprep.subr.bf16.mxu0 0
      %2494 = vmatpush2.bf16.xpose.msra.mxu0 0
      %2495 = vmatprep.subr.bf16.mxu0 0
      %2496 = vmatpush2.bf16.xpose.msra.mxu0 0
      %2497 = vmatprep.subr.bf16.mxu0 0
      %2498 = vmatpush2.bf16.xpose.msra.mxu0 0
      %2499 = vmatprep.subr.bf16.mxu0 0
      %2500 = vmatpush2.bf16.xpose.msra.mxu0 0
      %2501 = vmatprep.subr.bf16.mxu0 0
      %2502 = vmatpush2.bf16.xpose.msra.mxu0 0
      %2503 = vmatprep.subr.bf16.mxu0 0
      %2504 = vmatpush2.bf16.xpose.msra.mxu0 0
      %2505 = vmatprep.subr.bf16.mxu0 0
      %2506 = vmatpush2.bf16.xpose.msra.mxu0 0
      %2507 = vmatprep.subr.bf16.mxu0 0
      %2508 = vmatpush2.bf16.xpose.msra.mxu0 0
      %2509 = vmatprep.mubr.bf16.mxu0 0
      %2510 = vmatmul.mubr.bf16.gmra.mxu0 %v2445
      %v2511 = vpop.f32.mrf.mxu0
      %v2512 = vadd.f32 0.0, %v2511
      %v2513 = vpop.f32.mrf.mxu0
      %v2514 = vpop.f32.mrf.mxu0
      %v2515 = vadd.f32 0.0, %v2514
      %v2516 = vpop.f32.mrf.mxu0
      %2517 = vmatprep.mubr.bf16.mxu0 0
      %2518 = vmatmul.mubr.bf16.gmra.mxu0 %v2448
      %v2519 = vpop.f32.mrf.mxu0
      %v2520 = vadd.f32 0.0, %v2519
      %v2521 = vpop.f32.mrf.mxu0
      %v2522 = vpop.f32.mrf.mxu0
      %v2523 = vadd.f32 0.0, %v2522
      %v2524 = vpop.f32.mrf.mxu0
      %2525 = vmatprep.mubr.bf16.mxu0 0
      %2526 = vmatmul.mubr.bf16.gmra.mxu0 %v2451
      %v2527 = vpop.f32.mrf.mxu0
      %v2528 = vadd.f32 0.0, %v2527
      %v2529 = vpop.f32.mrf.mxu0
      %v2530 = vpop.f32.mrf.mxu0
      %v2531 = vadd.f32 0.0, %v2530
      %v2532 = vpop.f32.mrf.mxu0
      %2533 = vmatprep.mubr.bf16.mxu0 0
      %2534 = vmatmul.mubr.bf16.gmra.mxu0 %v2454
      %v2535 = vpop.f32.mrf.mxu0
      %v2536 = vadd.f32 0.0, %v2535
      %v2537 = vpop.f32.mrf.mxu0
      %v2538 = vpop.f32.mrf.mxu0
      %v2539 = vadd.f32 0.0, %v2538
      %v2540 = vpop.f32.mrf.mxu0
      %2541 = vmatprep.mubr.bf16.mxu0 0
      %2542 = vmatmul.mubr.bf16.gmra.mxu0 %v2457
      %v2543 = vpop.f32.mrf.mxu0
      %v2544 = vadd.f32 0.0, %v2543
      %v2545 = vpop.f32.mrf.mxu0
      %v2546 = vpop.f32.mrf.mxu0
      %v2547 = vadd.f32 0.0, %v2546
      %v2548 = vpop.f32.mrf.mxu0
      %2549 = vmatprep.mubr.bf16.mxu0 0
      %2550 = vmatmul.mubr.bf16.gmra.mxu0 %v2460
      %v2551 = vpop.f32.mrf.mxu0
      %v2552 = vadd.f32 0.0, %v2551
      %v2553 = vpop.f32.mrf.mxu0
      %v2554 = vpop.f32.mrf.mxu0
      %v2555 = vadd.f32 0.0, %v2554
      %v2556 = vpop.f32.mrf.mxu0
      %2557 = vmatprep.mubr.bf16.mxu0 0
      %2558 = vmatmul.mubr.bf16.gmra.mxu0 %v2463
      %v2559 = vpop.f32.mrf.mxu0
      %v2560 = vadd.f32 0.0, %v2559
      %v2561 = vpop.f32.mrf.mxu0
      %v2562 = vpop.f32.mrf.mxu0
      %v2563 = vadd.f32 0.0, %v2562
      %v2564 = vpop.f32.mrf.mxu0
      %2565 = vmatprep.mubr.bf16.mxu0 0
      %2566 = vmatmul.mubr.bf16.gmra.mxu0 %v2466
      %v2567 = vpop.f32.mrf.mxu0
      %v2568 = vadd.f32 0.0, %v2567
      %v2569 = vpop.f32.mrf.mxu0
      %v2570 = vpop.f32.mrf.mxu0
      %v2571 = vadd.f32 0.0, %v2570
      %v2572 = vpop.f32.mrf.mxu0
      %2573 = vdwg.mxu0
      %v2575 = vsel %vm1663, %v1631, 0
      %v2578 = vsel %vm1663, %v1632, 0
      %v2581 = vsel %vm1663, %v1633, 0
      %v2584 = vsel %vm1663, %v1634, 0
      %v2587 = vsel %vm1663, %v1635, 0
      %v2590 = vsel %vm1663, %v1636, 0
      %v2593 = vsel %vm1663, %v1637, 0
      %v2596 = vsel %vm1663, %v1638, 0
      %v2599 = vsel %vm1663, %v1660, 0
      %v2602 = vsel %vm1663, %v1661, 0
      %v2605 = vsel %vm1663, %v1662, 0
      %2607 = vmatprep.subr.bf16.mxu0 0
      %2608 = vmatpush1.bf16.xpose.msra.mxu0 0
      %2609 = vmatprep.subr.bf16.mxu0 0
      %2610 = vmatpush1.bf16.xpose.msra.mxu0 0
      %2611 = vmatprep.subr.bf16.mxu0 0
      %2612 = vmatpush1.bf16.xpose.msra.mxu0 0
      %2613 = vmatprep.subr.bf16.mxu0 0
      %2614 = vmatpush1.bf16.xpose.msra.mxu0 0
      %2615 = vmatprep.subr.bf16.mxu0 0
      %2616 = vmatpush1.bf16.xpose.msra.mxu0 0
      %2617 = vmatprep.subr.bf16.mxu0 0
      %2618 = vmatpush1.bf16.xpose.msra.mxu0 %v2605
      %2619 = vmatprep.subr.bf16.mxu0 0
      %2620 = vmatpush1.bf16.xpose.msra.mxu0 %v2602
      %2621 = vmatprep.subr.bf16.mxu0 0
      %2622 = vmatpush1.bf16.xpose.msra.mxu0 %v2599
      %2623 = vmatprep.subr.bf16.mxu0 0
      %2624 = vmatpush2.bf16.xpose.msra.mxu0 0
      %2625 = vmatprep.subr.bf16.mxu0 0
      %2626 = vmatpush2.bf16.xpose.msra.mxu0 0
      %2627 = vmatprep.subr.bf16.mxu0 0
      %2628 = vmatpush2.bf16.xpose.msra.mxu0 0
      %2629 = vmatprep.subr.bf16.mxu0 0
      %2630 = vmatpush2.bf16.xpose.msra.mxu0 0
      %2631 = vmatprep.subr.bf16.mxu0 0
      %2632 = vmatpush2.bf16.xpose.msra.mxu0 0
      %2633 = vmatprep.subr.bf16.mxu0 0
      %2634 = vmatpush2.bf16.xpose.msra.mxu0 0
      %2635 = vmatprep.subr.bf16.mxu0 0
      %2636 = vmatpush2.bf16.xpose.msra.mxu0 0
      %2637 = vmatprep.subr.bf16.mxu0 0
      %2638 = vmatpush2.bf16.xpose.msra.mxu0 0
      %2639 = vmatprep.mubr.bf16.mxu0 0
      %2640 = vmatmul.mubr.bf16.gmra.mxu0 %v2575
      %v2641 = vpop.f32.mrf.mxu0
      %v2642 = vadd.f32 0.0, %v2641
      %v2643 = vpop.f32.mrf.mxu0
      %v2644 = vpop.f32.mrf.mxu0
      %v2645 = vadd.f32 0.0, %v2644
      %v2646 = vpop.f32.mrf.mxu0
      %2647 = vmatprep.mubr.bf16.mxu0 0
      %2648 = vmatmul.mubr.bf16.gmra.mxu0 %v2578
      %v2649 = vpop.f32.mrf.mxu0
      %v2650 = vadd.f32 0.0, %v2649
      %v2651 = vpop.f32.mrf.mxu0
      %v2652 = vpop.f32.mrf.mxu0
      %v2653 = vadd.f32 0.0, %v2652
      %v2654 = vpop.f32.mrf.mxu0
      %2655 = vmatprep.mubr.bf16.mxu0 0
      %2656 = vmatmul.mubr.bf16.gmra.mxu0 %v2581
      %v2657 = vpop.f32.mrf.mxu0
      %v2658 = vadd.f32 0.0, %v2657
      %v2659 = vpop.f32.mrf.mxu0
      %v2660 = vpop.f32.mrf.mxu0
      %v2661 = vadd.f32 0.0, %v2660
      %v2662 = vpop.f32.mrf.mxu0
      %2663 = vmatprep.mubr.bf16.mxu0 0
      %2664 = vmatmul.mubr.bf16.gmra.mxu0 %v2584
      %v2665 = vpop.f32.mrf.mxu0
      %v2666 = vadd.f32 0.0, %v2665
      %v2667 = vpop.f32.mrf.mxu0
      %v2668 = vpop.f32.mrf.mxu0
      %v2669 = vadd.f32 0.0, %v2668
      %v2670 = vpop.f32.mrf.mxu0
      %2671 = vmatprep.mubr.bf16.mxu0 0
      %2672 = vmatmul.mubr.bf16.gmra.mxu0 %v2587
      %v2673 = vpop.f32.mrf.mxu0
      %v2674 = vadd.f32 0.0, %v2673
      %v2675 = vpop.f32.mrf.mxu0
      %v2676 = vpop.f32.mrf.mxu0
      %v2677 = vadd.f32 0.0, %v2676
      %v2678 = vpop.f32.mrf.mxu0
      %2679 = vmatprep.mubr.bf16.mxu0 0
      %2680 = vmatmul.mubr.bf16.gmra.mxu0 %v2590
      %v2681 = vpop.f32.mrf.mxu0
      %v2682 = vadd.f32 0.0, %v2681
      %v2683 = vpop.f32.mrf.mxu0
      %v2684 = vpop.f32.mrf.mxu0
      %v2685 = vadd.f32 0.0, %v2684
      %v2686 = vpop.f32.mrf.mxu0
      %2687 = vmatprep.mubr.bf16.mxu0 0
      %2688 = vmatmul.mubr.bf16.gmra.mxu0 %v2593
      %v2689 = vpop.f32.mrf.mxu0
      %v2690 = vadd.f32 0.0, %v2689
      %v2691 = vpop.f32.mrf.mxu0
      %v2692 = vpop.f32.mrf.mxu0
      %v2693 = vadd.f32 0.0, %v2692
      %v2694 = vpop.f32.mrf.mxu0
      %2695 = vmatprep.mubr.bf16.mxu0 0
      %2696 = vmatmul.mubr.bf16.gmra.mxu0 %v2596
      %v2697 = vpop.f32.mrf.mxu0
      %v2698 = vadd.f32 0.0, %v2697
      %v2699 = vpop.f32.mrf.mxu0
      %v2700 = vpop.f32.mrf.mxu0
      %v2701 = vadd.f32 0.0, %v2700
      %v2702 = vpop.f32.mrf.mxu0
      %2703 = vdwg.mxu0
      %vm2704 = vcmask 392192
      %v2705 = vsel %vm2704, %v1732, -inf
      %2706 = vmax.xlane.f32.xlu0 %v2705
      %v2707 = vpop.xlane.xlu0 %2706
      %v2708 = vsel %vm2704, %v1735, -inf
      %2709 = vmax.xlane.f32.xlu0 %v2708
      %v2710 = vpop.xlane.xlu0 %2709
      %v2711 = vsel %vm2704, %v1740, -inf
      %2712 = vmax.xlane.f32.xlu0 %v2711
      %v2713 = vpop.xlane.xlu0 %2712
      %v2714 = vsel %vm2704, %v1743, -inf
      %2715 = vmax.xlane.f32.xlu0 %v2714
      %v2716 = vpop.xlane.xlu0 %2715
      %v2717 = vsel %vm2704, %v1748, -inf
      %2718 = vmax.xlane.f32.xlu0 %v2717
      %v2719 = vpop.xlane.xlu0 %2718
      %v2720 = vsel %vm2704, %v1751, -inf
      %2721 = vmax.xlane.f32.xlu0 %v2720
      %v2722 = vpop.xlane.xlu0 %2721
      %v2723 = vsel %vm2704, %v1756, -inf
      %2724 = vmax.xlane.f32.xlu0 %v2723
      %v2725 = vpop.xlane.xlu0 %2724
      %v2726 = vsel %vm2704, %v1759, -inf
      %2727 = vmax.xlane.f32.xlu0 %v2726
      %v2728 = vpop.xlane.xlu0 %2727
      %v2729 = vsel %vm2704, %v1764, -inf
      %2730 = vmax.xlane.f32.xlu0 %v2729
      %v2731 = vpop.xlane.xlu0 %2730
      %v2732 = vsel %vm2704, %v1767, -inf
      %2733 = vmax.xlane.f32.xlu0 %v2732
      %v2734 = vpop.xlane.xlu0 %2733
      %v2735 = vsel %vm2704, %v1772, -inf
      %2736 = vmax.xlane.f32.xlu0 %v2735
      %v2737 = vpop.xlane.xlu0 %2736
      %v2738 = vsel %vm2704, %v1775, -inf
      %2739 = vmax.xlane.f32.xlu0 %v2738
      %v2740 = vpop.xlane.xlu0 %2739
      %v2741 = vsel %vm2704, %v1780, -inf
      %2742 = vmax.xlane.f32.xlu0 %v2741
      %v2743 = vpop.xlane.xlu0 %2742
      %v2744 = vsel %vm2704, %v1783, -inf
      %2745 = vmax.xlane.f32.xlu0 %v2744
      %v2746 = vpop.xlane.xlu0 %2745
      %v2747 = vsel %vm2704, %v1788, -inf
      %2748 = vmax.xlane.f32.xlu0 %v2747
      %v2749 = vpop.xlane.xlu0 %2748
      %v2750 = vsel %vm2704, %v1791, -inf
      %2751 = vmax.xlane.f32.xlu0 %v2750
      %v2752 = vpop.xlane.xlu0 %2751
      %v2753 = vsel %vm2704, %v1862, -inf
      %2754 = vmax.xlane.f32.xlu0 %v2753
      %v2755 = vpop.xlane.xlu0 %2754
      %v2756 = vsel %vm2704, %v1865, -inf
      %2757 = vmax.xlane.f32.xlu0 %v2756
      %v2758 = vpop.xlane.xlu0 %2757
      %v2759 = vsel %vm2704, %v1870, -inf
      %2760 = vmax.xlane.f32.xlu0 %v2759
      %v2761 = vpop.xlane.xlu0 %2760
      %v2762 = vsel %vm2704, %v1873, -inf
      %2763 = vmax.xlane.f32.xlu0 %v2762
      %v2764 = vpop.xlane.xlu0 %2763
      %v2765 = vsel %vm2704, %v1878, -inf
      %2766 = vmax.xlane.f32.xlu0 %v2765
      %v2767 = vpop.xlane.xlu0 %2766
      %v2768 = vsel %vm2704, %v1881, -inf
      %2769 = vmax.xlane.f32.xlu0 %v2768
      %v2770 = vpop.xlane.xlu0 %2769
      %v2771 = vsel %vm2704, %v1886, -inf
      %2772 = vmax.xlane.f32.xlu0 %v2771
      %v2773 = vpop.xlane.xlu0 %2772
      %v2774 = vsel %vm2704, %v1889, -inf
      %2775 = vmax.xlane.f32.xlu0 %v2774
      %v2776 = vpop.xlane.xlu0 %2775
      %v2777 = vsel %vm2704, %v1894, -inf
      %2778 = vmax.xlane.f32.xlu0 %v2777
      %v2779 = vpop.xlane.xlu0 %2778
      %v2780 = vsel %vm2704, %v1897, -inf
      %2781 = vmax.xlane.f32.xlu0 %v2780
      %v2782 = vpop.xlane.xlu0 %2781
      %v2783 = vsel %vm2704, %v1902, -inf
      %2784 = vmax.xlane.f32.xlu0 %v2783
      %v2785 = vpop.xlane.xlu0 %2784
      %v2786 = vsel %vm2704, %v1905, -inf
      %2787 = vmax.xlane.f32.xlu0 %v2786
      %v2788 = vpop.xlane.xlu0 %2787
      %v2789 = vsel %vm2704, %v1910, -inf
      %2790 = vmax.xlane.f32.xlu0 %v2789
      %v2791 = vpop.xlane.xlu0 %2790
      %v2792 = vsel %vm2704, %v1913, -inf
      %2793 = vmax.xlane.f32.xlu0 %v2792
      %v2794 = vpop.xlane.xlu0 %2793
      %v2795 = vsel %vm2704, %v1918, -inf
      %2796 = vmax.xlane.f32.xlu0 %v2795
      %v2797 = vpop.xlane.xlu0 %2796
      %v2798 = vsel %vm2704, %v1921, -inf
      %2799 = vmax.xlane.f32.xlu0 %v2798
      %v2800 = vpop.xlane.xlu0 %2799
      %v2801 = vsel %vm2704, %v1992, -inf
      %2802 = vmax.xlane.f32.xlu0 %v2801
      %v2803 = vpop.xlane.xlu0 %2802
      %v2804 = vsel %vm2704, %v1995, -inf
      %2805 = vmax.xlane.f32.xlu0 %v2804
      %v2806 = vpop.xlane.xlu0 %2805
      %v2807 = vsel %vm2704, %v2000, -inf
      %2808 = vmax.xlane.f32.xlu0 %v2807
      %v2809 = vpop.xlane.xlu0 %2808
      %v2810 = vsel %vm2704, %v2003, -inf
      %2811 = vmax.xlane.f32.xlu0 %v2810
      %v2812 = vpop.xlane.xlu0 %2811
      %v2813 = vsel %vm2704, %v2008, -inf
      %2814 = vmax.xlane.f32.xlu0 %v2813
      %v2815 = vpop.xlane.xlu0 %2814
      %v2816 = vsel %vm2704, %v2011, -inf
      %2817 = vmax.xlane.f32.xlu0 %v2816
      %v2818 = vpop.xlane.xlu0 %2817
      %v2819 = vsel %vm2704, %v2016, -inf
      %2820 = vmax.xlane.f32.xlu0 %v2819
      %v2821 = vpop.xlane.xlu0 %2820
      %v2822 = vsel %vm2704, %v2019, -inf
      %2823 = vmax.xlane.f32.xlu0 %v2822
      %v2824 = vpop.xlane.xlu0 %2823
      %v2825 = vsel %vm2704, %v2024, -inf
      %2826 = vmax.xlane.f32.xlu0 %v2825
      %v2827 = vpop.xlane.xlu0 %2826
      %v2828 = vsel %vm2704, %v2027, -inf
      %2829 = vmax.xlane.f32.xlu0 %v2828
      %v2830 = vpop.xlane.xlu0 %2829
      %v2831 = vsel %vm2704, %v2032, -inf
      %2832 = vmax.xlane.f32.xlu0 %v2831
      %v2833 = vpop.xlane.xlu0 %2832
      %v2834 = vsel %vm2704, %v2035, -inf
      %2835 = vmax.xlane.f32.xlu0 %v2834
      %v2836 = vpop.xlane.xlu0 %2835
      %v2837 = vsel %vm2704, %v2040, -inf
      %2838 = vmax.xlane.f32.xlu0 %v2837
      %v2839 = vpop.xlane.xlu0 %2838
      %v2840 = vsel %vm2704, %v2043, -inf
      %2841 = vmax.xlane.f32.xlu0 %v2840
      %v2842 = vpop.xlane.xlu0 %2841
      %v2843 = vsel %vm2704, %v2048, -inf
      %2844 = vmax.xlane.f32.xlu0 %v2843
      %v2845 = vpop.xlane.xlu0 %2844
      %v2846 = vsel %vm2704, %v2051, -inf
      %2847 = vmax.xlane.f32.xlu0 %v2846
      %v2848 = vpop.xlane.xlu0 %2847
      %v2849 = vsel %vm2704, %v2122, -inf
      %2850 = vmax.xlane.f32.xlu0 %v2849
      %v2851 = vpop.xlane.xlu0 %2850
      %v2852 = vsel %vm2704, %v2125, -inf
      %2853 = vmax.xlane.f32.xlu0 %v2852
      %v2854 = vpop.xlane.xlu0 %2853
      %v2855 = vsel %vm2704, %v2130, -inf
      %2856 = vmax.xlane.f32.xlu0 %v2855
      %v2857 = vpop.xlane.xlu0 %2856
      %v2858 = vsel %vm2704, %v2133, -inf
      %2859 = vmax.xlane.f32.xlu0 %v2858
      %v2860 = vpop.xlane.xlu0 %2859
      %v2861 = vsel %vm2704, %v2138, -inf
      %2862 = vmax.xlane.f32.xlu0 %v2861
      %v2863 = vpop.xlane.xlu0 %2862
      %v2864 = vsel %vm2704, %v2141, -inf
      %2865 = vmax.xlane.f32.xlu0 %v2864
      %v2866 = vpop.xlane.xlu0 %2865
      %v2867 = vsel %vm2704, %v2146, -inf
      %2868 = vmax.xlane.f32.xlu0 %v2867
      %v2869 = vpop.xlane.xlu0 %2868
      %v2870 = vsel %vm2704, %v2149, -inf
      %2871 = vmax.xlane.f32.xlu0 %v2870
      %v2872 = vpop.xlane.xlu0 %2871
      %v2873 = vsel %vm2704, %v2154, -inf
      %2874 = vmax.xlane.f32.xlu0 %v2873
      %v2875 = vpop.xlane.xlu0 %2874
      %v2876 = vsel %vm2704, %v2157, -inf
      %2877 = vmax.xlane.f32.xlu0 %v2876
      %v2878 = vpop.xlane.xlu0 %2877
      %v2879 = vsel %vm2704, %v2162, -inf
      %2880 = vmax.xlane.f32.xlu0 %v2879
      %v2881 = vpop.xlane.xlu0 %2880
      %v2882 = vsel %vm2704, %v2165, -inf
      %2883 = vmax.xlane.f32.xlu0 %v2882
      %v2884 = vpop.xlane.xlu0 %2883
      %v2885 = vsel %vm2704, %v2170, -inf
      %2886 = vmax.xlane.f32.xlu0 %v2885
      %v2887 = vpop.xlane.xlu0 %2886
      %v2888 = vsel %vm2704, %v2173, -inf
      %2889 = vmax.xlane.f32.xlu0 %v2888
      %v2890 = vpop.xlane.xlu0 %2889
      %v2891 = vsel %vm2704, %v2178, -inf
      %2892 = vmax.xlane.f32.xlu0 %v2891
      %v2893 = vpop.xlane.xlu0 %2892
      %v2894 = vsel %vm2704, %v2181, -inf
      %2895 = vmax.xlane.f32.xlu0 %v2894
      %v2896 = vpop.xlane.xlu0 %2895
      %v2897 = vsel %vm2704, %v2252, -inf
      %2898 = vmax.xlane.f32.xlu0 %v2897
      %v2899 = vpop.xlane.xlu0 %2898
      %v2900 = vsel %vm2704, %v2255, -inf
      %2901 = vmax.xlane.f32.xlu0 %v2900
      %v2902 = vpop.xlane.xlu0 %2901
      %v2903 = vsel %vm2704, %v2260, -inf
      %2904 = vmax.xlane.f32.xlu0 %v2903
      %v2905 = vpop.xlane.xlu0 %2904
      %v2906 = vsel %vm2704, %v2263, -inf
      %2907 = vmax.xlane.f32.xlu0 %v2906
      %v2908 = vpop.xlane.xlu0 %2907
      %v2909 = vsel %vm2704, %v2268, -inf
      %2910 = vmax.xlane.f32.xlu0 %v2909
      %v2911 = vpop.xlane.xlu0 %2910
      %v2912 = vsel %vm2704, %v2271, -inf
      %2913 = vmax.xlane.f32.xlu0 %v2912
      %v2914 = vpop.xlane.xlu0 %2913
      %v2915 = vsel %vm2704, %v2276, -inf
      %2916 = vmax.xlane.f32.xlu0 %v2915
      %v2917 = vpop.xlane.xlu0 %2916
      %v2918 = vsel %vm2704, %v2279, -inf
      %2919 = vmax.xlane.f32.xlu0 %v2918
      %v2920 = vpop.xlane.xlu0 %2919
      %v2921 = vsel %vm2704, %v2284, -inf
      %2922 = vmax.xlane.f32.xlu0 %v2921
      %v2923 = vpop.xlane.xlu0 %2922
      %v2924 = vsel %vm2704, %v2287, -inf
      %2925 = vmax.xlane.f32.xlu0 %v2924
      %v2926 = vpop.xlane.xlu0 %2925
      %v2927 = vsel %vm2704, %v2292, -inf
      %2928 = vmax.xlane.f32.xlu0 %v2927
      %v2929 = vpop.xlane.xlu0 %2928
      %v2930 = vsel %vm2704, %v2295, -inf
      %2931 = vmax.xlane.f32.xlu0 %v2930
      %v2932 = vpop.xlane.xlu0 %2931
      %v2933 = vsel %vm2704, %v2300, -inf
      %2934 = vmax.xlane.f32.xlu0 %v2933
      %v2935 = vpop.xlane.xlu0 %2934
      %v2936 = vsel %vm2704, %v2303, -inf
      %2937 = vmax.xlane.f32.xlu0 %v2936
      %v2938 = vpop.xlane.xlu0 %2937
      %v2939 = vsel %vm2704, %v2308, -inf
      %2940 = vmax.xlane.f32.xlu0 %v2939
      %v2941 = vpop.xlane.xlu0 %2940
      %v2942 = vsel %vm2704, %v2311, -inf
      %2943 = vmax.xlane.f32.xlu0 %v2942
      %v2944 = vpop.xlane.xlu0 %2943
      %v2945 = vsel %vm2704, %v2382, -inf
      %2946 = vmax.xlane.f32.xlu0 %v2945
      %v2947 = vpop.xlane.xlu0 %2946
      %v2948 = vsel %vm2704, %v2385, -inf
      %2949 = vmax.xlane.f32.xlu0 %v2948
      %v2950 = vpop.xlane.xlu0 %2949
      %v2951 = vsel %vm2704, %v2390, -inf
      %2952 = vmax.xlane.f32.xlu0 %v2951
      %v2953 = vpop.xlane.xlu0 %2952
      %v2954 = vsel %vm2704, %v2393, -inf
      %2955 = vmax.xlane.f32.xlu0 %v2954
      %v2956 = vpop.xlane.xlu0 %2955
      %v2957 = vsel %vm2704, %v2398, -inf
      %2958 = vmax.xlane.f32.xlu0 %v2957
      %v2959 = vpop.xlane.xlu0 %2958
      %v2960 = vsel %vm2704, %v2401, -inf
      %2961 = vmax.xlane.f32.xlu0 %v2960
      %v2962 = vpop.xlane.xlu0 %2961
      %v2963 = vsel %vm2704, %v2406, -inf
      %2964 = vmax.xlane.f32.xlu0 %v2963
      %v2965 = vpop.xlane.xlu0 %2964
      %v2966 = vsel %vm2704, %v2409, -inf
      %2967 = vmax.xlane.f32.xlu0 %v2966
      %v2968 = vpop.xlane.xlu0 %2967
      %v2969 = vsel %vm2704, %v2414, -inf
      %2970 = vmax.xlane.f32.xlu0 %v2969
      %v2971 = vpop.xlane.xlu0 %2970
      %v2972 = vsel %vm2704, %v2417, -inf
      %2973 = vmax.xlane.f32.xlu0 %v2972
      %v2974 = vpop.xlane.xlu0 %2973
      %v2975 = vsel %vm2704, %v2422, -inf
      %2976 = vmax.xlane.f32.xlu0 %v2975
      %v2977 = vpop.xlane.xlu0 %2976
      %v2978 = vsel %vm2704, %v2425, -inf
      %2979 = vmax.xlane.f32.xlu0 %v2978
      %v2980 = vpop.xlane.xlu0 %2979
      %v2981 = vsel %vm2704, %v2430, -inf
      %2982 = vmax.xlane.f32.xlu0 %v2981
      %v2983 = vpop.xlane.xlu0 %2982
      %v2984 = vsel %vm2704, %v2433, -inf
      %2985 = vmax.xlane.f32.xlu0 %v2984
      %v2986 = vpop.xlane.xlu0 %2985
      %v2987 = vsel %vm2704, %v2438, -inf
      %2988 = vmax.xlane.f32.xlu0 %v2987
      %v2989 = vpop.xlane.xlu0 %2988
      %v2990 = vsel %vm2704, %v2441, -inf
      %2991 = vmax.xlane.f32.xlu0 %v2990
      %v2992 = vpop.xlane.xlu0 %2991
      %v2993 = vsel %vm2704, %v2512, -inf
      %2994 = vmax.xlane.f32.xlu0 %v2993
      %v2995 = vpop.xlane.xlu0 %2994
      %v2996 = vsel %vm2704, %v2515, -inf
      %2997 = vmax.xlane.f32.xlu0 %v2996
      %v2998 = vpop.xlane.xlu0 %2997
      %v2999 = vsel %vm2704, %v2520, -inf
      %3000 = vmax.xlane.f32.xlu0 %v2999
      %v3001 = vpop.xlane.xlu0 %3000
      %v3002 = vsel %vm2704, %v2523, -inf
      %3003 = vmax.xlane.f32.xlu0 %v3002
      %v3004 = vpop.xlane.xlu0 %3003
      %v3005 = vsel %vm2704, %v2528, -inf
      %3006 = vmax.xlane.f32.xlu0 %v3005
      %v3007 = vpop.xlane.xlu0 %3006
      %v3008 = vsel %vm2704, %v2531, -inf
      %3009 = vmax.xlane.f32.xlu0 %v3008
      %v3010 = vpop.xlane.xlu0 %3009
      %v3011 = vsel %vm2704, %v2536, -inf
      %3012 = vmax.xlane.f32.xlu0 %v3011
      %v3013 = vpop.xlane.xlu0 %3012
      %v3014 = vsel %vm2704, %v2539, -inf
      %3015 = vmax.xlane.f32.xlu0 %v3014
      %v3016 = vpop.xlane.xlu0 %3015
      %v3017 = vsel %vm2704, %v2544, -inf
      %3018 = vmax.xlane.f32.xlu0 %v3017
      %v3019 = vpop.xlane.xlu0 %3018
      %v3020 = vsel %vm2704, %v2547, -inf
      %3021 = vmax.xlane.f32.xlu0 %v3020
      %v3022 = vpop.xlane.xlu0 %3021
      %v3023 = vsel %vm2704, %v2552, -inf
      %3024 = vmax.xlane.f32.xlu0 %v3023
      %v3025 = vpop.xlane.xlu0 %3024
      %v3026 = vsel %vm2704, %v2555, -inf
      %3027 = vmax.xlane.f32.xlu0 %v3026
      %v3028 = vpop.xlane.xlu0 %3027
      %v3029 = vsel %vm2704, %v2560, -inf
      %3030 = vmax.xlane.f32.xlu0 %v3029
      %v3031 = vpop.xlane.xlu0 %3030
      %v3032 = vsel %vm2704, %v2563, -inf
      %3033 = vmax.xlane.f32.xlu0 %v3032
      %v3034 = vpop.xlane.xlu0 %3033
      %v3035 = vsel %vm2704, %v2568, -inf
      %3036 = vmax.xlane.f32.xlu0 %v3035
      %v3037 = vpop.xlane.xlu0 %3036
      %v3038 = vsel %vm2704, %v2571, -inf
      %3039 = vmax.xlane.f32.xlu0 %v3038
      %v3040 = vpop.xlane.xlu0 %3039
      %v3041 = vsel %vm2704, %v2642, -inf
      %3042 = vmax.xlane.f32.xlu0 %v3041
      %v3043 = vpop.xlane.xlu0 %3042
      %v3044 = vsel %vm2704, %v2645, -inf
      %3045 = vmax.xlane.f32.xlu0 %v3044
      %v3046 = vpop.xlane.xlu0 %3045
      %v3047 = vsel %vm2704, %v2650, -inf
      %3048 = vmax.xlane.f32.xlu0 %v3047
      %v3049 = vpop.xlane.xlu0 %3048
      %v3050 = vsel %vm2704, %v2653, -inf
      %3051 = vmax.xlane.f32.xlu0 %v3050
      %v3052 = vpop.xlane.xlu0 %3051
      %v3053 = vsel %vm2704, %v2658, -inf
      %3054 = vmax.xlane.f32.xlu0 %v3053
      %v3055 = vpop.xlane.xlu0 %3054
      %v3056 = vsel %vm2704, %v2661, -inf
      %3057 = vmax.xlane.f32.xlu0 %v3056
      %v3058 = vpop.xlane.xlu0 %3057
      %v3059 = vsel %vm2704, %v2666, -inf
      %3060 = vmax.xlane.f32.xlu0 %v3059
      %v3061 = vpop.xlane.xlu0 %3060
      %v3062 = vsel %vm2704, %v2669, -inf
      %3063 = vmax.xlane.f32.xlu0 %v3062
      %v3064 = vpop.xlane.xlu0 %3063
      %v3065 = vsel %vm2704, %v2674, -inf
      %3066 = vmax.xlane.f32.xlu0 %v3065
      %v3067 = vpop.xlane.xlu0 %3066
      %v3068 = vsel %vm2704, %v2677, -inf
      %3069 = vmax.xlane.f32.xlu0 %v3068
      %v3070 = vpop.xlane.xlu0 %3069
      %v3071 = vsel %vm2704, %v2682, -inf
      %3072 = vmax.xlane.f32.xlu0 %v3071
      %v3073 = vpop.xlane.xlu0 %3072
      %v3074 = vsel %vm2704, %v2685, -inf
      %3075 = vmax.xlane.f32.xlu0 %v3074
      %v3076 = vpop.xlane.xlu0 %3075
      %v3077 = vsel %vm2704, %v2690, -inf
      %3078 = vmax.xlane.f32.xlu0 %v3077
      %v3079 = vpop.xlane.xlu0 %3078
      %v3080 = vsel %vm2704, %v2693, -inf
      %3081 = vmax.xlane.f32.xlu0 %v3080
      %v3082 = vpop.xlane.xlu0 %3081
      %v3083 = vsel %vm2704, %v2698, -inf
      %3084 = vmax.xlane.f32.xlu0 %v3083
      %v3085 = vpop.xlane.xlu0 %3084
      %v3086 = vsel %vm2704, %v2701, -inf
      %3087 = vmax.xlane.f32.xlu0 %v3086
      %v3088 = vpop.xlane.xlu0 %3087
      %v3089 = vsub.f32 %v1732, %v2707
      %v3090 = vsub.f32 %v1735, %v2710
      %v3091 = vsub.f32 %v1740, %v2713
      %v3092 = vsub.f32 %v1743, %v2716
      %v3093 = vsub.f32 %v1748, %v2719
      %v3094 = vsub.f32 %v1751, %v2722
      %v3095 = vsub.f32 %v1756, %v2725
      %v3096 = vsub.f32 %v1759, %v2728
      %v3097 = vsub.f32 %v1764, %v2731
      %v3098 = vsub.f32 %v1767, %v2734
      %v3099 = vsub.f32 %v1772, %v2737
      %v3100 = vsub.f32 %v1775, %v2740
      %v3101 = vsub.f32 %v1780, %v2743
      %v3102 = vsub.f32 %v1783, %v2746
      %v3103 = vsub.f32 %v1788, %v2749
      %v3104 = vsub.f32 %v1791, %v2752
      %v3105 = vsub.f32 %v1862, %v2755
      %v3106 = vsub.f32 %v1865, %v2758
      %v3107 = vsub.f32 %v1870, %v2761
      %v3108 = vsub.f32 %v1873, %v2764
      %v3109 = vsub.f32 %v1878, %v2767
      %v3110 = vsub.f32 %v1881, %v2770
      %v3111 = vsub.f32 %v1886, %v2773
      %v3112 = vsub.f32 %v1889, %v2776
      %v3113 = vsub.f32 %v1894, %v2779
      %v3114 = vsub.f32 %v1897, %v2782
      %v3115 = vsub.f32 %v1902, %v2785
      %v3116 = vsub.f32 %v1905, %v2788
      %v3117 = vsub.f32 %v1910, %v2791
      %v3118 = vsub.f32 %v1913, %v2794
      %v3119 = vsub.f32 %v1918, %v2797
      %v3120 = vsub.f32 %v1921, %v2800
      %v3121 = vsub.f32 %v1992, %v2803
      %v3122 = vsub.f32 %v1995, %v2806
      %v3123 = vsub.f32 %v2000, %v2809
      %v3124 = vsub.f32 %v2003, %v2812
      %v3125 = vsub.f32 %v2008, %v2815
      %v3126 = vsub.f32 %v2011, %v2818
      %v3127 = vsub.f32 %v2016, %v2821
      %v3128 = vsub.f32 %v2019, %v2824
      %v3129 = vsub.f32 %v2024, %v2827
      %v3130 = vsub.f32 %v2027, %v2830
      %v3131 = vsub.f32 %v2032, %v2833
      %v3132 = vsub.f32 %v2035, %v2836
      %v3133 = vsub.f32 %v2040, %v2839
      %v3134 = vsub.f32 %v2043, %v2842
      %v3135 = vsub.f32 %v2048, %v2845
      %v3136 = vsub.f32 %v2051, %v2848
      %v3137 = vsub.f32 %v2122, %v2851
      %v3138 = vsub.f32 %v2125, %v2854
      %v3139 = vsub.f32 %v2130, %v2857
      %v3140 = vsub.f32 %v2133, %v2860
      %v3141 = vsub.f32 %v2138, %v2863
      %v3142 = vsub.f32 %v2141, %v2866
      %v3143 = vsub.f32 %v2146, %v2869
      %v3144 = vsub.f32 %v2149, %v2872
      %v3145 = vsub.f32 %v2154, %v2875
      %v3146 = vsub.f32 %v2157, %v2878
      %v3147 = vsub.f32 %v2162, %v2881
      %v3148 = vsub.f32 %v2165, %v2884
      %v3149 = vsub.f32 %v2170, %v2887
      %v3150 = vsub.f32 %v2173, %v2890
      %v3151 = vsub.f32 %v2178, %v2893
      %v3152 = vsub.f32 %v2181, %v2896
      %v3153 = vsub.f32 %v2252, %v2899
      %v3154 = vsub.f32 %v2255, %v2902
      %v3155 = vsub.f32 %v2260, %v2905
      %v3156 = vsub.f32 %v2263, %v2908
      %v3157 = vsub.f32 %v2268, %v2911
      %v3158 = vsub.f32 %v2271, %v2914
      %v3159 = vsub.f32 %v2276, %v2917
      %v3160 = vsub.f32 %v2279, %v2920
      %v3161 = vsub.f32 %v2284, %v2923
      %v3162 = vsub.f32 %v2287, %v2926
      %v3163 = vsub.f32 %v2292, %v2929
      %v3164 = vsub.f32 %v2295, %v2932
      %v3165 = vsub.f32 %v2300, %v2935
      %v3166 = vsub.f32 %v2303, %v2938
      %v3167 = vsub.f32 %v2308, %v2941
      %v3168 = vsub.f32 %v2311, %v2944
      %v3169 = vsub.f32 %v2382, %v2947
      %v3170 = vsub.f32 %v2385, %v2950
      %v3171 = vsub.f32 %v2390, %v2953
      %v3172 = vsub.f32 %v2393, %v2956
      %v3173 = vsub.f32 %v2398, %v2959
      %v3174 = vsub.f32 %v2401, %v2962
      %v3175 = vsub.f32 %v2406, %v2965
      %v3176 = vsub.f32 %v2409, %v2968
      %v3177 = vsub.f32 %v2414, %v2971
      %v3178 = vsub.f32 %v2417, %v2974
      %v3179 = vsub.f32 %v2422, %v2977
      %v3180 = vsub.f32 %v2425, %v2980
      %v3181 = vsub.f32 %v2430, %v2983
      %v3182 = vsub.f32 %v2433, %v2986
      %v3183 = vsub.f32 %v2438, %v2989
      %v3184 = vsub.f32 %v2441, %v2992
      %v3185 = vsub.f32 %v2512, %v2995
      %v3186 = vsub.f32 %v2515, %v2998
      %v3187 = vsub.f32 %v2520, %v3001
      %v3188 = vsub.f32 %v2523, %v3004
      %v3189 = vsub.f32 %v2528, %v3007
      %v3190 = vsub.f32 %v2531, %v3010
      %v3191 = vsub.f32 %v2536, %v3013
      %v3192 = vsub.f32 %v2539, %v3016
      %v3193 = vsub.f32 %v2544, %v3019
      %v3194 = vsub.f32 %v2547, %v3022
      %v3195 = vsub.f32 %v2552, %v3025
      %v3196 = vsub.f32 %v2555, %v3028
      %v3197 = vsub.f32 %v2560, %v3031
      %v3198 = vsub.f32 %v2563, %v3034
      %v3199 = vsub.f32 %v2568, %v3037
      %v3200 = vsub.f32 %v2571, %v3040
      %v3201 = vsub.f32 %v2642, %v3043
      %v3202 = vsub.f32 %v2645, %v3046
      %v3203 = vsub.f32 %v2650, %v3049
      %v3204 = vsub.f32 %v2653, %v3052
      %v3205 = vsub.f32 %v2658, %v3055
      %v3206 = vsub.f32 %v2661, %v3058
      %v3207 = vsub.f32 %v2666, %v3061
      %v3208 = vsub.f32 %v2669, %v3064
      %v3209 = vsub.f32 %v2674, %v3067
      %v3210 = vsub.f32 %v2677, %v3070
      %v3211 = vsub.f32 %v2682, %v3073
      %v3212 = vsub.f32 %v2685, %v3076
      %v3213 = vsub.f32 %v2690, %v3079
      %v3214 = vsub.f32 %v2693, %v3082
      %v3215 = vsub.f32 %v2698, %v3085
      %v3216 = vsub.f32 %v2701, %v3088
      %v3217 = vmul.f32 %v3089, 1.442695
      %v3218 = vpow.pop %v3217
      %v3219 = vmul.f32 %v3090, 1.442695
      %v3220 = vpow.pop %v3219
      %v3221 = vmul.f32 %v3091, 1.442695
      %v3222 = vpow.pop %v3221
      %v3223 = vmul.f32 %v3092, 1.442695
      %v3224 = vpow.pop %v3223
      %v3225 = vmul.f32 %v3093, 1.442695
      %v3226 = vpow.pop %v3225
      %v3227 = vmul.f32 %v3094, 1.442695
      %v3228 = vpow.pop %v3227
      %v3229 = vmul.f32 %v3095, 1.442695
      %v3230 = vpow.pop %v3229
      %v3231 = vmul.f32 %v3096, 1.442695
      %v3232 = vpow.pop %v3231
      %v3233 = vmul.f32 %v3097, 1.442695
      %v3234 = vpow.pop %v3233
      %v3235 = vmul.f32 %v3098, 1.442695
      %v3236 = vpow.pop %v3235
      %v3237 = vmul.f32 %v3099, 1.442695
      %v3238 = vpow.pop %v3237
      %v3239 = vmul.f32 %v3100, 1.442695
      %v3240 = vpow.pop %v3239
      %v3241 = vmul.f32 %v3101, 1.442695
      %v3242 = vpow.pop %v3241
      %v3243 = vmul.f32 %v3102, 1.442695
      %v3244 = vpow.pop %v3243
      %v3245 = vmul.f32 %v3103, 1.442695
      %v3246 = vpow.pop %v3245
      %v3247 = vmul.f32 %v3104, 1.442695
      %v3248 = vpow.pop %v3247
      %v3249 = vmul.f32 %v3105, 1.442695
      %v3250 = vpow.pop %v3249
      %v3251 = vmul.f32 %v3106, 1.442695
      %v3252 = vpow.pop %v3251
      %v3253 = vmul.f32 %v3107, 1.442695
      %v3254 = vpow.pop %v3253
      %v3255 = vmul.f32 %v3108, 1.442695
      %v3256 = vpow.pop %v3255
      %v3257 = vmul.f32 %v3109, 1.442695
      %v3258 = vpow.pop %v3257
      %v3259 = vmul.f32 %v3110, 1.442695
      %v3260 = vpow.pop %v3259
      %v3261 = vmul.f32 %v3111, 1.442695
      %v3262 = vpow.pop %v3261
      %v3263 = vmul.f32 %v3112, 1.442695
      %v3264 = vpow.pop %v3263
      %v3265 = vmul.f32 %v3113, 1.442695
      %v3266 = vpow.pop %v3265
      %v3267 = vmul.f32 %v3114, 1.442695
      %v3268 = vpow.pop %v3267
      %v3269 = vmul.f32 %v3115, 1.442695
      %v3270 = vpow.pop %v3269
      %v3271 = vmul.f32 %v3116, 1.442695
      %v3272 = vpow.pop %v3271
      %v3273 = vmul.f32 %v3117, 1.442695
      %v3274 = vpow.pop %v3273
      %v3275 = vmul.f32 %v3118, 1.442695
      %v3276 = vpow.pop %v3275
      %v3277 = vmul.f32 %v3119, 1.442695
      %v3278 = vpow.pop %v3277
      %v3279 = vmul.f32 %v3120, 1.442695
      %v3280 = vpow.pop %v3279
      %v3281 = vmul.f32 %v3121, 1.442695
      %v3282 = vpow.pop %v3281
      %v3283 = vmul.f32 %v3122, 1.442695
      %v3284 = vpow.pop %v3283
      %v3285 = vmul.f32 %v3123, 1.442695
      %v3286 = vpow.pop %v3285
      %v3287 = vmul.f32 %v3124, 1.442695
      %v3288 = vpow.pop %v3287
      %v3289 = vmul.f32 %v3125, 1.442695
      %v3290 = vpow.pop %v3289
      %v3291 = vmul.f32 %v3126, 1.442695
      %v3292 = vpow.pop %v3291
      %v3293 = vmul.f32 %v3127, 1.442695
      %v3294 = vpow.pop %v3293
      %v3295 = vmul.f32 %v3128, 1.442695
      %v3296 = vpow.pop %v3295
      %v3297 = vmul.f32 %v3129, 1.442695
      %v3298 = vpow.pop %v3297
      %v3299 = vmul.f32 %v3130, 1.442695
      %v3300 = vpow.pop %v3299
      %v3301 = vmul.f32 %v3131, 1.442695
      %v3302 = vpow.pop %v3301
      %v3303 = vmul.f32 %v3132, 1.442695
      %v3304 = vpow.pop %v3303
      %v3305 = vmul.f32 %v3133, 1.442695
      %v3306 = vpow.pop %v3305
      %v3307 = vmul.f32 %v3134, 1.442695
      %v3308 = vpow.pop %v3307
      %v3309 = vmul.f32 %v3135, 1.442695
      %v3310 = vpow.pop %v3309
      %v3311 = vmul.f32 %v3136, 1.442695
      %v3312 = vpow.pop %v3311
      %v3313 = vmul.f32 %v3137, 1.442695
      %v3314 = vpow.pop %v3313
      %v3315 = vmul.f32 %v3138, 1.442695
      %v3316 = vpow.pop %v3315
      %v3317 = vmul.f32 %v3139, 1.442695
      %v3318 = vpow.pop %v3317
      %v3319 = vmul.f32 %v3140, 1.442695
      %v3320 = vpow.pop %v3319
      %v3321 = vmul.f32 %v3141, 1.442695
      %v3322 = vpow.pop %v3321
      %v3323 = vmul.f32 %v3142, 1.442695
      %v3324 = vpow.pop %v3323
      %v3325 = vmul.f32 %v3143, 1.442695
      %v3326 = vpow.pop %v3325
      %v3327 = vmul.f32 %v3144, 1.442695
      %v3328 = vpow.pop %v3327
      %v3329 = vmul.f32 %v3145, 1.442695
      %v3330 = vpow.pop %v3329
      %v3331 = vmul.f32 %v3146, 1.442695
      %v3332 = vpow.pop %v3331
      %v3333 = vmul.f32 %v3147, 1.442695
      %v3334 = vpow.pop %v3333
      %v3335 = vmul.f32 %v3148, 1.442695
      %v3336 = vpow.pop %v3335
      %v3337 = vmul.f32 %v3149, 1.442695
      %v3338 = vpow.pop %v3337
      %v3339 = vmul.f32 %v3150, 1.442695
      %v3340 = vpow.pop %v3339
      %v3341 = vmul.f32 %v3151, 1.442695
      %v3342 = vpow.pop %v3341
      %v3343 = vmul.f32 %v3152, 1.442695
      %v3344 = vpow.pop %v3343
      %v3345 = vmul.f32 %v3153, 1.442695
      %v3346 = vpow.pop %v3345
      %v3347 = vmul.f32 %v3154, 1.442695
      %v3348 = vpow.pop %v3347
      %v3349 = vmul.f32 %v3155, 1.442695
      %v3350 = vpow.pop %v3349
      %v3351 = vmul.f32 %v3156, 1.442695
      %v3352 = vpow.pop %v3351
      %v3353 = vmul.f32 %v3157, 1.442695
      %v3354 = vpow.pop %v3353
      %v3355 = vmul.f32 %v3158, 1.442695
      %v3356 = vpow.pop %v3355
      %v3357 = vmul.f32 %v3159, 1.442695
      %v3358 = vpow.pop %v3357
      %v3359 = vmul.f32 %v3160, 1.442695
      %v3360 = vpow.pop %v3359
      %v3361 = vmul.f32 %v3161, 1.442695
      %v3362 = vpow.pop %v3361
      %v3363 = vmul.f32 %v3162, 1.442695
      %v3364 = vpow.pop %v3363
      %v3365 = vmul.f32 %v3163, 1.442695
      %v3366 = vpow.pop %v3365
      %v3367 = vmul.f32 %v3164, 1.442695
      %v3368 = vpow.pop %v3367
      %v3369 = vmul.f32 %v3165, 1.442695
      %v3370 = vpow.pop %v3369
      %v3371 = vmul.f32 %v3166, 1.442695
      %v3372 = vpow.pop %v3371
      %v3373 = vmul.f32 %v3167, 1.442695
      %v3374 = vpow.pop %v3373
      %v3375 = vmul.f32 %v3168, 1.442695
      %v3376 = vpow.pop %v3375
      %v3377 = vmul.f32 %v3169, 1.442695
      %v3378 = vpow.pop %v3377
      %v3379 = vmul.f32 %v3170, 1.442695
      %v3380 = vpow.pop %v3379
      %v3381 = vmul.f32 %v3171, 1.442695
      %v3382 = vpow.pop %v3381
      %v3383 = vmul.f32 %v3172, 1.442695
      %v3384 = vpow.pop %v3383
      %v3385 = vmul.f32 %v3173, 1.442695
      %v3386 = vpow.pop %v3385
      %v3387 = vmul.f32 %v3174, 1.442695
      %v3388 = vpow.pop %v3387
      %v3389 = vmul.f32 %v3175, 1.442695
      %v3390 = vpow.pop %v3389
      %v3391 = vmul.f32 %v3176, 1.442695
      %v3392 = vpow.pop %v3391
      %v3393 = vmul.f32 %v3177, 1.442695
      %v3394 = vpow.pop %v3393
      %v3395 = vmul.f32 %v3178, 1.442695
      %v3396 = vpow.pop %v3395
      %v3397 = vmul.f32 %v3179, 1.442695
      %v3398 = vpow.pop %v3397
      %v3399 = vmul.f32 %v3180, 1.442695
      %v3400 = vpow.pop %v3399
      %v3401 = vmul.f32 %v3181, 1.442695
      %v3402 = vpow.pop %v3401
      %v3403 = vmul.f32 %v3182, 1.442695
      %v3404 = vpow.pop %v3403
      %v3405 = vmul.f32 %v3183, 1.442695
      %v3406 = vpow.pop %v3405
      %v3407 = vmul.f32 %v3184, 1.442695
      %v3408 = vpow.pop %v3407
      %v3409 = vmul.f32 %v3185, 1.442695
      %v3410 = vpow.pop %v3409
      %v3411 = vmul.f32 %v3186, 1.442695
      %v3412 = vpow.pop %v3411
      %v3413 = vmul.f32 %v3187, 1.442695
      %v3414 = vpow.pop %v3413
      %v3415 = vmul.f32 %v3188, 1.442695
      %v3416 = vpow.pop %v3415
      %v3417 = vmul.f32 %v3189, 1.442695
      %v3418 = vpow.pop %v3417
      %v3419 = vmul.f32 %v3190, 1.442695
      %v3420 = vpow.pop %v3419
      %v3421 = vmul.f32 %v3191, 1.442695
      %v3422 = vpow.pop %v3421
      %v3423 = vmul.f32 %v3192, 1.442695
      %v3424 = vpow.pop %v3423
      %v3425 = vmul.f32 %v3193, 1.442695
      %v3426 = vpow.pop %v3425
      %v3427 = vmul.f32 %v3194, 1.442695
      %v3428 = vpow.pop %v3427
      %v3429 = vmul.f32 %v3195, 1.442695
      %v3430 = vpow.pop %v3429
      %v3431 = vmul.f32 %v3196, 1.442695
      %v3432 = vpow.pop %v3431
      %v3433 = vmul.f32 %v3197, 1.442695
      %v3434 = vpow.pop %v3433
      %v3435 = vmul.f32 %v3198, 1.442695
      %v3436 = vpow.pop %v3435
      %v3437 = vmul.f32 %v3199, 1.442695
      %v3438 = vpow.pop %v3437
      %v3439 = vmul.f32 %v3200, 1.442695
      %v3440 = vpow.pop %v3439
      %v3441 = vmul.f32 %v3201, 1.442695
      %v3442 = vpow.pop %v3441
      %v3443 = vmul.f32 %v3202, 1.442695
      %v3444 = vpow.pop %v3443
      %v3445 = vmul.f32 %v3203, 1.442695
      %v3446 = vpow.pop %v3445
      %v3447 = vmul.f32 %v3204, 1.442695
      %v3448 = vpow.pop %v3447
      %v3449 = vmul.f32 %v3205, 1.442695
      %v3450 = vpow.pop %v3449
      %v3451 = vmul.f32 %v3206, 1.442695
      %v3452 = vpow.pop %v3451
      %v3453 = vmul.f32 %v3207, 1.442695
      %v3454 = vpow.pop %v3453
      %v3455 = vmul.f32 %v3208, 1.442695
      %v3456 = vpow.pop %v3455
      %v3457 = vmul.f32 %v3209, 1.442695
      %v3458 = vpow.pop %v3457
      %v3459 = vmul.f32 %v3210, 1.442695
      %v3460 = vpow.pop %v3459
      %v3461 = vmul.f32 %v3211, 1.442695
      %v3462 = vpow.pop %v3461
      %v3463 = vmul.f32 %v3212, 1.442695
      %v3464 = vpow.pop %v3463
      %v3465 = vmul.f32 %v3213, 1.442695
      %v3466 = vpow.pop %v3465
      %v3467 = vmul.f32 %v3214, 1.442695
      %v3468 = vpow.pop %v3467
      %v3469 = vmul.f32 %v3215, 1.442695
      %v3470 = vpow.pop %v3469
      %v3471 = vmul.f32 %v3216, 1.442695
      %v3472 = vpow.pop %v3471
      %v3473 = vpack.c.bf16 %v3220, %v3218
      %v3474 = vpack.c.bf16 %v3224, %v3222
      %v3475 = vpack.c.bf16 %v3228, %v3226
      %v3476 = vpack.c.bf16 %v3232, %v3230
      %v3477 = vpack.c.bf16 %v3236, %v3234
      %v3478 = vpack.c.bf16 %v3240, %v3238
      %v3479 = vpack.c.bf16 %v3244, %v3242
      %v3480 = vpack.c.bf16 %v3248, %v3246
      %v3481 = vpack.c.bf16 %v3252, %v3250
      %v3482 = vpack.c.bf16 %v3256, %v3254
      %v3483 = vpack.c.bf16 %v3260, %v3258
      %v3484 = vpack.c.bf16 %v3264, %v3262
      %v3485 = vpack.c.bf16 %v3268, %v3266
      %v3486 = vpack.c.bf16 %v3272, %v3270
      %v3487 = vpack.c.bf16 %v3276, %v3274
      %v3488 = vpack.c.bf16 %v3280, %v3278
      %v3489 = vpack.c.bf16 %v3284, %v3282
      %v3490 = vpack.c.bf16 %v3288, %v3286
      %v3491 = vpack.c.bf16 %v3292, %v3290
      %v3492 = vpack.c.bf16 %v3296, %v3294
      %v3493 = vpack.c.bf16 %v3300, %v3298
      %v3494 = vpack.c.bf16 %v3304, %v3302
      %v3495 = vpack.c.bf16 %v3308, %v3306
      %v3496 = vpack.c.bf16 %v3312, %v3310
      %v3497 = vpack.c.bf16 %v3316, %v3314
      %v3498 = vpack.c.bf16 %v3320, %v3318
      %v3499 = vpack.c.bf16 %v3324, %v3322
      %v3500 = vpack.c.bf16 %v3328, %v3326
      %v3501 = vpack.c.bf16 %v3332, %v3330
      %v3502 = vpack.c.bf16 %v3336, %v3334
      %v3503 = vpack.c.bf16 %v3340, %v3338
      %v3504 = vpack.c.bf16 %v3344, %v3342
      %v3505 = vpack.c.bf16 %v3348, %v3346
      %v3506 = vpack.c.bf16 %v3352, %v3350
      %v3507 = vpack.c.bf16 %v3356, %v3354
      %v3508 = vpack.c.bf16 %v3360, %v3358
      %v3509 = vpack.c.bf16 %v3364, %v3362
      %v3510 = vpack.c.bf16 %v3368, %v3366
      %v3511 = vpack.c.bf16 %v3372, %v3370
      %v3512 = vpack.c.bf16 %v3376, %v3374
      %v3513 = vpack.c.bf16 %v3380, %v3378
      %v3514 = vpack.c.bf16 %v3384, %v3382
      %v3515 = vpack.c.bf16 %v3388, %v3386
      %v3516 = vpack.c.bf16 %v3392, %v3390
      %v3517 = vpack.c.bf16 %v3396, %v3394
      %v3518 = vpack.c.bf16 %v3400, %v3398
      %v3519 = vpack.c.bf16 %v3404, %v3402
      %v3520 = vpack.c.bf16 %v3408, %v3406
      %v3521 = vpack.c.bf16 %v3412, %v3410
      %v3522 = vpack.c.bf16 %v3416, %v3414
      %v3523 = vpack.c.bf16 %v3420, %v3418
      %v3524 = vpack.c.bf16 %v3424, %v3422
      %v3525 = vpack.c.bf16 %v3428, %v3426
      %v3526 = vpack.c.bf16 %v3432, %v3430
      %v3527 = vpack.c.bf16 %v3436, %v3434
      %v3528 = vpack.c.bf16 %v3440, %v3438
      %v3529 = vpack.c.bf16 %v3444, %v3442
      %v3530 = vpack.c.bf16 %v3448, %v3446
      %v3531 = vpack.c.bf16 %v3452, %v3450
      %v3532 = vpack.c.bf16 %v3456, %v3454
      %v3533 = vpack.c.bf16 %v3460, %v3458
      %v3534 = vpack.c.bf16 %v3464, %v3462
      %v3535 = vpack.c.bf16 %v3468, %v3466
      %v3536 = vpack.c.bf16 %v3472, %v3470
      %3540 = vrot.lane.b32.xlu0 %v1639, 124
      %v3541 = vpop.permute.xlu0 %3540
      %3542 = vrot.lane.b32.xlu0 %v1640, 124
      %v3543 = vpop.permute.xlu0 %3542
      %3544 = vrot.lane.b32.xlu0 %v1641, 124
      %v3545 = vpop.permute.xlu0 %3544
      %v3550 = vsel %vm2704, %v3473, 0
      %v3553 = vsel %vm2704, %v3474, 0
      %v3556 = vsel %vm2704, %v3475, 0
      %v3559 = vsel %vm2704, %v3476, 0
      %v3562 = vsel %vm2704, %v3477, 0
      %v3565 = vsel %vm2704, %v3478, 0
      %v3568 = vsel %vm2704, %v3479, 0
      %v3571 = vsel %vm2704, %v3480, 0
      %3573 = vmatprep.subr.bf16.mxu0 0
      %3574 = vmatpush1.bf16.msra.mxu0 0
      %3575 = vmatprep.subr.bf16.mxu0 0
      %3576 = vmatpush1.bf16.msra.mxu0 0
      %3577 = vmatprep.subr.bf16.mxu0 0
      %3578 = vmatpush1.bf16.msra.mxu0 0
      %3579 = vmatprep.subr.bf16.mxu0 0
      %3580 = vmatpush1.bf16.msra.mxu0 0
      %3581 = vmatprep.subr.bf16.mxu0 0
      %3582 = vmatpush1.bf16.msra.mxu0 0
      %3583 = vmatprep.subr.bf16.mxu0 0
      %3584 = vmatpush1.bf16.msra.mxu0 %v3545
      %3585 = vmatprep.subr.bf16.mxu0 0
      %3586 = vmatpush1.bf16.msra.mxu0 %v3543
      %3587 = vmatprep.subr.bf16.mxu0 0
      %3588 = vmatpush1.bf16.msra.mxu0 %v3541
      %3589 = vmatprep.subr.bf16.mxu0 0
      %3590 = vmatpush2.bf16.msra.mxu0 0
      %3591 = vmatprep.subr.bf16.mxu0 0
      %3592 = vmatpush2.bf16.msra.mxu0 0
      %3593 = vmatprep.subr.bf16.mxu0 0
      %3594 = vmatpush2.bf16.msra.mxu0 0
      %3595 = vmatprep.subr.bf16.mxu0 0
      %3596 = vmatpush2.bf16.msra.mxu0 0
      %3597 = vmatprep.subr.bf16.mxu0 0
      %3598 = vmatpush2.bf16.msra.mxu0 0
      %3599 = vmatprep.subr.bf16.mxu0 0
      %3600 = vmatpush2.bf16.msra.mxu0 0
      %3601 = vmatprep.subr.bf16.mxu0 0
      %3602 = vmatpush2.bf16.msra.mxu0 0
      %3603 = vmatprep.subr.bf16.mxu0 0
      %3604 = vmatpush2.bf16.msra.mxu0 0
      %3605 = vmatprep.mubr.bf16.mxu0 0
      %3606 = vmatmul.mubr.bf16.gmra.mxu0 %v3550
      %v3607 = vpop.f32.mrf.mxu0
      %v3608 = vadd.f32 0.0, %v3607
      %v3609 = vpop.f32.mrf.mxu0
      %v3610 = vpop.f32.mrf.mxu0
      %v3611 = vadd.f32 0.0, %v3610
      %v3612 = vpop.f32.mrf.mxu0
      %3613 = vmatprep.mubr.bf16.mxu0 0
      %3614 = vmatmul.mubr.bf16.gmra.mxu0 %v3553
      %v3615 = vpop.f32.mrf.mxu0
      %v3616 = vadd.f32 0.0, %v3615
      %v3617 = vpop.f32.mrf.mxu0
      %v3618 = vpop.f32.mrf.mxu0
      %v3619 = vadd.f32 0.0, %v3618
      %v3620 = vpop.f32.mrf.mxu0
      %3621 = vmatprep.mubr.bf16.mxu0 0
      %3622 = vmatmul.mubr.bf16.gmra.mxu0 %v3556
      %v3623 = vpop.f32.mrf.mxu0
      %v3624 = vadd.f32 0.0, %v3623
      %v3625 = vpop.f32.mrf.mxu0
      %v3626 = vpop.f32.mrf.mxu0
      %v3627 = vadd.f32 0.0, %v3626
      %v3628 = vpop.f32.mrf.mxu0
      %3629 = vmatprep.mubr.bf16.mxu0 0
      %3630 = vmatmul.mubr.bf16.gmra.mxu0 %v3559
      %v3631 = vpop.f32.mrf.mxu0
      %v3632 = vadd.f32 0.0, %v3631
      %v3633 = vpop.f32.mrf.mxu0
      %v3634 = vpop.f32.mrf.mxu0
      %v3635 = vadd.f32 0.0, %v3634
      %v3636 = vpop.f32.mrf.mxu0
      %3637 = vmatprep.mubr.bf16.mxu0 0
      %3638 = vmatmul.mubr.bf16.gmra.mxu0 %v3562
      %v3639 = vpop.f32.mrf.mxu0
      %v3640 = vadd.f32 0.0, %v3639
      %v3641 = vpop.f32.mrf.mxu0
      %v3642 = vpop.f32.mrf.mxu0
      %v3643 = vadd.f32 0.0, %v3642
      %v3644 = vpop.f32.mrf.mxu0
      %3645 = vmatprep.mubr.bf16.mxu0 0
      %3646 = vmatmul.mubr.bf16.gmra.mxu0 %v3565
      %v3647 = vpop.f32.mrf.mxu0
      %v3648 = vadd.f32 0.0, %v3647
      %v3649 = vpop.f32.mrf.mxu0
      %v3650 = vpop.f32.mrf.mxu0
      %v3651 = vadd.f32 0.0, %v3650
      %v3652 = vpop.f32.mrf.mxu0
      %3653 = vmatprep.mubr.bf16.mxu0 0
      %3654 = vmatmul.mubr.bf16.gmra.mxu0 %v3568
      %v3655 = vpop.f32.mrf.mxu0
      %v3656 = vadd.f32 0.0, %v3655
      %v3657 = vpop.f32.mrf.mxu0
      %v3658 = vpop.f32.mrf.mxu0
      %v3659 = vadd.f32 0.0, %v3658
      %v3660 = vpop.f32.mrf.mxu0
      %3661 = vmatprep.mubr.bf16.mxu0 0
      %3662 = vmatmul.mubr.bf16.gmra.mxu0 %v3571
      %v3663 = vpop.f32.mrf.mxu0
      %v3664 = vadd.f32 0.0, %v3663
      %v3665 = vpop.f32.mrf.mxu0
      %v3666 = vpop.f32.mrf.mxu0
      %v3667 = vadd.f32 0.0, %v3666
      %v3668 = vpop.f32.mrf.mxu0
      %3669 = vdwg.mxu0
      %3673 = vrot.lane.b32.xlu0 %v1642, 124
      %v3674 = vpop.permute.xlu0 %3673
      %3675 = vrot.lane.b32.xlu0 %v1643, 124
      %v3676 = vpop.permute.xlu0 %3675
      %3677 = vrot.lane.b32.xlu0 %v1644, 124
      %v3678 = vpop.permute.xlu0 %3677
      %v3683 = vsel %vm2704, %v3481, 0
      %v3686 = vsel %vm2704, %v3482, 0
      %v3689 = vsel %vm2704, %v3483, 0
      %v3692 = vsel %vm2704, %v3484, 0
      %v3695 = vsel %vm2704, %v3485, 0
      %v3698 = vsel %vm2704, %v3486, 0
      %v3701 = vsel %vm2704, %v3487, 0
      %v3704 = vsel %vm2704, %v3488, 0
      %3706 = vmatprep.subr.bf16.mxu0 0
      %3707 = vmatpush1.bf16.msra.mxu0 0
      %3708 = vmatprep.subr.bf16.mxu0 0
      %3709 = vmatpush1.bf16.msra.mxu0 0
      %3710 = vmatprep.subr.bf16.mxu0 0
      %3711 = vmatpush1.bf16.msra.mxu0 0
      %3712 = vmatprep.subr.bf16.mxu0 0
      %3713 = vmatpush1.bf16.msra.mxu0 0
      %3714 = vmatprep.subr.bf16.mxu0 0
      %3715 = vmatpush1.bf16.msra.mxu0 0
      %3716 = vmatprep.subr.bf16.mxu0 0
      %3717 = vmatpush1.bf16.msra.mxu0 %v3678
      %3718 = vmatprep.subr.bf16.mxu0 0
      %3719 = vmatpush1.bf16.msra.mxu0 %v3676
      %3720 = vmatprep.subr.bf16.mxu0 0
      %3721 = vmatpush1.bf16.msra.mxu0 %v3674
      %3722 = vmatprep.subr.bf16.mxu0 0
      %3723 = vmatpush2.bf16.msra.mxu0 0
      %3724 = vmatprep.subr.bf16.mxu0 0
      %3725 = vmatpush2.bf16.msra.mxu0 0
      %3726 = vmatprep.subr.bf16.mxu0 0
      %3727 = vmatpush2.bf16.msra.mxu0 0
      %3728 = vmatprep.subr.bf16.mxu0 0
      %3729 = vmatpush2.bf16.msra.mxu0 0
      %3730 = vmatprep.subr.bf16.mxu0 0
      %3731 = vmatpush2.bf16.msra.mxu0 0
      %3732 = vmatprep.subr.bf16.mxu0 0
      %3733 = vmatpush2.bf16.msra.mxu0 0
      %3734 = vmatprep.subr.bf16.mxu0 0
      %3735 = vmatpush2.bf16.msra.mxu0 0
      %3736 = vmatprep.subr.bf16.mxu0 0
      %3737 = vmatpush2.bf16.msra.mxu0 0
      %3738 = vmatprep.mubr.bf16.mxu0 0
      %3739 = vmatmul.mubr.bf16.gmra.mxu0 %v3683
      %v3740 = vpop.f32.mrf.mxu0
      %v3741 = vadd.f32 0.0, %v3740
      %v3742 = vpop.f32.mrf.mxu0
      %v3743 = vpop.f32.mrf.mxu0
      %v3744 = vadd.f32 0.0, %v3743
      %v3745 = vpop.f32.mrf.mxu0
      %3746 = vmatprep.mubr.bf16.mxu0 0
      %3747 = vmatmul.mubr.bf16.gmra.mxu0 %v3686
      %v3748 = vpop.f32.mrf.mxu0
      %v3749 = vadd.f32 0.0, %v3748
      %v3750 = vpop.f32.mrf.mxu0
      %v3751 = vpop.f32.mrf.mxu0
      %v3752 = vadd.f32 0.0, %v3751
      %v3753 = vpop.f32.mrf.mxu0
      %3754 = vmatprep.mubr.bf16.mxu0 0
      %3755 = vmatmul.mubr.bf16.gmra.mxu0 %v3689
      %v3756 = vpop.f32.mrf.mxu0
      %v3757 = vadd.f32 0.0, %v3756
      %v3758 = vpop.f32.mrf.mxu0
      %v3759 = vpop.f32.mrf.mxu0
      %v3760 = vadd.f32 0.0, %v3759
      %v3761 = vpop.f32.mrf.mxu0
      %3762 = vmatprep.mubr.bf16.mxu0 0
      %3763 = vmatmul.mubr.bf16.gmra.mxu0 %v3692
      %v3764 = vpop.f32.mrf.mxu0
      %v3765 = vadd.f32 0.0, %v3764
      %v3766 = vpop.f32.mrf.mxu0
      %v3767 = vpop.f32.mrf.mxu0
      %v3768 = vadd.f32 0.0, %v3767
      %v3769 = vpop.f32.mrf.mxu0
      %3770 = vmatprep.mubr.bf16.mxu0 0
      %3771 = vmatmul.mubr.bf16.gmra.mxu0 %v3695
      %v3772 = vpop.f32.mrf.mxu0
      %v3773 = vadd.f32 0.0, %v3772
      %v3774 = vpop.f32.mrf.mxu0
      %v3775 = vpop.f32.mrf.mxu0
      %v3776 = vadd.f32 0.0, %v3775
      %v3777 = vpop.f32.mrf.mxu0
      %3778 = vmatprep.mubr.bf16.mxu0 0
      %3779 = vmatmul.mubr.bf16.gmra.mxu0 %v3698
      %v3780 = vpop.f32.mrf.mxu0
      %v3781 = vadd.f32 0.0, %v3780
      %v3782 = vpop.f32.mrf.mxu0
      %v3783 = vpop.f32.mrf.mxu0
      %v3784 = vadd.f32 0.0, %v3783
      %v3785 = vpop.f32.mrf.mxu0
      %3786 = vmatprep.mubr.bf16.mxu0 0
      %3787 = vmatmul.mubr.bf16.gmra.mxu0 %v3701
      %v3788 = vpop.f32.mrf.mxu0
      %v3789 = vadd.f32 0.0, %v3788
      %v3790 = vpop.f32.mrf.mxu0
      %v3791 = vpop.f32.mrf.mxu0
      %v3792 = vadd.f32 0.0, %v3791
      %v3793 = vpop.f32.mrf.mxu0
      %3794 = vmatprep.mubr.bf16.mxu0 0
      %3795 = vmatmul.mubr.bf16.gmra.mxu0 %v3704
      %v3796 = vpop.f32.mrf.mxu0
      %v3797 = vadd.f32 0.0, %v3796
      %v3798 = vpop.f32.mrf.mxu0
      %v3799 = vpop.f32.mrf.mxu0
      %v3800 = vadd.f32 0.0, %v3799
      %v3801 = vpop.f32.mrf.mxu0
      %3802 = vdwg.mxu0
      %3806 = vrot.lane.b32.xlu0 %v1645, 124
      %v3807 = vpop.permute.xlu0 %3806
      %3808 = vrot.lane.b32.xlu0 %v1646, 124
      %v3809 = vpop.permute.xlu0 %3808
      %3810 = vrot.lane.b32.xlu0 %v1647, 124
      %v3811 = vpop.permute.xlu0 %3810
      %v3816 = vsel %vm2704, %v3489, 0
      %v3819 = vsel %vm2704, %v3490, 0
      %v3822 = vsel %vm2704, %v3491, 0
      %v3825 = vsel %vm2704, %v3492, 0
      %v3828 = vsel %vm2704, %v3493, 0
      %v3831 = vsel %vm2704, %v3494, 0
      %v3834 = vsel %vm2704, %v3495, 0
      %v3837 = vsel %vm2704, %v3496, 0
      %3839 = vmatprep.subr.bf16.mxu0 0
      %3840 = vmatpush1.bf16.msra.mxu0 0
      %3841 = vmatprep.subr.bf16.mxu0 0
      %3842 = vmatpush1.bf16.msra.mxu0 0
      %3843 = vmatprep.subr.bf16.mxu0 0
      %3844 = vmatpush1.bf16.msra.mxu0 0
      %3845 = vmatprep.subr.bf16.mxu0 0
      %3846 = vmatpush1.bf16.msra.mxu0 0
      %3847 = vmatprep.subr.bf16.mxu0 0
      %3848 = vmatpush1.bf16.msra.mxu0 0
      %3849 = vmatprep.subr.bf16.mxu0 0
      %3850 = vmatpush1.bf16.msra.mxu0 %v3811
      %3851 = vmatprep.subr.bf16.mxu0 0
      %3852 = vmatpush1.bf16.msra.mxu0 %v3809
      %3853 = vmatprep.subr.bf16.mxu0 0
      %3854 = vmatpush1.bf16.msra.mxu0 %v3807
      %3855 = vmatprep.subr.bf16.mxu0 0
      %3856 = vmatpush2.bf16.msra.mxu0 0
      %3857 = vmatprep.subr.bf16.mxu0 0
      %3858 = vmatpush2.bf16.msra.mxu0 0
      %3859 = vmatprep.subr.bf16.mxu0 0
      %3860 = vmatpush2.bf16.msra.mxu0 0
      %3861 = vmatprep.subr.bf16.mxu0 0
      %3862 = vmatpush2.bf16.msra.mxu0 0
      %3863 = vmatprep.subr.bf16.mxu0 0
      %3864 = vmatpush2.bf16.msra.mxu0 0
      %3865 = vmatprep.subr.bf16.mxu0 0
      %3866 = vmatpush2.bf16.msra.mxu0 0
      %3867 = vmatprep.subr.bf16.mxu0 0
      %3868 = vmatpush2.bf16.msra.mxu0 0
      %3869 = vmatprep.subr.bf16.mxu0 0
      %3870 = vmatpush2.bf16.msra.mxu0 0
      %3871 = vmatprep.mubr.bf16.mxu0 0
      %3872 = vmatmul.mubr.bf16.gmra.mxu0 %v3816
      %v3873 = vpop.f32.mrf.mxu0
      %v3874 = vadd.f32 0.0, %v3873
      %v3875 = vpop.f32.mrf.mxu0
      %v3876 = vpop.f32.mrf.mxu0
      %v3877 = vadd.f32 0.0, %v3876
      %v3878 = vpop.f32.mrf.mxu0
      %3879 = vmatprep.mubr.bf16.mxu0 0
      %3880 = vmatmul.mubr.bf16.gmra.mxu0 %v3819
      %v3881 = vpop.f32.mrf.mxu0
      %v3882 = vadd.f32 0.0, %v3881
      %v3883 = vpop.f32.mrf.mxu0
      %v3884 = vpop.f32.mrf.mxu0
      %v3885 = vadd.f32 0.0, %v3884
      %v3886 = vpop.f32.mrf.mxu0
      %3887 = vmatprep.mubr.bf16.mxu0 0
      %3888 = vmatmul.mubr.bf16.gmra.mxu0 %v3822
      %v3889 = vpop.f32.mrf.mxu0
      %v3890 = vadd.f32 0.0, %v3889
      %v3891 = vpop.f32.mrf.mxu0
      %v3892 = vpop.f32.mrf.mxu0
      %v3893 = vadd.f32 0.0, %v3892
      %v3894 = vpop.f32.mrf.mxu0
      %3895 = vmatprep.mubr.bf16.mxu0 0
      %3896 = vmatmul.mubr.bf16.gmra.mxu0 %v3825
      %v3897 = vpop.f32.mrf.mxu0
      %v3898 = vadd.f32 0.0, %v3897
      %v3899 = vpop.f32.mrf.mxu0
      %v3900 = vpop.f32.mrf.mxu0
      %v3901 = vadd.f32 0.0, %v3900
      %v3902 = vpop.f32.mrf.mxu0
      %3903 = vmatprep.mubr.bf16.mxu0 0
      %3904 = vmatmul.mubr.bf16.gmra.mxu0 %v3828
      %v3905 = vpop.f32.mrf.mxu0
      %v3906 = vadd.f32 0.0, %v3905
      %v3907 = vpop.f32.mrf.mxu0
      %v3908 = vpop.f32.mrf.mxu0
      %v3909 = vadd.f32 0.0, %v3908
      %v3910 = vpop.f32.mrf.mxu0
      %3911 = vmatprep.mubr.bf16.mxu0 0
      %3912 = vmatmul.mubr.bf16.gmra.mxu0 %v3831
      %v3913 = vpop.f32.mrf.mxu0
      %v3914 = vadd.f32 0.0, %v3913
      %v3915 = vpop.f32.mrf.mxu0
      %v3916 = vpop.f32.mrf.mxu0
      %v3917 = vadd.f32 0.0, %v3916
      %v3918 = vpop.f32.mrf.mxu0
      %3919 = vmatprep.mubr.bf16.mxu0 0
      %3920 = vmatmul.mubr.bf16.gmra.mxu0 %v3834
      %v3921 = vpop.f32.mrf.mxu0
      %v3922 = vadd.f32 0.0, %v3921
      %v3923 = vpop.f32.mrf.mxu0
      %v3924 = vpop.f32.mrf.mxu0
      %v3925 = vadd.f32 0.0, %v3924
      %v3926 = vpop.f32.mrf.mxu0
      %3927 = vmatprep.mubr.bf16.mxu0 0
      %3928 = vmatmul.mubr.bf16.gmra.mxu0 %v3837
      %v3929 = vpop.f32.mrf.mxu0
      %v3930 = vadd.f32 0.0, %v3929
      %v3931 = vpop.f32.mrf.mxu0
      %v3932 = vpop.f32.mrf.mxu0
      %v3933 = vadd.f32 0.0, %v3932
      %v3934 = vpop.f32.mrf.mxu0
      %3935 = vdwg.mxu0
      %3939 = vrot.lane.b32.xlu0 %v1648, 124
      %v3940 = vpop.permute.xlu0 %3939
      %3941 = vrot.lane.b32.xlu0 %v1649, 124
      %v3942 = vpop.permute.xlu0 %3941
      %3943 = vrot.lane.b32.xlu0 %v1650, 124
      %v3944 = vpop.permute.xlu0 %3943
      %v3949 = vsel %vm2704, %v3497, 0
      %v3952 = vsel %vm2704, %v3498, 0
      %v3955 = vsel %vm2704, %v3499, 0
      %v3958 = vsel %vm2704, %v3500, 0
      %v3961 = vsel %vm2704, %v3501, 0
      %v3964 = vsel %vm2704, %v3502, 0
      %v3967 = vsel %vm2704, %v3503, 0
      %v3970 = vsel %vm2704, %v3504, 0
      %3972 = vmatprep.subr.bf16.mxu0 0
      %3973 = vmatpush1.bf16.msra.mxu0 0
      %3974 = vmatprep.subr.bf16.mxu0 0
      %3975 = vmatpush1.bf16.msra.mxu0 0
      %3976 = vmatprep.subr.bf16.mxu0 0
      %3977 = vmatpush1.bf16.msra.mxu0 0
      %3978 = vmatprep.subr.bf16.mxu0 0
      %3979 = vmatpush1.bf16.msra.mxu0 0
      %3980 = vmatprep.subr.bf16.mxu0 0
      %3981 = vmatpush1.bf16.msra.mxu0 0
      %3982 = vmatprep.subr.bf16.mxu0 0
      %3983 = vmatpush1.bf16.msra.mxu0 %v3944
      %3984 = vmatprep.subr.bf16.mxu0 0
      %3985 = vmatpush1.bf16.msra.mxu0 %v3942
      %3986 = vmatprep.subr.bf16.mxu0 0
      %3987 = vmatpush1.bf16.msra.mxu0 %v3940
      %3988 = vmatprep.subr.bf16.mxu0 0
      %3989 = vmatpush2.bf16.msra.mxu0 0
      %3990 = vmatprep.subr.bf16.mxu0 0
      %3991 = vmatpush2.bf16.msra.mxu0 0
      %3992 = vmatprep.subr.bf16.mxu0 0
      %3993 = vmatpush2.bf16.msra.mxu0 0
      %3994 = vmatprep.subr.bf16.mxu0 0
      %3995 = vmatpush2.bf16.msra.mxu0 0
      %3996 = vmatprep.subr.bf16.mxu0 0
      %3997 = vmatpush2.bf16.msra.mxu0 0
      %3998 = vmatprep.subr.bf16.mxu0 0
      %3999 = vmatpush2.bf16.msra.mxu0 0
      %4000 = vmatprep.subr.bf16.mxu0 0
      %4001 = vmatpush2.bf16.msra.mxu0 0
      %4002 = vmatprep.subr.bf16.mxu0 0
      %4003 = vmatpush2.bf16.msra.mxu0 0
      %4004 = vmatprep.mubr.bf16.mxu0 0
      %4005 = vmatmul.mubr.bf16.gmra.mxu0 %v3949
      %v4006 = vpop.f32.mrf.mxu0
      %v4007 = vadd.f32 0.0, %v4006
      %v4008 = vpop.f32.mrf.mxu0
      %v4009 = vpop.f32.mrf.mxu0
      %v4010 = vadd.f32 0.0, %v4009
      %v4011 = vpop.f32.mrf.mxu0
      %4012 = vmatprep.mubr.bf16.mxu0 0
      %4013 = vmatmul.mubr.bf16.gmra.mxu0 %v3952
      %v4014 = vpop.f32.mrf.mxu0
      %v4015 = vadd.f32 0.0, %v4014
      %v4016 = vpop.f32.mrf.mxu0
      %v4017 = vpop.f32.mrf.mxu0
      %v4018 = vadd.f32 0.0, %v4017
      %v4019 = vpop.f32.mrf.mxu0
      %4020 = vmatprep.mubr.bf16.mxu0 0
      %4021 = vmatmul.mubr.bf16.gmra.mxu0 %v3955
      %v4022 = vpop.f32.mrf.mxu0
      %v4023 = vadd.f32 0.0, %v4022
      %v4024 = vpop.f32.mrf.mxu0
      %v4025 = vpop.f32.mrf.mxu0
      %v4026 = vadd.f32 0.0, %v4025
      %v4027 = vpop.f32.mrf.mxu0
      %4028 = vmatprep.mubr.bf16.mxu0 0
      %4029 = vmatmul.mubr.bf16.gmra.mxu0 %v3958
      %v4030 = vpop.f32.mrf.mxu0
      %v4031 = vadd.f32 0.0, %v4030
      %v4032 = vpop.f32.mrf.mxu0
      %v4033 = vpop.f32.mrf.mxu0
      %v4034 = vadd.f32 0.0, %v4033
      %v4035 = vpop.f32.mrf.mxu0
      %4036 = vmatprep.mubr.bf16.mxu0 0
      %4037 = vmatmul.mubr.bf16.gmra.mxu0 %v3961
      %v4038 = vpop.f32.mrf.mxu0
      %v4039 = vadd.f32 0.0, %v4038
      %v4040 = vpop.f32.mrf.mxu0
      %v4041 = vpop.f32.mrf.mxu0
      %v4042 = vadd.f32 0.0, %v4041
      %v4043 = vpop.f32.mrf.mxu0
      %4044 = vmatprep.mubr.bf16.mxu0 0
      %4045 = vmatmul.mubr.bf16.gmra.mxu0 %v3964
      %v4046 = vpop.f32.mrf.mxu0
      %v4047 = vadd.f32 0.0, %v4046
      %v4048 = vpop.f32.mrf.mxu0
      %v4049 = vpop.f32.mrf.mxu0
      %v4050 = vadd.f32 0.0, %v4049
      %v4051 = vpop.f32.mrf.mxu0
      %4052 = vmatprep.mubr.bf16.mxu0 0
      %4053 = vmatmul.mubr.bf16.gmra.mxu0 %v3967
      %v4054 = vpop.f32.mrf.mxu0
      %v4055 = vadd.f32 0.0, %v4054
      %v4056 = vpop.f32.mrf.mxu0
      %v4057 = vpop.f32.mrf.mxu0
      %v4058 = vadd.f32 0.0, %v4057
      %v4059 = vpop.f32.mrf.mxu0
      %4060 = vmatprep.mubr.bf16.mxu0 0
      %4061 = vmatmul.mubr.bf16.gmra.mxu0 %v3970
      %v4062 = vpop.f32.mrf.mxu0
      %v4063 = vadd.f32 0.0, %v4062
      %v4064 = vpop.f32.mrf.mxu0
      %v4065 = vpop.f32.mrf.mxu0
      %v4066 = vadd.f32 0.0, %v4065
      %v4067 = vpop.f32.mrf.mxu0
      %4068 = vdwg.mxu0
      %4072 = vrot.lane.b32.xlu0 %v1651, 124
      %v4073 = vpop.permute.xlu0 %4072
      %4074 = vrot.lane.b32.xlu0 %v1652, 124
      %v4075 = vpop.permute.xlu0 %4074
      %4076 = vrot.lane.b32.xlu0 %v1653, 124
      %v4077 = vpop.permute.xlu0 %4076
      %v4082 = vsel %vm2704, %v3505, 0
      %v4085 = vsel %vm2704, %v3506, 0
      %v4088 = vsel %vm2704, %v3507, 0
      %v4091 = vsel %vm2704, %v3508, 0
      %v4094 = vsel %vm2704, %v3509, 0
      %v4097 = vsel %vm2704, %v3510, 0
      %v4100 = vsel %vm2704, %v3511, 0
      %v4103 = vsel %vm2704, %v3512, 0
      %4105 = vmatprep.subr.bf16.mxu0 0
      %4106 = vmatpush1.bf16.msra.mxu0 0
      %4107 = vmatprep.subr.bf16.mxu0 0
      %4108 = vmatpush1.bf16.msra.mxu0 0
      %4109 = vmatprep.subr.bf16.mxu0 0
      %4110 = vmatpush1.bf16.msra.mxu0 0
      %4111 = vmatprep.subr.bf16.mxu0 0
      %4112 = vmatpush1.bf16.msra.mxu0 0
      %4113 = vmatprep.subr.bf16.mxu0 0
      %4114 = vmatpush1.bf16.msra.mxu0 0
      %4115 = vmatprep.subr.bf16.mxu0 0
      %4116 = vmatpush1.bf16.msra.mxu0 %v4077
      %4117 = vmatprep.subr.bf16.mxu0 0
      %4118 = vmatpush1.bf16.msra.mxu0 %v4075
      %4119 = vmatprep.subr.bf16.mxu0 0
      %4120 = vmatpush1.bf16.msra.mxu0 %v4073
      %4121 = vmatprep.subr.bf16.mxu0 0
      %4122 = vmatpush2.bf16.msra.mxu0 0
      %4123 = vmatprep.subr.bf16.mxu0 0
      %4124 = vmatpush2.bf16.msra.mxu0 0
      %4125 = vmatprep.subr.bf16.mxu0 0
      %4126 = vmatpush2.bf16.msra.mxu0 0
      %4127 = vmatprep.subr.bf16.mxu0 0
      %4128 = vmatpush2.bf16.msra.mxu0 0
      %4129 = vmatprep.subr.bf16.mxu0 0
      %4130 = vmatpush2.bf16.msra.mxu0 0
      %4131 = vmatprep.subr.bf16.mxu0 0
      %4132 = vmatpush2.bf16.msra.mxu0 0
      %4133 = vmatprep.subr.bf16.mxu0 0
      %4134 = vmatpush2.bf16.msra.mxu0 0
      %4135 = vmatprep.subr.bf16.mxu0 0
      %4136 = vmatpush2.bf16.msra.mxu0 0
      %4137 = vmatprep.mubr.bf16.mxu0 0
      %4138 = vmatmul.mubr.bf16.gmra.mxu0 %v4082
      %v4139 = vpop.f32.mrf.mxu0
      %v4140 = vadd.f32 0.0, %v4139
      %v4141 = vpop.f32.mrf.mxu0
      %v4142 = vpop.f32.mrf.mxu0
      %v4143 = vadd.f32 0.0, %v4142
      %v4144 = vpop.f32.mrf.mxu0
      %4145 = vmatprep.mubr.bf16.mxu0 0
      %4146 = vmatmul.mubr.bf16.gmra.mxu0 %v4085
      %v4147 = vpop.f32.mrf.mxu0
      %v4148 = vadd.f32 0.0, %v4147
      %v4149 = vpop.f32.mrf.mxu0
      %v4150 = vpop.f32.mrf.mxu0
      %v4151 = vadd.f32 0.0, %v4150
      %v4152 = vpop.f32.mrf.mxu0
      %4153 = vmatprep.mubr.bf16.mxu0 0
      %4154 = vmatmul.mubr.bf16.gmra.mxu0 %v4088
      %v4155 = vpop.f32.mrf.mxu0
      %v4156 = vadd.f32 0.0, %v4155
      %v4157 = vpop.f32.mrf.mxu0
      %v4158 = vpop.f32.mrf.mxu0
      %v4159 = vadd.f32 0.0, %v4158
      %v4160 = vpop.f32.mrf.mxu0
      %4161 = vmatprep.mubr.bf16.mxu0 0
      %4162 = vmatmul.mubr.bf16.gmra.mxu0 %v4091
      %v4163 = vpop.f32.mrf.mxu0
      %v4164 = vadd.f32 0.0, %v4163
      %v4165 = vpop.f32.mrf.mxu0
      %v4166 = vpop.f32.mrf.mxu0
      %v4167 = vadd.f32 0.0, %v4166
      %v4168 = vpop.f32.mrf.mxu0
      %4169 = vmatprep.mubr.bf16.mxu0 0
      %4170 = vmatmul.mubr.bf16.gmra.mxu0 %v4094
      %v4171 = vpop.f32.mrf.mxu0
      %v4172 = vadd.f32 0.0, %v4171
      %v4173 = vpop.f32.mrf.mxu0
      %v4174 = vpop.f32.mrf.mxu0
      %v4175 = vadd.f32 0.0, %v4174
      %v4176 = vpop.f32.mrf.mxu0
      %4177 = vmatprep.mubr.bf16.mxu0 0
      %4178 = vmatmul.mubr.bf16.gmra.mxu0 %v4097
      %v4179 = vpop.f32.mrf.mxu0
      %v4180 = vadd.f32 0.0, %v4179
      %v4181 = vpop.f32.mrf.mxu0
      %v4182 = vpop.f32.mrf.mxu0
      %v4183 = vadd.f32 0.0, %v4182
      %v4184 = vpop.f32.mrf.mxu0
      %4185 = vmatprep.mubr.bf16.mxu0 0
      %4186 = vmatmul.mubr.bf16.gmra.mxu0 %v4100
      %v4187 = vpop.f32.mrf.mxu0
      %v4188 = vadd.f32 0.0, %v4187
      %v4189 = vpop.f32.mrf.mxu0
      %v4190 = vpop.f32.mrf.mxu0
      %v4191 = vadd.f32 0.0, %v4190
      %v4192 = vpop.f32.mrf.mxu0
      %4193 = vmatprep.mubr.bf16.mxu0 0
      %4194 = vmatmul.mubr.bf16.gmra.mxu0 %v4103
      %v4195 = vpop.f32.mrf.mxu0
      %v4196 = vadd.f32 0.0, %v4195
      %v4197 = vpop.f32.mrf.mxu0
      %v4198 = vpop.f32.mrf.mxu0
      %v4199 = vadd.f32 0.0, %v4198
      %v4200 = vpop.f32.mrf.mxu0
      %4201 = vdwg.mxu0
      %4205 = vrot.lane.b32.xlu0 %v1654, 124
      %v4206 = vpop.permute.xlu0 %4205
      %4207 = vrot.lane.b32.xlu0 %v1655, 124
      %v4208 = vpop.permute.xlu0 %4207
      %4209 = vrot.lane.b32.xlu0 %v1656, 124
      %v4210 = vpop.permute.xlu0 %4209
      %v4215 = vsel %vm2704, %v3513, 0
      %v4218 = vsel %vm2704, %v3514, 0
      %v4221 = vsel %vm2704, %v3515, 0
      %v4224 = vsel %vm2704, %v3516, 0
      %v4227 = vsel %vm2704, %v3517, 0
      %v4230 = vsel %vm2704, %v3518, 0
      %v4233 = vsel %vm2704, %v3519, 0
      %v4236 = vsel %vm2704, %v3520, 0
      %4238 = vmatprep.subr.bf16.mxu0 0
      %4239 = vmatpush1.bf16.msra.mxu0 0
      %4240 = vmatprep.subr.bf16.mxu0 0
      %4241 = vmatpush1.bf16.msra.mxu0 0
      %4242 = vmatprep.subr.bf16.mxu0 0
      %4243 = vmatpush1.bf16.msra.mxu0 0
      %4244 = vmatprep.subr.bf16.mxu0 0
      %4245 = vmatpush1.bf16.msra.mxu0 0
      %4246 = vmatprep.subr.bf16.mxu0 0
      %4247 = vmatpush1.bf16.msra.mxu0 0
      %4248 = vmatprep.subr.bf16.mxu0 0
      %4249 = vmatpush1.bf16.msra.mxu0 %v4210
      %4250 = vmatprep.subr.bf16.mxu0 0
      %4251 = vmatpush1.bf16.msra.mxu0 %v4208
      %4252 = vmatprep.subr.bf16.mxu0 0
      %4253 = vmatpush1.bf16.msra.mxu0 %v4206
      %4254 = vmatprep.subr.bf16.mxu0 0
      %4255 = vmatpush2.bf16.msra.mxu0 0
      %4256 = vmatprep.subr.bf16.mxu0 0
      %4257 = vmatpush2.bf16.msra.mxu0 0
      %4258 = vmatprep.subr.bf16.mxu0 0
      %4259 = vmatpush2.bf16.msra.mxu0 0
      %4260 = vmatprep.subr.bf16.mxu0 0
      %4261 = vmatpush2.bf16.msra.mxu0 0
      %4262 = vmatprep.subr.bf16.mxu0 0
      %4263 = vmatpush2.bf16.msra.mxu0 0
      %4264 = vmatprep.subr.bf16.mxu0 0
      %4265 = vmatpush2.bf16.msra.mxu0 0
      %4266 = vmatprep.subr.bf16.mxu0 0
      %4267 = vmatpush2.bf16.msra.mxu0 0
      %4268 = vmatprep.subr.bf16.mxu0 0
      %4269 = vmatpush2.bf16.msra.mxu0 0
      %4270 = vmatprep.mubr.bf16.mxu0 0
      %4271 = vmatmul.mubr.bf16.gmra.mxu0 %v4215
      %v4272 = vpop.f32.mrf.mxu0
      %v4273 = vadd.f32 0.0, %v4272
      %v4274 = vpop.f32.mrf.mxu0
      %v4275 = vpop.f32.mrf.mxu0
      %v4276 = vadd.f32 0.0, %v4275
      %v4277 = vpop.f32.mrf.mxu0
      %4278 = vmatprep.mubr.bf16.mxu0 0
      %4279 = vmatmul.mubr.bf16.gmra.mxu0 %v4218
      %v4280 = vpop.f32.mrf.mxu0
      %v4281 = vadd.f32 0.0, %v4280
      %v4282 = vpop.f32.mrf.mxu0
      %v4283 = vpop.f32.mrf.mxu0
      %v4284 = vadd.f32 0.0, %v4283
      %v4285 = vpop.f32.mrf.mxu0
      %4286 = vmatprep.mubr.bf16.mxu0 0
      %4287 = vmatmul.mubr.bf16.gmra.mxu0 %v4221
      %v4288 = vpop.f32.mrf.mxu0
      %v4289 = vadd.f32 0.0, %v4288
      %v4290 = vpop.f32.mrf.mxu0
      %v4291 = vpop.f32.mrf.mxu0
      %v4292 = vadd.f32 0.0, %v4291
      %v4293 = vpop.f32.mrf.mxu0
      %4294 = vmatprep.mubr.bf16.mxu0 0
      %4295 = vmatmul.mubr.bf16.gmra.mxu0 %v4224
      %v4296 = vpop.f32.mrf.mxu0
      %v4297 = vadd.f32 0.0, %v4296
      %v4298 = vpop.f32.mrf.mxu0
      %v4299 = vpop.f32.mrf.mxu0
      %v4300 = vadd.f32 0.0, %v4299
      %v4301 = vpop.f32.mrf.mxu0
      %4302 = vmatprep.mubr.bf16.mxu0 0
      %4303 = vmatmul.mubr.bf16.gmra.mxu0 %v4227
      %v4304 = vpop.f32.mrf.mxu0
      %v4305 = vadd.f32 0.0, %v4304
      %v4306 = vpop.f32.mrf.mxu0
      %v4307 = vpop.f32.mrf.mxu0
      %v4308 = vadd.f32 0.0, %v4307
      %v4309 = vpop.f32.mrf.mxu0
      %4310 = vmatprep.mubr.bf16.mxu0 0
      %4311 = vmatmul.mubr.bf16.gmra.mxu0 %v4230
      %v4312 = vpop.f32.mrf.mxu0
      %v4313 = vadd.f32 0.0, %v4312
      %v4314 = vpop.f32.mrf.mxu0
      %v4315 = vpop.f32.mrf.mxu0
      %v4316 = vadd.f32 0.0, %v4315
      %v4317 = vpop.f32.mrf.mxu0
      %4318 = vmatprep.mubr.bf16.mxu0 0
      %4319 = vmatmul.mubr.bf16.gmra.mxu0 %v4233
      %v4320 = vpop.f32.mrf.mxu0
      %v4321 = vadd.f32 0.0, %v4320
      %v4322 = vpop.f32.mrf.mxu0
      %v4323 = vpop.f32.mrf.mxu0
      %v4324 = vadd.f32 0.0, %v4323
      %v4325 = vpop.f32.mrf.mxu0
      %4326 = vmatprep.mubr.bf16.mxu0 0
      %4327 = vmatmul.mubr.bf16.gmra.mxu0 %v4236
      %v4328 = vpop.f32.mrf.mxu0
      %v4329 = vadd.f32 0.0, %v4328
      %v4330 = vpop.f32.mrf.mxu0
      %v4331 = vpop.f32.mrf.mxu0
      %v4332 = vadd.f32 0.0, %v4331
      %v4333 = vpop.f32.mrf.mxu0
      %4334 = vdwg.mxu0
      %4338 = vrot.lane.b32.xlu0 %v1657, 124
      %v4339 = vpop.permute.xlu0 %4338
      %4340 = vrot.lane.b32.xlu0 %v1658, 124
      %v4341 = vpop.permute.xlu0 %4340
      %4342 = vrot.lane.b32.xlu0 %v1659, 124
      %v4343 = vpop.permute.xlu0 %4342
      %v4348 = vsel %vm2704, %v3521, 0
      %v4351 = vsel %vm2704, %v3522, 0
      %v4354 = vsel %vm2704, %v3523, 0
      %v4357 = vsel %vm2704, %v3524, 0
      %v4360 = vsel %vm2704, %v3525, 0
      %v4363 = vsel %vm2704, %v3526, 0
      %v4366 = vsel %vm2704, %v3527, 0
      %v4369 = vsel %vm2704, %v3528, 0
      %4371 = vmatprep.subr.bf16.mxu0 0
      %4372 = vmatpush1.bf16.msra.mxu0 0
      %4373 = vmatprep.subr.bf16.mxu0 0
      %4374 = vmatpush1.bf16.msra.mxu0 0
      %4375 = vmatprep.subr.bf16.mxu0 0
      %4376 = vmatpush1.bf16.msra.mxu0 0
      %4377 = vmatprep.subr.bf16.mxu0 0
      %4378 = vmatpush1.bf16.msra.mxu0 0
      %4379 = vmatprep.subr.bf16.mxu0 0
      %4380 = vmatpush1.bf16.msra.mxu0 0
      %4381 = vmatprep.subr.bf16.mxu0 0
      %4382 = vmatpush1.bf16.msra.mxu0 %v4343
      %4383 = vmatprep.subr.bf16.mxu0 0
      %4384 = vmatpush1.bf16.msra.mxu0 %v4341
      %4385 = vmatprep.subr.bf16.mxu0 0
      %4386 = vmatpush1.bf16.msra.mxu0 %v4339
      %4387 = vmatprep.subr.bf16.mxu0 0
      %4388 = vmatpush2.bf16.msra.mxu0 0
      %4389 = vmatprep.subr.bf16.mxu0 0
      %4390 = vmatpush2.bf16.msra.mxu0 0
      %4391 = vmatprep.subr.bf16.mxu0 0
      %4392 = vmatpush2.bf16.msra.mxu0 0
      %4393 = vmatprep.subr.bf16.mxu0 0
      %4394 = vmatpush2.bf16.msra.mxu0 0
      %4395 = vmatprep.subr.bf16.mxu0 0
      %4396 = vmatpush2.bf16.msra.mxu0 0
      %4397 = vmatprep.subr.bf16.mxu0 0
      %4398 = vmatpush2.bf16.msra.mxu0 0
      %4399 = vmatprep.subr.bf16.mxu0 0
      %4400 = vmatpush2.bf16.msra.mxu0 0
      %4401 = vmatprep.subr.bf16.mxu0 0
      %4402 = vmatpush2.bf16.msra.mxu0 0
      %4403 = vmatprep.mubr.bf16.mxu0 0
      %4404 = vmatmul.mubr.bf16.gmra.mxu0 %v4348
      %v4405 = vpop.f32.mrf.mxu0
      %v4406 = vadd.f32 0.0, %v4405
      %v4407 = vpop.f32.mrf.mxu0
      %v4408 = vpop.f32.mrf.mxu0
      %v4409 = vadd.f32 0.0, %v4408
      %v4410 = vpop.f32.mrf.mxu0
      %4411 = vmatprep.mubr.bf16.mxu0 0
      %4412 = vmatmul.mubr.bf16.gmra.mxu0 %v4351
      %v4413 = vpop.f32.mrf.mxu0
      %v4414 = vadd.f32 0.0, %v4413
      %v4415 = vpop.f32.mrf.mxu0
      %v4416 = vpop.f32.mrf.mxu0
      %v4417 = vadd.f32 0.0, %v4416
      %v4418 = vpop.f32.mrf.mxu0
      %4419 = vmatprep.mubr.bf16.mxu0 0
      %4420 = vmatmul.mubr.bf16.gmra.mxu0 %v4354
      %v4421 = vpop.f32.mrf.mxu0
      %v4422 = vadd.f32 0.0, %v4421
      %v4423 = vpop.f32.mrf.mxu0
      %v4424 = vpop.f32.mrf.mxu0
      %v4425 = vadd.f32 0.0, %v4424
      %v4426 = vpop.f32.mrf.mxu0
      %4427 = vmatprep.mubr.bf16.mxu0 0
      %4428 = vmatmul.mubr.bf16.gmra.mxu0 %v4357
      %v4429 = vpop.f32.mrf.mxu0
      %v4430 = vadd.f32 0.0, %v4429
      %v4431 = vpop.f32.mrf.mxu0
      %v4432 = vpop.f32.mrf.mxu0
      %v4433 = vadd.f32 0.0, %v4432
      %v4434 = vpop.f32.mrf.mxu0
      %4435 = vmatprep.mubr.bf16.mxu0 0
      %4436 = vmatmul.mubr.bf16.gmra.mxu0 %v4360
      %v4437 = vpop.f32.mrf.mxu0
      %v4438 = vadd.f32 0.0, %v4437
      %v4439 = vpop.f32.mrf.mxu0
      %v4440 = vpop.f32.mrf.mxu0
      %v4441 = vadd.f32 0.0, %v4440
      %v4442 = vpop.f32.mrf.mxu0
      %4443 = vmatprep.mubr.bf16.mxu0 0
      %4444 = vmatmul.mubr.bf16.gmra.mxu0 %v4363
      %v4445 = vpop.f32.mrf.mxu0
      %v4446 = vadd.f32 0.0, %v4445
      %v4447 = vpop.f32.mrf.mxu0
      %v4448 = vpop.f32.mrf.mxu0
      %v4449 = vadd.f32 0.0, %v4448
      %v4450 = vpop.f32.mrf.mxu0
      %4451 = vmatprep.mubr.bf16.mxu0 0
      %4452 = vmatmul.mubr.bf16.gmra.mxu0 %v4366
      %v4453 = vpop.f32.mrf.mxu0
      %v4454 = vadd.f32 0.0, %v4453
      %v4455 = vpop.f32.mrf.mxu0
      %v4456 = vpop.f32.mrf.mxu0
      %v4457 = vadd.f32 0.0, %v4456
      %v4458 = vpop.f32.mrf.mxu0
      %4459 = vmatprep.mubr.bf16.mxu0 0
      %4460 = vmatmul.mubr.bf16.gmra.mxu0 %v4369
      %v4461 = vpop.f32.mrf.mxu0
      %v4462 = vadd.f32 0.0, %v4461
      %v4463 = vpop.f32.mrf.mxu0
      %v4464 = vpop.f32.mrf.mxu0
      %v4465 = vadd.f32 0.0, %v4464
      %v4466 = vpop.f32.mrf.mxu0
      %4467 = vdwg.mxu0
      %4471 = vrot.lane.b32.xlu0 %v1660, 124
      %v4472 = vpop.permute.xlu0 %4471
      %4473 = vrot.lane.b32.xlu0 %v1661, 124
      %v4474 = vpop.permute.xlu0 %4473
      %4475 = vrot.lane.b32.xlu0 %v1662, 124
      %v4476 = vpop.permute.xlu0 %4475
      %v4481 = vsel %vm2704, %v3529, 0
      %v4484 = vsel %vm2704, %v3530, 0
      %v4487 = vsel %vm2704, %v3531, 0
      %v4490 = vsel %vm2704, %v3532, 0
      %v4493 = vsel %vm2704, %v3533, 0
      %v4496 = vsel %vm2704, %v3534, 0
      %v4499 = vsel %vm2704, %v3535, 0
      %v4502 = vsel %vm2704, %v3536, 0
      %4504 = vmatprep.subr.bf16.mxu0 0
      %4505 = vmatpush1.bf16.msra.mxu0 0
      %4506 = vmatprep.subr.bf16.mxu0 0
      %4507 = vmatpush1.bf16.msra.mxu0 0
      %4508 = vmatprep.subr.bf16.mxu0 0
      %4509 = vmatpush1.bf16.msra.mxu0 0
      %4510 = vmatprep.subr.bf16.mxu0 0
      %4511 = vmatpush1.bf16.msra.mxu0 0
      %4512 = vmatprep.subr.bf16.mxu0 0
      %4513 = vmatpush1.bf16.msra.mxu0 0
      %4514 = vmatprep.subr.bf16.mxu0 0
      %4515 = vmatpush1.bf16.msra.mxu0 %v4476
      %4516 = vmatprep.subr.bf16.mxu0 0
      %4517 = vmatpush1.bf16.msra.mxu0 %v4474
      %4518 = vmatprep.subr.bf16.mxu0 0
      %4519 = vmatpush1.bf16.msra.mxu0 %v4472
      %4520 = vmatprep.subr.bf16.mxu0 0
      %4521 = vmatpush2.bf16.msra.mxu0 0
      %4522 = vmatprep.subr.bf16.mxu0 0
      %4523 = vmatpush2.bf16.msra.mxu0 0
      %4524 = vmatprep.subr.bf16.mxu0 0
      %4525 = vmatpush2.bf16.msra.mxu0 0
      %4526 = vmatprep.subr.bf16.mxu0 0
      %4527 = vmatpush2.bf16.msra.mxu0 0
      %4528 = vmatprep.subr.bf16.mxu0 0
      %4529 = vmatpush2.bf16.msra.mxu0 0
      %4530 = vmatprep.subr.bf16.mxu0 0
      %4531 = vmatpush2.bf16.msra.mxu0 0
      %4532 = vmatprep.subr.bf16.mxu0 0
      %4533 = vmatpush2.bf16.msra.mxu0 0
      %4534 = vmatprep.subr.bf16.mxu0 0
      %4535 = vmatpush2.bf16.msra.mxu0 0
      %4536 = vmatprep.mubr.bf16.mxu0 0
      %4537 = vmatmul.mubr.bf16.gmra.mxu0 %v4481
      %v4538 = vpop.f32.mrf.mxu0
      %v4539 = vadd.f32 0.0, %v4538
      %v4540 = vpop.f32.mrf.mxu0
      %v4541 = vpop.f32.mrf.mxu0
      %v4542 = vadd.f32 0.0, %v4541
      %v4543 = vpop.f32.mrf.mxu0
      %4544 = vmatprep.mubr.bf16.mxu0 0
      %4545 = vmatmul.mubr.bf16.gmra.mxu0 %v4484
      %v4546 = vpop.f32.mrf.mxu0
      %v4547 = vadd.f32 0.0, %v4546
      %v4548 = vpop.f32.mrf.mxu0
      %v4549 = vpop.f32.mrf.mxu0
      %v4550 = vadd.f32 0.0, %v4549
      %v4551 = vpop.f32.mrf.mxu0
      %4552 = vmatprep.mubr.bf16.mxu0 0
      %4553 = vmatmul.mubr.bf16.gmra.mxu0 %v4487
      %v4554 = vpop.f32.mrf.mxu0
      %v4555 = vadd.f32 0.0, %v4554
      %v4556 = vpop.f32.mrf.mxu0
      %v4557 = vpop.f32.mrf.mxu0
      %v4558 = vadd.f32 0.0, %v4557
      %v4559 = vpop.f32.mrf.mxu0
      %4560 = vmatprep.mubr.bf16.mxu0 0
      %4561 = vmatmul.mubr.bf16.gmra.mxu0 %v4490
      %v4562 = vpop.f32.mrf.mxu0
      %v4563 = vadd.f32 0.0, %v4562
      %v4564 = vpop.f32.mrf.mxu0
      %v4565 = vpop.f32.mrf.mxu0
      %v4566 = vadd.f32 0.0, %v4565
      %v4567 = vpop.f32.mrf.mxu0
      %4568 = vmatprep.mubr.bf16.mxu0 0
      %4569 = vmatmul.mubr.bf16.gmra.mxu0 %v4493
      %v4570 = vpop.f32.mrf.mxu0
      %v4571 = vadd.f32 0.0, %v4570
      %v4572 = vpop.f32.mrf.mxu0
      %v4573 = vpop.f32.mrf.mxu0
      %v4574 = vadd.f32 0.0, %v4573
      %v4575 = vpop.f32.mrf.mxu0
      %4576 = vmatprep.mubr.bf16.mxu0 0
      %4577 = vmatmul.mubr.bf16.gmra.mxu0 %v4496
      %v4578 = vpop.f32.mrf.mxu0
      %v4579 = vadd.f32 0.0, %v4578
      %v4580 = vpop.f32.mrf.mxu0
      %v4581 = vpop.f32.mrf.mxu0
      %v4582 = vadd.f32 0.0, %v4581
      %v4583 = vpop.f32.mrf.mxu0
      %4584 = vmatprep.mubr.bf16.mxu0 0
      %4585 = vmatmul.mubr.bf16.gmra.mxu0 %v4499
      %v4586 = vpop.f32.mrf.mxu0
      %v4587 = vadd.f32 0.0, %v4586
      %v4588 = vpop.f32.mrf.mxu0
      %v4589 = vpop.f32.mrf.mxu0
      %v4590 = vadd.f32 0.0, %v4589
      %v4591 = vpop.f32.mrf.mxu0
      %4592 = vmatprep.mubr.bf16.mxu0 0
      %4593 = vmatmul.mubr.bf16.gmra.mxu0 %v4502
      %v4594 = vpop.f32.mrf.mxu0
      %v4595 = vadd.f32 0.0, %v4594
      %v4596 = vpop.f32.mrf.mxu0
      %v4597 = vpop.f32.mrf.mxu0
      %v4598 = vadd.f32 0.0, %v4597
      %v4599 = vpop.f32.mrf.mxu0
      %4600 = vdwg.mxu0
      %v4601 = vrcp.pop %v3608
      %v4602 = vrcp.pop %v3611
      %v4603 = vrcp.pop %v3616
      %v4604 = vrcp.pop %v3619
      %v4605 = vrcp.pop %v3624
      %v4606 = vrcp.pop %v3627
      %v4607 = vrcp.pop %v3632
      %v4608 = vrcp.pop %v3635
      %v4609 = vrcp.pop %v3640
      %v4610 = vrcp.pop %v3643
      %v4611 = vrcp.pop %v3648
      %v4612 = vrcp.pop %v3651
      %v4613 = vrcp.pop %v3656
      %v4614 = vrcp.pop %v3659
      %v4615 = vrcp.pop %v3664
      %v4616 = vrcp.pop %v3667
      %v4617 = vrcp.pop %v3741
      %v4618 = vrcp.pop %v3744
      %v4619 = vrcp.pop %v3749
      %v4620 = vrcp.pop %v3752
      %v4621 = vrcp.pop %v3757
      %v4622 = vrcp.pop %v3760
      %v4623 = vrcp.pop %v3765
      %v4624 = vrcp.pop %v3768
      %v4625 = vrcp.pop %v3773
      %v4626 = vrcp.pop %v3776
      %v4627 = vrcp.pop %v3781
      %v4628 = vrcp.pop %v3784
      %v4629 = vrcp.pop %v3789
      %v4630 = vrcp.pop %v3792
      %v4631 = vrcp.pop %v3797
      %v4632 = vrcp.pop %v3800
      %v4633 = vrcp.pop %v3874
      %v4634 = vrcp.pop %v3877
      %v4635 = vrcp.pop %v3882
      %v4636 = vrcp.pop %v3885
      %v4637 = vrcp.pop %v3890
      %v4638 = vrcp.pop %v3893
      %v4639 = vrcp.pop %v3898
      %v4640 = vrcp.pop %v3901
      %v4641 = vrcp.pop %v3906
      %v4642 = vrcp.pop %v3909
      %v4643 = vrcp.pop %v3914
      %v4644 = vrcp.pop %v3917
      %v4645 = vrcp.pop %v3922
      %v4646 = vrcp.pop %v3925
      %v4647 = vrcp.pop %v3930
      %v4648 = vrcp.pop %v3933
      %v4649 = vrcp.pop %v4007
      %v4650 = vrcp.pop %v4010
      %v4651 = vrcp.pop %v4015
      %v4652 = vrcp.pop %v4018
      %v4653 = vrcp.pop %v4023
      %v4654 = vrcp.pop %v4026
      %v4655 = vrcp.pop %v4031
      %v4656 = vrcp.pop %v4034
      %v4657 = vrcp.pop %v4039
      %v4658 = vrcp.pop %v4042
      %v4659 = vrcp.pop %v4047
      %v4660 = vrcp.pop %v4050
      %v4661 = vrcp.pop %v4055
      %v4662 = vrcp.pop %v4058
      %v4663 = vrcp.pop %v4063
      %v4664 = vrcp.pop %v4066
      %v4665 = vrcp.pop %v4140
      %v4666 = vrcp.pop %v4143
      %v4667 = vrcp.pop %v4148
      %v4668 = vrcp.pop %v4151
      %v4669 = vrcp.pop %v4156
      %v4670 = vrcp.pop %v4159
      %v4671 = vrcp.pop %v4164
      %v4672 = vrcp.pop %v4167
      %v4673 = vrcp.pop %v4172
      %v4674 = vrcp.pop %v4175
      %v4675 = vrcp.pop %v4180
      %v4676 = vrcp.pop %v4183
      %v4677 = vrcp.pop %v4188
      %v4678 = vrcp.pop %v4191
      %v4679 = vrcp.pop %v4196
      %v4680 = vrcp.pop %v4199
      %v4681 = vrcp.pop %v4273
      %v4682 = vrcp.pop %v4276
      %v4683 = vrcp.pop %v4281
      %v4684 = vrcp.pop %v4284
      %v4685 = vrcp.pop %v4289
      %v4686 = vrcp.pop %v4292
      %v4687 = vrcp.pop %v4297
      %v4688 = vrcp.pop %v4300
      %v4689 = vrcp.pop %v4305
      %v4690 = vrcp.pop %v4308
      %v4691 = vrcp.pop %v4313
      %v4692 = vrcp.pop %v4316
      %v4693 = vrcp.pop %v4321
      %v4694 = vrcp.pop %v4324
      %v4695 = vrcp.pop %v4329
      %v4696 = vrcp.pop %v4332
      %v4697 = vrcp.pop %v4406
      %v4698 = vrcp.pop %v4409
      %v4699 = vrcp.pop %v4414
      %v4700 = vrcp.pop %v4417
      %v4701 = vrcp.pop %v4422
      %v4702 = vrcp.pop %v4425
      %v4703 = vrcp.pop %v4430
      %v4704 = vrcp.pop %v4433
      %v4705 = vrcp.pop %v4438
      %v4706 = vrcp.pop %v4441
      %v4707 = vrcp.pop %v4446
      %v4708 = vrcp.pop %v4449
      %v4709 = vrcp.pop %v4454
      %v4710 = vrcp.pop %v4457
      %v4711 = vrcp.pop %v4462
      %v4712 = vrcp.pop %v4465
      %v4713 = vrcp.pop %v4539
      %v4714 = vrcp.pop %v4542
      %v4715 = vrcp.pop %v4547
      %v4716 = vrcp.pop %v4550
      %v4717 = vrcp.pop %v4555
      %v4718 = vrcp.pop %v4558
      %v4719 = vrcp.pop %v4563
      %v4720 = vrcp.pop %v4566
      %v4721 = vrcp.pop %v4571
      %v4722 = vrcp.pop %v4574
      %v4723 = vrcp.pop %v4579
      %v4724 = vrcp.pop %v4582
      %v4725 = vrcp.pop %v4587
      %v4726 = vrcp.pop %v4590
      %v4727 = vrcp.pop %v4595
      %v4728 = vrcp.pop %v4598
      %4730 = vset.pattern.permute.xlu0 4
      %4731 = vperm.xlu0 %4730, %v4601
      %v4732 = vpop.permute.xlu0 %4731
      %4735 = vset.pattern.permute.xlu0 4
      %4736 = vperm.xlu0 %4735, %v4602
      %v4737 = vpop.permute.xlu0 %4736
      %4740 = vset.pattern.permute.xlu0 4
      %4741 = vperm.xlu0 %4740, %v4603
      %v4742 = vpop.permute.xlu0 %4741
      %4745 = vset.pattern.permute.xlu0 4
      %4746 = vperm.xlu0 %4745, %v4604
      %v4747 = vpop.permute.xlu0 %4746
      %4750 = vset.pattern.permute.xlu0 4
      %4751 = vperm.xlu0 %4750, %v4605
      %v4752 = vpop.permute.xlu0 %4751
      %4755 = vset.pattern.permute.xlu0 4
      %4756 = vperm.xlu0 %4755, %v4606
      %v4757 = vpop.permute.xlu0 %4756
      %4760 = vset.pattern.permute.xlu0 4
      %4761 = vperm.xlu0 %4760, %v4607
      %v4762 = vpop.permute.xlu0 %4761
      %4765 = vset.pattern.permute.xlu0 4
      %4766 = vperm.xlu0 %4765, %v4608
      %v4767 = vpop.permute.xlu0 %4766
      %4770 = vset.pattern.permute.xlu0 4
      %4771 = vperm.xlu0 %4770, %v4609
      %v4772 = vpop.permute.xlu0 %4771
      %4775 = vset.pattern.permute.xlu0 4
      %4776 = vperm.xlu0 %4775, %v4610
      %v4777 = vpop.permute.xlu0 %4776
      %4780 = vset.pattern.permute.xlu0 4
      %4781 = vperm.xlu0 %4780, %v4611
      %v4782 = vpop.permute.xlu0 %4781
      %4785 = vset.pattern.permute.xlu0 4
      %4786 = vperm.xlu0 %4785, %v4612
      %v4787 = vpop.permute.xlu0 %4786
      %4790 = vset.pattern.permute.xlu0 4
      %4791 = vperm.xlu0 %4790, %v4613
      %v4792 = vpop.permute.xlu0 %4791
      %4795 = vset.pattern.permute.xlu0 4
      %4796 = vperm.xlu0 %4795, %v4614
      %v4797 = vpop.permute.xlu0 %4796
      %4800 = vset.pattern.permute.xlu0 4
      %4801 = vperm.xlu0 %4800, %v4615
      %v4802 = vpop.permute.xlu0 %4801
      %4805 = vset.pattern.permute.xlu0 4
      %4806 = vperm.xlu0 %4805, %v4616
      %v4807 = vpop.permute.xlu0 %4806
      %4810 = vset.pattern.permute.xlu0 4
      %4811 = vperm.xlu0 %4810, %v4617
      %v4812 = vpop.permute.xlu0 %4811
      %4815 = vset.pattern.permute.xlu0 4
      %4816 = vperm.xlu0 %4815, %v4618
      %v4817 = vpop.permute.xlu0 %4816
      %4820 = vset.pattern.permute.xlu0 4
      %4821 = vperm.xlu0 %4820, %v4619
      %v4822 = vpop.permute.xlu0 %4821
      %4825 = vset.pattern.permute.xlu0 4
      %4826 = vperm.xlu0 %4825, %v4620
      %v4827 = vpop.permute.xlu0 %4826
      %4830 = vset.pattern.permute.xlu0 4
      %4831 = vperm.xlu0 %4830, %v4621
      %v4832 = vpop.permute.xlu0 %4831
      %4835 = vset.pattern.permute.xlu0 4
      %4836 = vperm.xlu0 %4835, %v4622
      %v4837 = vpop.permute.xlu0 %4836
      %4840 = vset.pattern.permute.xlu0 4
      %4841 = vperm.xlu0 %4840, %v4623
      %v4842 = vpop.permute.xlu0 %4841
      %4845 = vset.pattern.permute.xlu0 4
      %4846 = vperm.xlu0 %4845, %v4624
      %v4847 = vpop.permute.xlu0 %4846
      %4850 = vset.pattern.permute.xlu0 4
      %4851 = vperm.xlu0 %4850, %v4625
      %v4852 = vpop.permute.xlu0 %4851
      %4855 = vset.pattern.permute.xlu0 4
      %4856 = vperm.xlu0 %4855, %v4626
      %v4857 = vpop.permute.xlu0 %4856
      %4860 = vset.pattern.permute.xlu0 4
      %4861 = vperm.xlu0 %4860, %v4627
      %v4862 = vpop.permute.xlu0 %4861
      %4865 = vset.pattern.permute.xlu0 4
      %4866 = vperm.xlu0 %4865, %v4628
      %v4867 = vpop.permute.xlu0 %4866
      %4870 = vset.pattern.permute.xlu0 4
      %4871 = vperm.xlu0 %4870, %v4629
      %v4872 = vpop.permute.xlu0 %4871
      %4875 = vset.pattern.permute.xlu0 4
      %4876 = vperm.xlu0 %4875, %v4630
      %v4877 = vpop.permute.xlu0 %4876
      %4880 = vset.pattern.permute.xlu0 4
      %4881 = vperm.xlu0 %4880, %v4631
      %v4882 = vpop.permute.xlu0 %4881
      %4885 = vset.pattern.permute.xlu0 4
      %4886 = vperm.xlu0 %4885, %v4632
      %v4887 = vpop.permute.xlu0 %4886
      %4890 = vset.pattern.permute.xlu0 4
      %4891 = vperm.xlu0 %4890, %v4633
      %v4892 = vpop.permute.xlu0 %4891
      %4895 = vset.pattern.permute.xlu0 4
      %4896 = vperm.xlu0 %4895, %v4634
      %v4897 = vpop.permute.xlu0 %4896
      %4900 = vset.pattern.permute.xlu0 4
      %4901 = vperm.xlu0 %4900, %v4635
      %v4902 = vpop.permute.xlu0 %4901
      %4905 = vset.pattern.permute.xlu0 4
      %4906 = vperm.xlu0 %4905, %v4636
      %v4907 = vpop.permute.xlu0 %4906
      %4910 = vset.pattern.permute.xlu0 4
      %4911 = vperm.xlu0 %4910, %v4637
      %v4912 = vpop.permute.xlu0 %4911
      %4915 = vset.pattern.permute.xlu0 4
      %4916 = vperm.xlu0 %4915, %v4638
      %v4917 = vpop.permute.xlu0 %4916
      %4920 = vset.pattern.permute.xlu0 4
      %4921 = vperm.xlu0 %4920, %v4639
      %v4922 = vpop.permute.xlu0 %4921
      %4925 = vset.pattern.permute.xlu0 4
      %4926 = vperm.xlu0 %4925, %v4640
      %v4927 = vpop.permute.xlu0 %4926
      %4930 = vset.pattern.permute.xlu0 4
      %4931 = vperm.xlu0 %4930, %v4641
      %v4932 = vpop.permute.xlu0 %4931
      %4935 = vset.pattern.permute.xlu0 4
      %4936 = vperm.xlu0 %4935, %v4642
      %v4937 = vpop.permute.xlu0 %4936
      %4940 = vset.pattern.permute.xlu0 4
      %4941 = vperm.xlu0 %4940, %v4643
      %v4942 = vpop.permute.xlu0 %4941
      %4945 = vset.pattern.permute.xlu0 4
      %4946 = vperm.xlu0 %4945, %v4644
      %v4947 = vpop.permute.xlu0 %4946
      %4950 = vset.pattern.permute.xlu0 4
      %4951 = vperm.xlu0 %4950, %v4645
      %v4952 = vpop.permute.xlu0 %4951
      %4955 = vset.pattern.permute.xlu0 4
      %4956 = vperm.xlu0 %4955, %v4646
      %v4957 = vpop.permute.xlu0 %4956
      %4960 = vset.pattern.permute.xlu0 4
      %4961 = vperm.xlu0 %4960, %v4647
      %v4962 = vpop.permute.xlu0 %4961
      %4965 = vset.pattern.permute.xlu0 4
      %4966 = vperm.xlu0 %4965, %v4648
      %v4967 = vpop.permute.xlu0 %4966
      %4970 = vset.pattern.permute.xlu0 4
      %4971 = vperm.xlu0 %4970, %v4649
      %v4972 = vpop.permute.xlu0 %4971
      %4975 = vset.pattern.permute.xlu0 4
      %4976 = vperm.xlu0 %4975, %v4650
      %v4977 = vpop.permute.xlu0 %4976
      %4980 = vset.pattern.permute.xlu0 4
      %4981 = vperm.xlu0 %4980, %v4651
      %v4982 = vpop.permute.xlu0 %4981
      %4985 = vset.pattern.permute.xlu0 4
      %4986 = vperm.xlu0 %4985, %v4652
      %v4987 = vpop.permute.xlu0 %4986
      %4990 = vset.pattern.permute.xlu0 4
      %4991 = vperm.xlu0 %4990, %v4653
      %v4992 = vpop.permute.xlu0 %4991
      %4995 = vset.pattern.permute.xlu0 4
      %4996 = vperm.xlu0 %4995, %v4654
      %v4997 = vpop.permute.xlu0 %4996
      %5000 = vset.pattern.permute.xlu0 4
      %5001 = vperm.xlu0 %5000, %v4655
      %v5002 = vpop.permute.xlu0 %5001
      %5005 = vset.pattern.permute.xlu0 4
      %5006 = vperm.xlu0 %5005, %v4656
      %v5007 = vpop.permute.xlu0 %5006
      %5010 = vset.pattern.permute.xlu0 4
      %5011 = vperm.xlu0 %5010, %v4657
      %v5012 = vpop.permute.xlu0 %5011
      %5015 = vset.pattern.permute.xlu0 4
      %5016 = vperm.xlu0 %5015, %v4658
      %v5017 = vpop.permute.xlu0 %5016
      %5020 = vset.pattern.permute.xlu0 4
      %5021 = vperm.xlu0 %5020, %v4659
      %v5022 = vpop.permute.xlu0 %5021
      %5025 = vset.pattern.permute.xlu0 4
      %5026 = vperm.xlu0 %5025, %v4660
      %v5027 = vpop.permute.xlu0 %5026
      %5030 = vset.pattern.permute.xlu0 4
      %5031 = vperm.xlu0 %5030, %v4661
      %v5032 = vpop.permute.xlu0 %5031
      %5035 = vset.pattern.permute.xlu0 4
      %5036 = vperm.xlu0 %5035, %v4662
      %v5037 = vpop.permute.xlu0 %5036
      %5040 = vset.pattern.permute.xlu0 4
      %5041 = vperm.xlu0 %5040, %v4663
      %v5042 = vpop.permute.xlu0 %5041
      %5045 = vset.pattern.permute.xlu0 4
      %5046 = vperm.xlu0 %5045, %v4664
      %v5047 = vpop.permute.xlu0 %5046
      %5050 = vset.pattern.permute.xlu0 4
      %5051 = vperm.xlu0 %5050, %v4665
      %v5052 = vpop.permute.xlu0 %5051
      %5055 = vset.pattern.permute.xlu0 4
      %5056 = vperm.xlu0 %5055, %v4666
      %v5057 = vpop.permute.xlu0 %5056
      %5060 = vset.pattern.permute.xlu0 4
      %5061 = vperm.xlu0 %5060, %v4667
      %v5062 = vpop.permute.xlu0 %5061
      %5065 = vset.pattern.permute.xlu0 4
      %5066 = vperm.xlu0 %5065, %v4668
      %v5067 = vpop.permute.xlu0 %5066
      %5070 = vset.pattern.permute.xlu0 4
      %5071 = vperm.xlu0 %5070, %v4669
      %v5072 = vpop.permute.xlu0 %5071
      %5075 = vset.pattern.permute.xlu0 4
      %5076 = vperm.xlu0 %5075, %v4670
      %v5077 = vpop.permute.xlu0 %5076
      %5080 = vset.pattern.permute.xlu0 4
      %5081 = vperm.xlu0 %5080, %v4671
      %v5082 = vpop.permute.xlu0 %5081
      %5085 = vset.pattern.permute.xlu0 4
      %5086 = vperm.xlu0 %5085, %v4672
      %v5087 = vpop.permute.xlu0 %5086
      %5090 = vset.pattern.permute.xlu0 4
      %5091 = vperm.xlu0 %5090, %v4673
      %v5092 = vpop.permute.xlu0 %5091
      %5095 = vset.pattern.permute.xlu0 4
      %5096 = vperm.xlu0 %5095, %v4674
      %v5097 = vpop.permute.xlu0 %5096
      %5100 = vset.pattern.permute.xlu0 4
      %5101 = vperm.xlu0 %5100, %v4675
      %v5102 = vpop.permute.xlu0 %5101
      %5105 = vset.pattern.permute.xlu0 4
      %5106 = vperm.xlu0 %5105, %v4676
      %v5107 = vpop.permute.xlu0 %5106
      %5110 = vset.pattern.permute.xlu0 4
      %5111 = vperm.xlu0 %5110, %v4677
      %v5112 = vpop.permute.xlu0 %5111
      %5115 = vset.pattern.permute.xlu0 4
      %5116 = vperm.xlu0 %5115, %v4678
      %v5117 = vpop.permute.xlu0 %5116
      %5120 = vset.pattern.permute.xlu0 4
      %5121 = vperm.xlu0 %5120, %v4679
      %v5122 = vpop.permute.xlu0 %5121
      %5125 = vset.pattern.permute.xlu0 4
      %5126 = vperm.xlu0 %5125, %v4680
      %v5127 = vpop.permute.xlu0 %5126
      %5130 = vset.pattern.permute.xlu0 4
      %5131 = vperm.xlu0 %5130, %v4681
      %v5132 = vpop.permute.xlu0 %5131
      %5135 = vset.pattern.permute.xlu0 4
      %5136 = vperm.xlu0 %5135, %v4682
      %v5137 = vpop.permute.xlu0 %5136
      %5140 = vset.pattern.permute.xlu0 4
      %5141 = vperm.xlu0 %5140, %v4683
      %v5142 = vpop.permute.xlu0 %5141
      %5145 = vset.pattern.permute.xlu0 4
      %5146 = vperm.xlu0 %5145, %v4684
      %v5147 = vpop.permute.xlu0 %5146
      %5150 = vset.pattern.permute.xlu0 4
      %5151 = vperm.xlu0 %5150, %v4685
      %v5152 = vpop.permute.xlu0 %5151
      %5155 = vset.pattern.permute.xlu0 4
      %5156 = vperm.xlu0 %5155, %v4686
      %v5157 = vpop.permute.xlu0 %5156
      %5160 = vset.pattern.permute.xlu0 4
      %5161 = vperm.xlu0 %5160, %v4687
      %v5162 = vpop.permute.xlu0 %5161
      %5165 = vset.pattern.permute.xlu0 4
      %5166 = vperm.xlu0 %5165, %v4688
      %v5167 = vpop.permute.xlu0 %5166
      %5170 = vset.pattern.permute.xlu0 4
      %5171 = vperm.xlu0 %5170, %v4689
      %v5172 = vpop.permute.xlu0 %5171
      %5175 = vset.pattern.permute.xlu0 4
      %5176 = vperm.xlu0 %5175, %v4690
      %v5177 = vpop.permute.xlu0 %5176
      %5180 = vset.pattern.permute.xlu0 4
      %5181 = vperm.xlu0 %5180, %v4691
      %v5182 = vpop.permute.xlu0 %5181
      %5185 = vset.pattern.permute.xlu0 4
      %5186 = vperm.xlu0 %5185, %v4692
      %v5187 = vpop.permute.xlu0 %5186
      %5190 = vset.pattern.permute.xlu0 4
      %5191 = vperm.xlu0 %5190, %v4693
      %v5192 = vpop.permute.xlu0 %5191
      %5195 = vset.pattern.permute.xlu0 4
      %5196 = vperm.xlu0 %5195, %v4694
      %v5197 = vpop.permute.xlu0 %5196
      %5200 = vset.pattern.permute.xlu0 4
      %5201 = vperm.xlu0 %5200, %v4695
      %v5202 = vpop.permute.xlu0 %5201
      %5205 = vset.pattern.permute.xlu0 4
      %5206 = vperm.xlu0 %5205, %v4696
      %v5207 = vpop.permute.xlu0 %5206
      %5210 = vset.pattern.permute.xlu0 4
      %5211 = vperm.xlu0 %5210, %v4697
      %v5212 = vpop.permute.xlu0 %5211
      %5215 = vset.pattern.permute.xlu0 4
      %5216 = vperm.xlu0 %5215, %v4698
      %v5217 = vpop.permute.xlu0 %5216
      %5220 = vset.pattern.permute.xlu0 4
      %5221 = vperm.xlu0 %5220, %v4699
      %v5222 = vpop.permute.xlu0 %5221
      %5225 = vset.pattern.permute.xlu0 4
      %5226 = vperm.xlu0 %5225, %v4700
      %v5227 = vpop.permute.xlu0 %5226
      %5230 = vset.pattern.permute.xlu0 4
      %5231 = vperm.xlu0 %5230, %v4701
      %v5232 = vpop.permute.xlu0 %5231
      %5235 = vset.pattern.permute.xlu0 4
      %5236 = vperm.xlu0 %5235, %v4702
      %v5237 = vpop.permute.xlu0 %5236
      %5240 = vset.pattern.permute.xlu0 4
      %5241 = vperm.xlu0 %5240, %v4703
      %v5242 = vpop.permute.xlu0 %5241
      %5245 = vset.pattern.permute.xlu0 4
      %5246 = vperm.xlu0 %5245, %v4704
      %v5247 = vpop.permute.xlu0 %5246
      %5250 = vset.pattern.permute.xlu0 4
      %5251 = vperm.xlu0 %5250, %v4705
      %v5252 = vpop.permute.xlu0 %5251
      %5255 = vset.pattern.permute.xlu0 4
      %5256 = vperm.xlu0 %5255, %v4706
      %v5257 = vpop.permute.xlu0 %5256
      %5260 = vset.pattern.permute.xlu0 4
      %5261 = vperm.xlu0 %5260, %v4707
      %v5262 = vpop.permute.xlu0 %5261
      %5265 = vset.pattern.permute.xlu0 4
      %5266 = vperm.xlu0 %5265, %v4708
      %v5267 = vpop.permute.xlu0 %5266
      %5270 = vset.pattern.permute.xlu0 4
      %5271 = vperm.xlu0 %5270, %v4709
      %v5272 = vpop.permute.xlu0 %5271
      %5275 = vset.pattern.permute.xlu0 4
      %5276 = vperm.xlu0 %5275, %v4710
      %v5277 = vpop.permute.xlu0 %5276
      %5280 = vset.pattern.permute.xlu0 4
      %5281 = vperm.xlu0 %5280, %v4711
      %v5282 = vpop.permute.xlu0 %5281
      %5285 = vset.pattern.permute.xlu0 4
      %5286 = vperm.xlu0 %5285, %v4712
      %v5287 = vpop.permute.xlu0 %5286
      %5290 = vset.pattern.permute.xlu0 4
      %5291 = vperm.xlu0 %5290, %v4713
      %v5292 = vpop.permute.xlu0 %5291
      %5295 = vset.pattern.permute.xlu0 4
      %5296 = vperm.xlu0 %5295, %v4714
      %v5297 = vpop.permute.xlu0 %5296
      %5300 = vset.pattern.permute.xlu0 4
      %5301 = vperm.xlu0 %5300, %v4715
      %v5302 = vpop.permute.xlu0 %5301
      %5305 = vset.pattern.permute.xlu0 4
      %5306 = vperm.xlu0 %5305, %v4716
      %v5307 = vpop.permute.xlu0 %5306
      %5310 = vset.pattern.permute.xlu0 4
      %5311 = vperm.xlu0 %5310, %v4717
      %v5312 = vpop.permute.xlu0 %5311
      %5315 = vset.pattern.permute.xlu0 4
      %5316 = vperm.xlu0 %5315, %v4718
      %v5317 = vpop.permute.xlu0 %5316
      %5320 = vset.pattern.permute.xlu0 4
      %5321 = vperm.xlu0 %5320, %v4719
      %v5322 = vpop.permute.xlu0 %5321
      %5325 = vset.pattern.permute.xlu0 4
      %5326 = vperm.xlu0 %5325, %v4720
      %v5327 = vpop.permute.xlu0 %5326
      %5330 = vset.pattern.permute.xlu0 4
      %5331 = vperm.xlu0 %5330, %v4721
      %v5332 = vpop.permute.xlu0 %5331
      %5335 = vset.pattern.permute.xlu0 4
      %5336 = vperm.xlu0 %5335, %v4722
      %v5337 = vpop.permute.xlu0 %5336
      %5340 = vset.pattern.permute.xlu0 4
      %5341 = vperm.xlu0 %5340, %v4723
      %v5342 = vpop.permute.xlu0 %5341
      %5345 = vset.pattern.permute.xlu0 4
      %5346 = vperm.xlu0 %5345, %v4724
      %v5347 = vpop.permute.xlu0 %5346
      %5350 = vset.pattern.permute.xlu0 4
      %5351 = vperm.xlu0 %5350, %v4725
      %v5352 = vpop.permute.xlu0 %5351
      %5355 = vset.pattern.permute.xlu0 4
      %5356 = vperm.xlu0 %5355, %v4726
      %v5357 = vpop.permute.xlu0 %5356
      %5360 = vset.pattern.permute.xlu0 4
      %5361 = vperm.xlu0 %5360, %v4727
      %v5362 = vpop.permute.xlu0 %5361
      %5365 = vset.pattern.permute.xlu0 4
      %5366 = vperm.xlu0 %5365, %v4728
      %v5367 = vpop.permute.xlu0 %5366
      %v5369 = vmul.f32 %v3608, %v4732
      %v5370 = vmul.f32 %v3611, %v4737
      %v5371 = vmul.f32 %v3616, %v4742
      %v5372 = vmul.f32 %v3619, %v4747
      %v5373 = vmul.f32 %v3624, %v4752
      %v5374 = vmul.f32 %v3627, %v4757
      %v5375 = vmul.f32 %v3632, %v4762
      %v5376 = vmul.f32 %v3635, %v4767
      %v5377 = vmul.f32 %v3640, %v4772
      %v5378 = vmul.f32 %v3643, %v4777
      %v5379 = vmul.f32 %v3648, %v4782
      %v5380 = vmul.f32 %v3651, %v4787
      %v5381 = vmul.f32 %v3656, %v4792
      %v5382 = vmul.f32 %v3659, %v4797
      %v5383 = vmul.f32 %v3664, %v4802
      %v5384 = vmul.f32 %v3667, %v4807
      %v5385 = vmul.f32 %v3741, %v4812
      %v5386 = vmul.f32 %v3744, %v4817
      %v5387 = vmul.f32 %v3749, %v4822
      %v5388 = vmul.f32 %v3752, %v4827
      %v5389 = vmul.f32 %v3757, %v4832
      %v5390 = vmul.f32 %v3760, %v4837
      %v5391 = vmul.f32 %v3765, %v4842
      %v5392 = vmul.f32 %v3768, %v4847
      %v5393 = vmul.f32 %v3773, %v4852
      %v5394 = vmul.f32 %v3776, %v4857
      %v5395 = vmul.f32 %v3781, %v4862
      %v5396 = vmul.f32 %v3784, %v4867
      %v5397 = vmul.f32 %v3789, %v4872
      %v5398 = vmul.f32 %v3792, %v4877
      %v5399 = vmul.f32 %v3797, %v4882
      %v5400 = vmul.f32 %v3800, %v4887
      %v5401 = vmul.f32 %v3874, %v4892
      %v5402 = vmul.f32 %v3877, %v4897
      %v5403 = vmul.f32 %v3882, %v4902
      %v5404 = vmul.f32 %v3885, %v4907
      %v5405 = vmul.f32 %v3890, %v4912
      %v5406 = vmul.f32 %v3893, %v4917
      %v5407 = vmul.f32 %v3898, %v4922
      %v5408 = vmul.f32 %v3901, %v4927
      %v5409 = vmul.f32 %v3906, %v4932
      %v5410 = vmul.f32 %v3909, %v4937
      %v5411 = vmul.f32 %v3914, %v4942
      %v5412 = vmul.f32 %v3917, %v4947
      %v5413 = vmul.f32 %v3922, %v4952
      %v5414 = vmul.f32 %v3925, %v4957
      %v5415 = vmul.f32 %v3930, %v4962
      %v5416 = vmul.f32 %v3933, %v4967
      %v5417 = vmul.f32 %v4007, %v4972
      %v5418 = vmul.f32 %v4010, %v4977
      %v5419 = vmul.f32 %v4015, %v4982
      %v5420 = vmul.f32 %v4018, %v4987
      %v5421 = vmul.f32 %v4023, %v4992
      %v5422 = vmul.f32 %v4026, %v4997
      %v5423 = vmul.f32 %v4031, %v5002
      %v5424 = vmul.f32 %v4034, %v5007
      %v5425 = vmul.f32 %v4039, %v5012
      %v5426 = vmul.f32 %v4042, %v5017
      %v5427 = vmul.f32 %v4047, %v5022
      %v5428 = vmul.f32 %v4050, %v5027
      %v5429 = vmul.f32 %v4055, %v5032
      %v5430 = vmul.f32 %v4058, %v5037
      %v5431 = vmul.f32 %v4063, %v5042
      %v5432 = vmul.f32 %v4066, %v5047
      %v5433 = vmul.f32 %v4140, %v5052
      %v5434 = vmul.f32 %v4143, %v5057
      %v5435 = vmul.f32 %v4148, %v5062
      %v5436 = vmul.f32 %v4151, %v5067
      %v5437 = vmul.f32 %v4156, %v5072
      %v5438 = vmul.f32 %v4159, %v5077
      %v5439 = vmul.f32 %v4164, %v5082
      %v5440 = vmul.f32 %v4167, %v5087
      %v5441 = vmul.f32 %v4172, %v5092
      %v5442 = vmul.f32 %v4175, %v5097
      %v5443 = vmul.f32 %v4180, %v5102
      %v5444 = vmul.f32 %v4183, %v5107
      %v5445 = vmul.f32 %v4188, %v5112
      %v5446 = vmul.f32 %v4191, %v5117
      %v5447 = vmul.f32 %v4196, %v5122
      %v5448 = vmul.f32 %v4199, %v5127
      %v5449 = vmul.f32 %v4273, %v5132
      %v5450 = vmul.f32 %v4276, %v5137
      %v5451 = vmul.f32 %v4281, %v5142
      %v5452 = vmul.f32 %v4284, %v5147
      %v5453 = vmul.f32 %v4289, %v5152
      %v5454 = vmul.f32 %v4292, %v5157
      %v5455 = vmul.f32 %v4297, %v5162
      %v5456 = vmul.f32 %v4300, %v5167
      %v5457 = vmul.f32 %v4305, %v5172
      %v5458 = vmul.f32 %v4308, %v5177
      %v5459 = vmul.f32 %v4313, %v5182
      %v5460 = vmul.f32 %v4316, %v5187
      %v5461 = vmul.f32 %v4321, %v5192
      %v5462 = vmul.f32 %v4324, %v5197
      %v5463 = vmul.f32 %v4329, %v5202
      %v5464 = vmul.f32 %v4332, %v5207
      %v5465 = vmul.f32 %v4406, %v5212
      %v5466 = vmul.f32 %v4409, %v5217
      %v5467 = vmul.f32 %v4414, %v5222
      %v5468 = vmul.f32 %v4417, %v5227
      %v5469 = vmul.f32 %v4422, %v5232
      %v5470 = vmul.f32 %v4425, %v5237
      %v5471 = vmul.f32 %v4430, %v5242
      %v5472 = vmul.f32 %v4433, %v5247
      %v5473 = vmul.f32 %v4438, %v5252
      %v5474 = vmul.f32 %v4441, %v5257
      %v5475 = vmul.f32 %v4446, %v5262
      %v5476 = vmul.f32 %v4449, %v5267
      %v5477 = vmul.f32 %v4454, %v5272
      %v5478 = vmul.f32 %v4457, %v5277
      %v5479 = vmul.f32 %v4462, %v5282
      %v5480 = vmul.f32 %v4465, %v5287
      %v5481 = vmul.f32 %v4539, %v5292
      %v5482 = vmul.f32 %v4542, %v5297
      %v5483 = vmul.f32 %v4547, %v5302
      %v5484 = vmul.f32 %v4550, %v5307
      %v5485 = vmul.f32 %v4555, %v5312
      %v5486 = vmul.f32 %v4558, %v5317
      %v5487 = vmul.f32 %v4563, %v5322
      %v5488 = vmul.f32 %v4566, %v5327
      %v5489 = vmul.f32 %v4571, %v5332
      %v5490 = vmul.f32 %v4574, %v5337
      %v5491 = vmul.f32 %v4579, %v5342
      %v5492 = vmul.f32 %v4582, %v5347
      %v5493 = vmul.f32 %v4587, %v5352
      %v5494 = vmul.f32 %v4590, %v5357
      %v5495 = vmul.f32 %v4595, %v5362
      %v5496 = vmul.f32 %v4598, %v5367
      %v5497 = vld [vmem:[%s4] sm:$0x3f]
      %vm5498 = vcmask 48128
      %v5500 = vsel %vm5498, %v5369, 0
      %v5503 = vsel %vm5498, %v5370, 0
      %v5506 = vsel %vm5498, %v5371, 0
      %v5509 = vsel %vm5498, %v5372, 0
      %v5512 = vsel %vm5498, %v5373, 0
      %v5515 = vsel %vm5498, %v5374, 0
      %v5518 = vsel %vm5498, %v5375, 0
      %v5521 = vsel %vm5498, %v5376, 0
      %v5524 = vsel %vm5498, %v5377, 0
      %v5527 = vsel %vm5498, %v5378, 0
      %v5530 = vsel %vm5498, %v5379, 0
      %v5533 = vsel %vm5498, %v5380, 0
      %v5536 = vsel %vm5498, %v5381, 0
      %v5539 = vsel %vm5498, %v5382, 0
      %v5542 = vsel %vm5498, %v5383, 0
      %v5545 = vsel %vm5498, %v5384, 0
      %v5548 = vsel %vm5498, %v5385, 0
      %v5551 = vsel %vm5498, %v5386, 0
      %v5554 = vsel %vm5498, %v5387, 0
      %v5557 = vsel %vm5498, %v5388, 0
      %v5560 = vsel %vm5498, %v5389, 0
      %v5563 = vsel %vm5498, %v5390, 0
      %v5566 = vsel %vm5498, %v5391, 0
      %v5569 = vsel %vm5498, %v5392, 0
      %v5572 = vsel %vm5498, %v5393, 0
      %v5575 = vsel %vm5498, %v5394, 0
      %v5578 = vsel %vm5498, %v5395, 0
      %v5581 = vsel %vm5498, %v5396, 0
      %v5584 = vsel %vm5498, %v5397, 0
      %v5587 = vsel %vm5498, %v5398, 0
      %v5590 = vsel %vm5498, %v5399, 0
      %v5593 = vsel %vm5498, %v5400, 0
      %v5596 = vsel %vm5498, %v5401, 0
      %v5599 = vsel %vm5498, %v5402, 0
      %v5602 = vsel %vm5498, %v5403, 0
      %v5605 = vsel %vm5498, %v5404, 0
      %v5608 = vsel %vm5498, %v5405, 0
      %v5611 = vsel %vm5498, %v5406, 0
      %v5614 = vsel %vm5498, %v5407, 0
      %v5617 = vsel %vm5498, %v5408, 0
      %v5620 = vsel %vm5498, %v5409, 0
      %v5623 = vsel %vm5498, %v5410, 0
      %v5626 = vsel %vm5498, %v5411, 0
      %v5629 = vsel %vm5498, %v5412, 0
      %v5632 = vsel %vm5498, %v5413, 0
      %v5635 = vsel %vm5498, %v5414, 0
      %v5638 = vsel %vm5498, %v5415, 0
      %v5641 = vsel %vm5498, %v5416, 0
      %v5644 = vsel %vm5498, %v5417, 0
      %v5647 = vsel %vm5498, %v5418, 0
      %v5650 = vsel %vm5498, %v5419, 0
      %v5653 = vsel %vm5498, %v5420, 0
      %v5656 = vsel %vm5498, %v5421, 0
      %v5659 = vsel %vm5498, %v5422, 0
      %v5662 = vsel %vm5498, %v5423, 0
      %v5665 = vsel %vm5498, %v5424, 0
      %v5668 = vsel %vm5498, %v5425, 0
      %v5671 = vsel %vm5498, %v5426, 0
      %v5674 = vsel %vm5498, %v5427, 0
      %v5677 = vsel %vm5498, %v5428, 0
      %v5680 = vsel %vm5498, %v5429, 0
      %v5683 = vsel %vm5498, %v5430, 0
      %v5686 = vsel %vm5498, %v5431, 0
      %v5689 = vsel %vm5498, %v5432, 0
      %v5692 = vsel %vm5498, %v5433, 0
      %v5695 = vsel %vm5498, %v5434, 0
      %v5698 = vsel %vm5498, %v5435, 0
      %v5701 = vsel %vm5498, %v5436, 0
      %v5704 = vsel %vm5498, %v5437, 0
      %v5707 = vsel %vm5498, %v5438, 0
      %v5710 = vsel %vm5498, %v5439, 0
      %v5713 = vsel %vm5498, %v5440, 0
      %v5716 = vsel %vm5498, %v5441, 0
      %v5719 = vsel %vm5498, %v5442, 0
      %v5722 = vsel %vm5498, %v5443, 0
      %v5725 = vsel %vm5498, %v5444, 0
      %v5728 = vsel %vm5498, %v5445, 0
      %v5731 = vsel %vm5498, %v5446, 0
      %v5734 = vsel %vm5498, %v5447, 0
      %v5737 = vsel %vm5498, %v5448, 0
      %v5740 = vsel %vm5498, %v5449, 0
      %v5743 = vsel %vm5498, %v5450, 0
      %v5746 = vsel %vm5498, %v5451, 0
      %v5749 = vsel %vm5498, %v5452, 0
      %v5752 = vsel %vm5498, %v5453, 0
      %v5755 = vsel %vm5498, %v5454, 0
      %v5758 = vsel %vm5498, %v5455, 0
      %v5761 = vsel %vm5498, %v5456, 0
      %v5764 = vsel %vm5498, %v5457, 0
      %v5767 = vsel %vm5498, %v5458, 0
      %v5770 = vsel %vm5498, %v5459, 0
      %v5773 = vsel %vm5498, %v5460, 0
      %v5776 = vsel %vm5498, %v5461, 0
      %v5779 = vsel %vm5498, %v5462, 0
      %v5782 = vsel %vm5498, %v5463, 0
      %v5785 = vsel %vm5498, %v5464, 0
      %v5788 = vsel %vm5498, %v5465, 0
      %v5791 = vsel %vm5498, %v5466, 0
      %v5794 = vsel %vm5498, %v5467, 0
      %v5797 = vsel %vm5498, %v5468, 0
      %v5800 = vsel %vm5498, %v5469, 0
      %v5803 = vsel %vm5498, %v5470, 0
      %v5806 = vsel %vm5498, %v5471, 0
      %v5809 = vsel %vm5498, %v5472, 0
      %v5812 = vsel %vm5498, %v5473, 0
      %v5815 = vsel %vm5498, %v5474, 0
      %v5818 = vsel %vm5498, %v5475, 0
      %v5821 = vsel %vm5498, %v5476, 0
      %v5824 = vsel %vm5498, %v5477, 0
      %v5827 = vsel %vm5498, %v5478, 0
      %v5830 = vsel %vm5498, %v5479, 0
      %v5833 = vsel %vm5498, %v5480, 0
      %v5836 = vsel %vm5498, %v5481, 0
      %v5839 = vsel %vm5498, %v5482, 0
      %v5842 = vsel %vm5498, %v5483, 0
      %v5845 = vsel %vm5498, %v5484, 0
      %v5848 = vsel %vm5498, %v5485, 0
      %v5851 = vsel %vm5498, %v5486, 0
      %v5854 = vsel %vm5498, %v5487, 0
      %v5857 = vsel %vm5498, %v5488, 0
      %v5860 = vsel %vm5498, %v5489, 0
      %v5863 = vsel %vm5498, %v5490, 0
      %v5866 = vsel %vm5498, %v5491, 0
      %v5869 = vsel %vm5498, %v5492, 0
      %v5872 = vsel %vm5498, %v5493, 0
      %v5875 = vsel %vm5498, %v5494, 0
      %v5878 = vsel %vm5498, %v5495, 0
      %v5881 = vsel %vm5498, %v5496, 0
      %vm5883 = vcmask 1045504
      %v5885 = vsel %vm5883, %v5497, 0
      %5887 = vmatprep.subr.mxu0 0.0
      %5888 = vmatpush1.msra.mxu0 0.0
      %5889 = vmatprep.subr.mxu0 0.0
      %5890 = vmatpush1.msra.mxu0 0.0
      %5891 = vmatprep.subr.mxu0 0.0
      %5892 = vmatpush1.msra.mxu0 0.0
      %5893 = vmatprep.subr.mxu0 0.0
      %5894 = vmatpush1.msra.mxu0 0.0
      %5895 = vmatprep.subr.mxu0 0.0
      %5896 = vmatpush1.msra.mxu0 0.0
      %5897 = vmatprep.subr.mxu0 0.0
      %5898 = vmatpush1.msra.mxu0 0.0
      %5899 = vmatprep.subr.mxu0 0.0
      %5900 = vmatpush1.msra.mxu0 0.0
      %5901 = vmatprep.subr.mxu0 0.0
      %5902 = vmatpush1.msra.mxu0 0.0
      %5903 = vmatprep.subr.mxu0 0.0
      %5904 = vmatpush1.msra.mxu0 0.0
      %5905 = vmatprep.subr.mxu0 0.0
      %5906 = vmatpush1.msra.mxu0 0.0
      %5907 = vmatprep.subr.mxu0 0.0
      %5908 = vmatpush1.msra.mxu0 0.0
      %5909 = vmatprep.subr.mxu0 0.0
      %5910 = vmatpush1.msra.mxu0 0.0
      %5911 = vmatprep.subr.mxu0 0.0
      %5912 = vmatpush1.msra.mxu0 0.0
      %5913 = vmatprep.subr.mxu0 0.0
      %5914 = vmatpush1.msra.mxu0 0.0
      %5915 = vmatprep.subr.mxu0 0.0
      %5916 = vmatpush1.msra.mxu0 0.0
      %5917 = vmatprep.subr.mxu0 0.0
      %5918 = vmatpush1.msra.mxu0 %v5885
      %5919 = vmatprep.subr.mxu0 0.0
      %5920 = vmatpush2.msra.mxu0 0.0
      %5921 = vmatprep.subr.mxu0 0.0
      %5922 = vmatpush2.msra.mxu0 0.0
      %5923 = vmatprep.subr.mxu0 0.0
      %5924 = vmatpush2.msra.mxu0 0.0
      %5925 = vmatprep.subr.mxu0 0.0
      %5926 = vmatpush2.msra.mxu0 0.0
      %5927 = vmatprep.subr.mxu0 0.0
      %5928 = vmatpush2.msra.mxu0 0.0
      %5929 = vmatprep.subr.mxu0 0.0
      %5930 = vmatpush2.msra.mxu0 0.0
      %5931 = vmatprep.subr.mxu0 0.0
      %5932 = vmatpush2.msra.mxu0 0.0
      %5933 = vmatprep.subr.mxu0 0.0
      %5934 = vmatpush2.msra.mxu0 0.0
      %5935 = vmatprep.subr.mxu0 0.0
      %5936 = vmatpush2.msra.mxu0 0.0
      %5937 = vmatprep.subr.mxu0 0.0
      %5938 = vmatpush2.msra.mxu0 0.0
      %5939 = vmatprep.subr.mxu0 0.0
      %5940 = vmatpush2.msra.mxu0 0.0
      %5941 = vmatprep.subr.mxu0 0.0
      %5942 = vmatpush2.msra.mxu0 0.0
      %5943 = vmatprep.subr.mxu0 0.0
      %5944 = vmatpush2.msra.mxu0 0.0
      %5945 = vmatprep.subr.mxu0 0.0
      %5946 = vmatpush2.msra.mxu0 0.0
      %5947 = vmatprep.subr.mxu0 0.0
      %5948 = vmatpush2.msra.mxu0 0.0
      %5949 = vmatprep.subr.mxu0 0.0
      %5950 = vmatpush2.msra.mxu0 0.0
      %5951 = vmatprep.mubr.f32.mxu0 0.0
      %5952 = vmatmul.mubr.f32.gmra.mxu0 %v5500
      %v5953 = vpop.f32.mrf.mxu0
      %v5954 = vadd.f32 0.0, %v5953
      %v5955 = vpop.f32.mrf.mxu0
      %5956 = vmatprep.mubr.f32.mxu0 0.0
      %5957 = vmatmul.mubr.f32.gmra.mxu0 %v5503
      %v5958 = vpop.f32.mrf.mxu0
      %v5959 = vadd.f32 0.0, %v5958
      %v5960 = vpop.f32.mrf.mxu0
      %5961 = vmatprep.mubr.f32.mxu0 0.0
      %5962 = vmatmul.mubr.f32.gmra.mxu0 %v5506
      %v5963 = vpop.f32.mrf.mxu0
      %v5964 = vadd.f32 0.0, %v5963
      %v5965 = vpop.f32.mrf.mxu0
      %5966 = vmatprep.mubr.f32.mxu0 0.0
      %5967 = vmatmul.mubr.f32.gmra.mxu0 %v5509
      %v5968 = vpop.f32.mrf.mxu0
      %v5969 = vadd.f32 0.0, %v5968
      %v5970 = vpop.f32.mrf.mxu0
      %5971 = vmatprep.mubr.f32.mxu0 0.0
      %5972 = vmatmul.mubr.f32.gmra.mxu0 %v5512
      %v5973 = vpop.f32.mrf.mxu0
      %v5974 = vadd.f32 0.0, %v5973
      %v5975 = vpop.f32.mrf.mxu0
      %5976 = vmatprep.mubr.f32.mxu0 0.0
      %5977 = vmatmul.mubr.f32.gmra.mxu0 %v5515
      %v5978 = vpop.f32.mrf.mxu0
      %v5979 = vadd.f32 0.0, %v5978
      %v5980 = vpop.f32.mrf.mxu0
      %5981 = vmatprep.mubr.f32.mxu0 0.0
      %5982 = vmatmul.mubr.f32.gmra.mxu0 %v5518
      %v5983 = vpop.f32.mrf.mxu0
      %v5984 = vadd.f32 0.0, %v5983
      %v5985 = vpop.f32.mrf.mxu0
      %5986 = vmatprep.mubr.f32.mxu0 0.0
      %5987 = vmatmul.mubr.f32.gmra.mxu0 %v5521
      %v5988 = vpop.f32.mrf.mxu0
      %v5989 = vadd.f32 0.0, %v5988
      %v5990 = vpop.f32.mrf.mxu0
      %5991 = vmatprep.mubr.f32.mxu0 0.0
      %5992 = vmatmul.mubr.f32.gmra.mxu0 %v5524
      %v5993 = vpop.f32.mrf.mxu0
      %v5994 = vadd.f32 0.0, %v5993
      %v5995 = vpop.f32.mrf.mxu0
      %5996 = vmatprep.mubr.f32.mxu0 0.0
      %5997 = vmatmul.mubr.f32.gmra.mxu0 %v5527
      %v5998 = vpop.f32.mrf.mxu0
      %v5999 = vadd.f32 0.0, %v5998
      %v6000 = vpop.f32.mrf.mxu0
      %6001 = vmatprep.mubr.f32.mxu0 0.0
      %6002 = vmatmul.mubr.f32.gmra.mxu0 %v5530
      %v6003 = vpop.f32.mrf.mxu0
      %v6004 = vadd.f32 0.0, %v6003
      %v6005 = vpop.f32.mrf.mxu0
      %6006 = vmatprep.mubr.f32.mxu0 0.0
      %6007 = vmatmul.mubr.f32.gmra.mxu0 %v5533
      %v6008 = vpop.f32.mrf.mxu0
      %v6009 = vadd.f32 0.0, %v6008
      %v6010 = vpop.f32.mrf.mxu0
      %6011 = vmatprep.mubr.f32.mxu0 0.0
      %6012 = vmatmul.mubr.f32.gmra.mxu0 %v5536
      %v6013 = vpop.f32.mrf.mxu0
      %v6014 = vadd.f32 0.0, %v6013
      %v6015 = vpop.f32.mrf.mxu0
      %6016 = vmatprep.mubr.f32.mxu0 0.0
      %6017 = vmatmul.mubr.f32.gmra.mxu0 %v5539
      %v6018 = vpop.f32.mrf.mxu0
      %v6019 = vadd.f32 0.0, %v6018
      %v6020 = vpop.f32.mrf.mxu0
      %6021 = vmatprep.mubr.f32.mxu0 0.0
      %6022 = vmatmul.mubr.f32.gmra.mxu0 %v5542
      %v6023 = vpop.f32.mrf.mxu0
      %v6024 = vadd.f32 0.0, %v6023
      %v6025 = vpop.f32.mrf.mxu0
      %6026 = vmatprep.mubr.f32.mxu0 0.0
      %6027 = vmatmul.mubr.f32.gmra.mxu0 %v5545
      %v6028 = vpop.f32.mrf.mxu0
      %v6029 = vadd.f32 0.0, %v6028
      %v6030 = vpop.f32.mrf.mxu0
      %6031 = vmatprep.mubr.f32.mxu0 0.0
      %6032 = vmatmul.mubr.f32.gmra.mxu0 %v5548
      %v6033 = vpop.f32.mrf.mxu0
      %v6034 = vadd.f32 0.0, %v6033
      %v6035 = vpop.f32.mrf.mxu0
      %6036 = vmatprep.mubr.f32.mxu0 0.0
      %6037 = vmatmul.mubr.f32.gmra.mxu0 %v5551
      %v6038 = vpop.f32.mrf.mxu0
      %v6039 = vadd.f32 0.0, %v6038
      %v6040 = vpop.f32.mrf.mxu0
      %6041 = vmatprep.mubr.f32.mxu0 0.0
      %6042 = vmatmul.mubr.f32.gmra.mxu0 %v5554
      %v6043 = vpop.f32.mrf.mxu0
      %v6044 = vadd.f32 0.0, %v6043
      %v6045 = vpop.f32.mrf.mxu0
      %6046 = vmatprep.mubr.f32.mxu0 0.0
      %6047 = vmatmul.mubr.f32.gmra.mxu0 %v5557
      %v6048 = vpop.f32.mrf.mxu0
      %v6049 = vadd.f32 0.0, %v6048
      %v6050 = vpop.f32.mrf.mxu0
      %6051 = vmatprep.mubr.f32.mxu0 0.0
      %6052 = vmatmul.mubr.f32.gmra.mxu0 %v5560
      %v6053 = vpop.f32.mrf.mxu0
      %v6054 = vadd.f32 0.0, %v6053
      %v6055 = vpop.f32.mrf.mxu0
      %6056 = vmatprep.mubr.f32.mxu0 0.0
      %6057 = vmatmul.mubr.f32.gmra.mxu0 %v5563
      %v6058 = vpop.f32.mrf.mxu0
      %v6059 = vadd.f32 0.0, %v6058
      %v6060 = vpop.f32.mrf.mxu0
      %6061 = vmatprep.mubr.f32.mxu0 0.0
      %6062 = vmatmul.mubr.f32.gmra.mxu0 %v5566
      %v6063 = vpop.f32.mrf.mxu0
      %v6064 = vadd.f32 0.0, %v6063
      %v6065 = vpop.f32.mrf.mxu0
      %6066 = vmatprep.mubr.f32.mxu0 0.0
      %6067 = vmatmul.mubr.f32.gmra.mxu0 %v5569
      %v6068 = vpop.f32.mrf.mxu0
      %v6069 = vadd.f32 0.0, %v6068
      %v6070 = vpop.f32.mrf.mxu0
      %6071 = vmatprep.mubr.f32.mxu0 0.0
      %6072 = vmatmul.mubr.f32.gmra.mxu0 %v5572
      %v6073 = vpop.f32.mrf.mxu0
      %v6074 = vadd.f32 0.0, %v6073
      %v6075 = vpop.f32.mrf.mxu0
      %6076 = vmatprep.mubr.f32.mxu0 0.0
      %6077 = vmatmul.mubr.f32.gmra.mxu0 %v5575
      %v6078 = vpop.f32.mrf.mxu0
      %v6079 = vadd.f32 0.0, %v6078
      %v6080 = vpop.f32.mrf.mxu0
      %6081 = vmatprep.mubr.f32.mxu0 0.0
      %6082 = vmatmul.mubr.f32.gmra.mxu0 %v5578
      %v6083 = vpop.f32.mrf.mxu0
      %v6084 = vadd.f32 0.0, %v6083
      %v6085 = vpop.f32.mrf.mxu0
      %6086 = vmatprep.mubr.f32.mxu0 0.0
      %6087 = vmatmul.mubr.f32.gmra.mxu0 %v5581
      %v6088 = vpop.f32.mrf.mxu0
      %v6089 = vadd.f32 0.0, %v6088
      %v6090 = vpop.f32.mrf.mxu0
      %6091 = vmatprep.mubr.f32.mxu0 0.0
      %6092 = vmatmul.mubr.f32.gmra.mxu0 %v5584
      %v6093 = vpop.f32.mrf.mxu0
      %v6094 = vadd.f32 0.0, %v6093
      %v6095 = vpop.f32.mrf.mxu0
      %6096 = vmatprep.mubr.f32.mxu0 0.0
      %6097 = vmatmul.mubr.f32.gmra.mxu0 %v5587
      %v6098 = vpop.f32.mrf.mxu0
      %v6099 = vadd.f32 0.0, %v6098
      %v6100 = vpop.f32.mrf.mxu0
      %6101 = vmatprep.mubr.f32.mxu0 0.0
      %6102 = vmatmul.mubr.f32.gmra.mxu0 %v5590
      %v6103 = vpop.f32.mrf.mxu0
      %v6104 = vadd.f32 0.0, %v6103
      %v6105 = vpop.f32.mrf.mxu0
      %6106 = vmatprep.mubr.f32.mxu0 0.0
      %6107 = vmatmul.mubr.f32.gmra.mxu0 %v5593
      %v6108 = vpop.f32.mrf.mxu0
      %v6109 = vadd.f32 0.0, %v6108
      %v6110 = vpop.f32.mrf.mxu0
      %6111 = vmatprep.mubr.f32.mxu0 0.0
      %6112 = vmatmul.mubr.f32.gmra.mxu0 %v5596
      %v6113 = vpop.f32.mrf.mxu0
      %v6114 = vadd.f32 0.0, %v6113
      %v6115 = vpop.f32.mrf.mxu0
      %6116 = vmatprep.mubr.f32.mxu0 0.0
      %6117 = vmatmul.mubr.f32.gmra.mxu0 %v5599
      %v6118 = vpop.f32.mrf.mxu0
      %v6119 = vadd.f32 0.0, %v6118
      %v6120 = vpop.f32.mrf.mxu0
      %6121 = vmatprep.mubr.f32.mxu0 0.0
      %6122 = vmatmul.mubr.f32.gmra.mxu0 %v5602
      %v6123 = vpop.f32.mrf.mxu0
      %v6124 = vadd.f32 0.0, %v6123
      %v6125 = vpop.f32.mrf.mxu0
      %6126 = vmatprep.mubr.f32.mxu0 0.0
      %6127 = vmatmul.mubr.f32.gmra.mxu0 %v5605
      %v6128 = vpop.f32.mrf.mxu0
      %v6129 = vadd.f32 0.0, %v6128
      %v6130 = vpop.f32.mrf.mxu0
      %6131 = vmatprep.mubr.f32.mxu0 0.0
      %6132 = vmatmul.mubr.f32.gmra.mxu0 %v5608
      %v6133 = vpop.f32.mrf.mxu0
      %v6134 = vadd.f32 0.0, %v6133
      %v6135 = vpop.f32.mrf.mxu0
      %6136 = vmatprep.mubr.f32.mxu0 0.0
      %6137 = vmatmul.mubr.f32.gmra.mxu0 %v5611
      %v6138 = vpop.f32.mrf.mxu0
      %v6139 = vadd.f32 0.0, %v6138
      %v6140 = vpop.f32.mrf.mxu0
      %6141 = vmatprep.mubr.f32.mxu0 0.0
      %6142 = vmatmul.mubr.f32.gmra.mxu0 %v5614
      %v6143 = vpop.f32.mrf.mxu0
      %v6144 = vadd.f32 0.0, %v6143
      %v6145 = vpop.f32.mrf.mxu0
      %6146 = vmatprep.mubr.f32.mxu0 0.0
      %6147 = vmatmul.mubr.f32.gmra.mxu0 %v5617
      %v6148 = vpop.f32.mrf.mxu0
      %v6149 = vadd.f32 0.0, %v6148
      %v6150 = vpop.f32.mrf.mxu0
      %6151 = vmatprep.mubr.f32.mxu0 0.0
      %6152 = vmatmul.mubr.f32.gmra.mxu0 %v5620
      %v6153 = vpop.f32.mrf.mxu0
      %v6154 = vadd.f32 0.0, %v6153
      %v6155 = vpop.f32.mrf.mxu0
      %6156 = vmatprep.mubr.f32.mxu0 0.0
      %6157 = vmatmul.mubr.f32.gmra.mxu0 %v5623
      %v6158 = vpop.f32.mrf.mxu0
      %v6159 = vadd.f32 0.0, %v6158
      %v6160 = vpop.f32.mrf.mxu0
      %6161 = vmatprep.mubr.f32.mxu0 0.0
      %6162 = vmatmul.mubr.f32.gmra.mxu0 %v5626
      %v6163 = vpop.f32.mrf.mxu0
      %v6164 = vadd.f32 0.0, %v6163
      %v6165 = vpop.f32.mrf.mxu0
      %6166 = vmatprep.mubr.f32.mxu0 0.0
      %6167 = vmatmul.mubr.f32.gmra.mxu0 %v5629
      %v6168 = vpop.f32.mrf.mxu0
      %v6169 = vadd.f32 0.0, %v6168
      %v6170 = vpop.f32.mrf.mxu0
      %6171 = vmatprep.mubr.f32.mxu0 0.0
      %6172 = vmatmul.mubr.f32.gmra.mxu0 %v5632
      %v6173 = vpop.f32.mrf.mxu0
      %v6174 = vadd.f32 0.0, %v6173
      %v6175 = vpop.f32.mrf.mxu0
      %6176 = vmatprep.mubr.f32.mxu0 0.0
      %6177 = vmatmul.mubr.f32.gmra.mxu0 %v5635
      %v6178 = vpop.f32.mrf.mxu0
      %v6179 = vadd.f32 0.0, %v6178
      %v6180 = vpop.f32.mrf.mxu0
      %6181 = vmatprep.mubr.f32.mxu0 0.0
      %6182 = vmatmul.mubr.f32.gmra.mxu0 %v5638
      %v6183 = vpop.f32.mrf.mxu0
      %v6184 = vadd.f32 0.0, %v6183
      %v6185 = vpop.f32.mrf.mxu0
      %6186 = vmatprep.mubr.f32.mxu0 0.0
      %6187 = vmatmul.mubr.f32.gmra.mxu0 %v5641
      %v6188 = vpop.f32.mrf.mxu0
      %v6189 = vadd.f32 0.0, %v6188
      %v6190 = vpop.f32.mrf.mxu0
      %6191 = vmatprep.mubr.f32.mxu0 0.0
      %6192 = vmatmul.mubr.f32.gmra.mxu0 %v5644
      %v6193 = vpop.f32.mrf.mxu0
      %v6194 = vadd.f32 0.0, %v6193
      %v6195 = vpop.f32.mrf.mxu0
      %6196 = vmatprep.mubr.f32.mxu0 0.0
      %6197 = vmatmul.mubr.f32.gmra.mxu0 %v5647
      %v6198 = vpop.f32.mrf.mxu0
      %v6199 = vadd.f32 0.0, %v6198
      %v6200 = vpop.f32.mrf.mxu0
      %6201 = vmatprep.mubr.f32.mxu0 0.0
      %6202 = vmatmul.mubr.f32.gmra.mxu0 %v5650
      %v6203 = vpop.f32.mrf.mxu0
      %v6204 = vadd.f32 0.0, %v6203
      %v6205 = vpop.f32.mrf.mxu0
      %6206 = vmatprep.mubr.f32.mxu0 0.0
      %6207 = vmatmul.mubr.f32.gmra.mxu0 %v5653
      %v6208 = vpop.f32.mrf.mxu0
      %v6209 = vadd.f32 0.0, %v6208
      %v6210 = vpop.f32.mrf.mxu0
      %6211 = vmatprep.mubr.f32.mxu0 0.0
      %6212 = vmatmul.mubr.f32.gmra.mxu0 %v5656
      %v6213 = vpop.f32.mrf.mxu0
      %v6214 = vadd.f32 0.0, %v6213
      %v6215 = vpop.f32.mrf.mxu0
      %6216 = vmatprep.mubr.f32.mxu0 0.0
      %6217 = vmatmul.mubr.f32.gmra.mxu0 %v5659
      %v6218 = vpop.f32.mrf.mxu0
      %v6219 = vadd.f32 0.0, %v6218
      %v6220 = vpop.f32.mrf.mxu0
      %6221 = vmatprep.mubr.f32.mxu0 0.0
      %6222 = vmatmul.mubr.f32.gmra.mxu0 %v5662
      %v6223 = vpop.f32.mrf.mxu0
      %v6224 = vadd.f32 0.0, %v6223
      %v6225 = vpop.f32.mrf.mxu0
      %6226 = vmatprep.mubr.f32.mxu0 0.0
      %6227 = vmatmul.mubr.f32.gmra.mxu0 %v5665
      %v6228 = vpop.f32.mrf.mxu0
      %v6229 = vadd.f32 0.0, %v6228
      %v6230 = vpop.f32.mrf.mxu0
      %6231 = vmatprep.mubr.f32.mxu0 0.0
      %6232 = vmatmul.mubr.f32.gmra.mxu0 %v5668
      %v6233 = vpop.f32.mrf.mxu0
      %v6234 = vadd.f32 0.0, %v6233
      %v6235 = vpop.f32.mrf.mxu0
      %6236 = vmatprep.mubr.f32.mxu0 0.0
      %6237 = vmatmul.mubr.f32.gmra.mxu0 %v5671
      %v6238 = vpop.f32.mrf.mxu0
      %v6239 = vadd.f32 0.0, %v6238
      %v6240 = vpop.f32.mrf.mxu0
      %6241 = vmatprep.mubr.f32.mxu0 0.0
      %6242 = vmatmul.mubr.f32.gmra.mxu0 %v5674
      %v6243 = vpop.f32.mrf.mxu0
      %v6244 = vadd.f32 0.0, %v6243
      %v6245 = vpop.f32.mrf.mxu0
      %6246 = vmatprep.mubr.f32.mxu0 0.0
      %6247 = vmatmul.mubr.f32.gmra.mxu0 %v5677
      %v6248 = vpop.f32.mrf.mxu0
      %v6249 = vadd.f32 0.0, %v6248
      %v6250 = vpop.f32.mrf.mxu0
      %6251 = vmatprep.mubr.f32.mxu0 0.0
      %6252 = vmatmul.mubr.f32.gmra.mxu0 %v5680
      %v6253 = vpop.f32.mrf.mxu0
      %v6254 = vadd.f32 0.0, %v6253
      %v6255 = vpop.f32.mrf.mxu0
      %6256 = vmatprep.mubr.f32.mxu0 0.0
      %6257 = vmatmul.mubr.f32.gmra.mxu0 %v5683
      %v6258 = vpop.f32.mrf.mxu0
      %v6259 = vadd.f32 0.0, %v6258
      %v6260 = vpop.f32.mrf.mxu0
      %6261 = vmatprep.mubr.f32.mxu0 0.0
      %6262 = vmatmul.mubr.f32.gmra.mxu0 %v5686
      %v6263 = vpop.f32.mrf.mxu0
      %v6264 = vadd.f32 0.0, %v6263
      %v6265 = vpop.f32.mrf.mxu0
      %6266 = vmatprep.mubr.f32.mxu0 0.0
      %6267 = vmatmul.mubr.f32.gmra.mxu0 %v5689
      %v6268 = vpop.f32.mrf.mxu0
      %v6269 = vadd.f32 0.0, %v6268
      %v6270 = vpop.f32.mrf.mxu0
      %6271 = vmatprep.mubr.f32.mxu0 0.0
      %6272 = vmatmul.mubr.f32.gmra.mxu0 %v5692
      %v6273 = vpop.f32.mrf.mxu0
      %v6274 = vadd.f32 0.0, %v6273
      %v6275 = vpop.f32.mrf.mxu0
      %6276 = vmatprep.mubr.f32.mxu0 0.0
      %6277 = vmatmul.mubr.f32.gmra.mxu0 %v5695
      %v6278 = vpop.f32.mrf.mxu0
      %v6279 = vadd.f32 0.0, %v6278
      %v6280 = vpop.f32.mrf.mxu0
      %6281 = vmatprep.mubr.f32.mxu0 0.0
      %6282 = vmatmul.mubr.f32.gmra.mxu0 %v5698
      %v6283 = vpop.f32.mrf.mxu0
      %v6284 = vadd.f32 0.0, %v6283
      %v6285 = vpop.f32.mrf.mxu0
      %6286 = vmatprep.mubr.f32.mxu0 0.0
      %6287 = vmatmul.mubr.f32.gmra.mxu0 %v5701
      %v6288 = vpop.f32.mrf.mxu0
      %v6289 = vadd.f32 0.0, %v6288
      %v6290 = vpop.f32.mrf.mxu0
      %6291 = vmatprep.mubr.f32.mxu0 0.0
      %6292 = vmatmul.mubr.f32.gmra.mxu0 %v5704
      %v6293 = vpop.f32.mrf.mxu0
      %v6294 = vadd.f32 0.0, %v6293
      %v6295 = vpop.f32.mrf.mxu0
      %6296 = vmatprep.mubr.f32.mxu0 0.0
      %6297 = vmatmul.mubr.f32.gmra.mxu0 %v5707
      %v6298 = vpop.f32.mrf.mxu0
      %v6299 = vadd.f32 0.0, %v6298
      %v6300 = vpop.f32.mrf.mxu0
      %6301 = vmatprep.mubr.f32.mxu0 0.0
      %6302 = vmatmul.mubr.f32.gmra.mxu0 %v5710
      %v6303 = vpop.f32.mrf.mxu0
      %v6304 = vadd.f32 0.0, %v6303
      %v6305 = vpop.f32.mrf.mxu0
      %6306 = vmatprep.mubr.f32.mxu0 0.0
      %6307 = vmatmul.mubr.f32.gmra.mxu0 %v5713
      %v6308 = vpop.f32.mrf.mxu0
      %v6309 = vadd.f32 0.0, %v6308
      %v6310 = vpop.f32.mrf.mxu0
      %6311 = vmatprep.mubr.f32.mxu0 0.0
      %6312 = vmatmul.mubr.f32.gmra.mxu0 %v5716
      %v6313 = vpop.f32.mrf.mxu0
      %v6314 = vadd.f32 0.0, %v6313
      %v6315 = vpop.f32.mrf.mxu0
      %6316 = vmatprep.mubr.f32.mxu0 0.0
      %6317 = vmatmul.mubr.f32.gmra.mxu0 %v5719
      %v6318 = vpop.f32.mrf.mxu0
      %v6319 = vadd.f32 0.0, %v6318
      %v6320 = vpop.f32.mrf.mxu0
      %6321 = vmatprep.mubr.f32.mxu0 0.0
      %6322 = vmatmul.mubr.f32.gmra.mxu0 %v5722
      %v6323 = vpop.f32.mrf.mxu0
      %v6324 = vadd.f32 0.0, %v6323
      %v6325 = vpop.f32.mrf.mxu0
      %6326 = vmatprep.mubr.f32.mxu0 0.0
      %6327 = vmatmul.mubr.f32.gmra.mxu0 %v5725
      %v6328 = vpop.f32.mrf.mxu0
      %v6329 = vadd.f32 0.0, %v6328
      %v6330 = vpop.f32.mrf.mxu0
      %6331 = vmatprep.mubr.f32.mxu0 0.0
      %6332 = vmatmul.mubr.f32.gmra.mxu0 %v5728
      %v6333 = vpop.f32.mrf.mxu0
      %v6334 = vadd.f32 0.0, %v6333
      %v6335 = vpop.f32.mrf.mxu0
      %6336 = vmatprep.mubr.f32.mxu0 0.0
      %6337 = vmatmul.mubr.f32.gmra.mxu0 %v5731
      %v6338 = vpop.f32.mrf.mxu0
      %v6339 = vadd.f32 0.0, %v6338
      %v6340 = vpop.f32.mrf.mxu0
      %6341 = vmatprep.mubr.f32.mxu0 0.0
      %6342 = vmatmul.mubr.f32.gmra.mxu0 %v5734
      %v6343 = vpop.f32.mrf.mxu0
      %v6344 = vadd.f32 0.0, %v6343
      %v6345 = vpop.f32.mrf.mxu0
      %6346 = vmatprep.mubr.f32.mxu0 0.0
      %6347 = vmatmul.mubr.f32.gmra.mxu0 %v5737
      %v6348 = vpop.f32.mrf.mxu0
      %v6349 = vadd.f32 0.0, %v6348
      %v6350 = vpop.f32.mrf.mxu0
      %6351 = vmatprep.mubr.f32.mxu0 0.0
      %6352 = vmatmul.mubr.f32.gmra.mxu0 %v5740
      %v6353 = vpop.f32.mrf.mxu0
      %v6354 = vadd.f32 0.0, %v6353
      %v6355 = vpop.f32.mrf.mxu0
      %6356 = vmatprep.mubr.f32.mxu0 0.0
      %6357 = vmatmul.mubr.f32.gmra.mxu0 %v5743
      %v6358 = vpop.f32.mrf.mxu0
      %v6359 = vadd.f32 0.0, %v6358
      %v6360 = vpop.f32.mrf.mxu0
      %6361 = vmatprep.mubr.f32.mxu0 0.0
      %6362 = vmatmul.mubr.f32.gmra.mxu0 %v5746
      %v6363 = vpop.f32.mrf.mxu0
      %v6364 = vadd.f32 0.0, %v6363
      %v6365 = vpop.f32.mrf.mxu0
      %6366 = vmatprep.mubr.f32.mxu0 0.0
      %6367 = vmatmul.mubr.f32.gmra.mxu0 %v5749
      %v6368 = vpop.f32.mrf.mxu0
      %v6369 = vadd.f32 0.0, %v6368
      %v6370 = vpop.f32.mrf.mxu0
      %6371 = vmatprep.mubr.f32.mxu0 0.0
      %6372 = vmatmul.mubr.f32.gmra.mxu0 %v5752
      %v6373 = vpop.f32.mrf.mxu0
      %v6374 = vadd.f32 0.0, %v6373
      %v6375 = vpop.f32.mrf.mxu0
      %6376 = vmatprep.mubr.f32.mxu0 0.0
      %6377 = vmatmul.mubr.f32.gmra.mxu0 %v5755
      %v6378 = vpop.f32.mrf.mxu0
      %v6379 = vadd.f32 0.0, %v6378
      %v6380 = vpop.f32.mrf.mxu0
      %6381 = vmatprep.mubr.f32.mxu0 0.0
      %6382 = vmatmul.mubr.f32.gmra.mxu0 %v5758
      %v6383 = vpop.f32.mrf.mxu0
      %v6384 = vadd.f32 0.0, %v6383
      %v6385 = vpop.f32.mrf.mxu0
      %6386 = vmatprep.mubr.f32.mxu0 0.0
      %6387 = vmatmul.mubr.f32.gmra.mxu0 %v5761
      %v6388 = vpop.f32.mrf.mxu0
      %v6389 = vadd.f32 0.0, %v6388
      %v6390 = vpop.f32.mrf.mxu0
      %6391 = vmatprep.mubr.f32.mxu0 0.0
      %6392 = vmatmul.mubr.f32.gmra.mxu0 %v5764
      %v6393 = vpop.f32.mrf.mxu0
      %v6394 = vadd.f32 0.0, %v6393
      %v6395 = vpop.f32.mrf.mxu0
      %6396 = vmatprep.mubr.f32.mxu0 0.0
      %6397 = vmatmul.mubr.f32.gmra.mxu0 %v5767
      %v6398 = vpop.f32.mrf.mxu0
      %v6399 = vadd.f32 0.0, %v6398
      %v6400 = vpop.f32.mrf.mxu0
      %6401 = vmatprep.mubr.f32.mxu0 0.0
      %6402 = vmatmul.mubr.f32.gmra.mxu0 %v5770
      %v6403 = vpop.f32.mrf.mxu0
      %v6404 = vadd.f32 0.0, %v6403
      %v6405 = vpop.f32.mrf.mxu0
      %6406 = vmatprep.mubr.f32.mxu0 0.0
      %6407 = vmatmul.mubr.f32.gmra.mxu0 %v5773
      %v6408 = vpop.f32.mrf.mxu0
      %v6409 = vadd.f32 0.0, %v6408
      %v6410 = vpop.f32.mrf.mxu0
      %6411 = vmatprep.mubr.f32.mxu0 0.0
      %6412 = vmatmul.mubr.f32.gmra.mxu0 %v5776
      %v6413 = vpop.f32.mrf.mxu0
      %v6414 = vadd.f32 0.0, %v6413
      %v6415 = vpop.f32.mrf.mxu0
      %6416 = vmatprep.mubr.f32.mxu0 0.0
      %6417 = vmatmul.mubr.f32.gmra.mxu0 %v5779
      %v6418 = vpop.f32.mrf.mxu0
      %v6419 = vadd.f32 0.0, %v6418
      %v6420 = vpop.f32.mrf.mxu0
      %6421 = vmatprep.mubr.f32.mxu0 0.0
      %6422 = vmatmul.mubr.f32.gmra.mxu0 %v5782
      %v6423 = vpop.f32.mrf.mxu0
      %v6424 = vadd.f32 0.0, %v6423
      %v6425 = vpop.f32.mrf.mxu0
      %6426 = vmatprep.mubr.f32.mxu0 0.0
      %6427 = vmatmul.mubr.f32.gmra.mxu0 %v5785
      %v6428 = vpop.f32.mrf.mxu0
      %v6429 = vadd.f32 0.0, %v6428
      %v6430 = vpop.f32.mrf.mxu0
      %6431 = vmatprep.mubr.f32.mxu0 0.0
      %6432 = vmatmul.mubr.f32.gmra.mxu0 %v5788
      %v6433 = vpop.f32.mrf.mxu0
      %v6434 = vadd.f32 0.0, %v6433
      %v6435 = vpop.f32.mrf.mxu0
      %6436 = vmatprep.mubr.f32.mxu0 0.0
      %6437 = vmatmul.mubr.f32.gmra.mxu0 %v5791
      %v6438 = vpop.f32.mrf.mxu0
      %v6439 = vadd.f32 0.0, %v6438
      %v6440 = vpop.f32.mrf.mxu0
      %6441 = vmatprep.mubr.f32.mxu0 0.0
      %6442 = vmatmul.mubr.f32.gmra.mxu0 %v5794
      %v6443 = vpop.f32.mrf.mxu0
      %v6444 = vadd.f32 0.0, %v6443
      %v6445 = vpop.f32.mrf.mxu0
      %6446 = vmatprep.mubr.f32.mxu0 0.0
      %6447 = vmatmul.mubr.f32.gmra.mxu0 %v5797
      %v6448 = vpop.f32.mrf.mxu0
      %v6449 = vadd.f32 0.0, %v6448
      %v6450 = vpop.f32.mrf.mxu0
      %6451 = vmatprep.mubr.f32.mxu0 0.0
      %6452 = vmatmul.mubr.f32.gmra.mxu0 %v5800
      %v6453 = vpop.f32.mrf.mxu0
      %v6454 = vadd.f32 0.0, %v6453
      %v6455 = vpop.f32.mrf.mxu0
      %6456 = vmatprep.mubr.f32.mxu0 0.0
      %6457 = vmatmul.mubr.f32.gmra.mxu0 %v5803
      %v6458 = vpop.f32.mrf.mxu0
      %v6459 = vadd.f32 0.0, %v6458
      %v6460 = vpop.f32.mrf.mxu0
      %6461 = vmatprep.mubr.f32.mxu0 0.0
      %6462 = vmatmul.mubr.f32.gmra.mxu0 %v5806
      %v6463 = vpop.f32.mrf.mxu0
      %v6464 = vadd.f32 0.0, %v6463
      %v6465 = vpop.f32.mrf.mxu0
      %6466 = vmatprep.mubr.f32.mxu0 0.0
      %6467 = vmatmul.mubr.f32.gmra.mxu0 %v5809
      %v6468 = vpop.f32.mrf.mxu0
      %v6469 = vadd.f32 0.0, %v6468
      %v6470 = vpop.f32.mrf.mxu0
      %6471 = vmatprep.mubr.f32.mxu0 0.0
      %6472 = vmatmul.mubr.f32.gmra.mxu0 %v5812
      %v6473 = vpop.f32.mrf.mxu0
      %v6474 = vadd.f32 0.0, %v6473
      %v6475 = vpop.f32.mrf.mxu0
      %6476 = vmatprep.mubr.f32.mxu0 0.0
      %6477 = vmatmul.mubr.f32.gmra.mxu0 %v5815
      %v6478 = vpop.f32.mrf.mxu0
      %v6479 = vadd.f32 0.0, %v6478
      %v6480 = vpop.f32.mrf.mxu0
      %6481 = vmatprep.mubr.f32.mxu0 0.0
      %6482 = vmatmul.mubr.f32.gmra.mxu0 %v5818
      %v6483 = vpop.f32.mrf.mxu0
      %v6484 = vadd.f32 0.0, %v6483
      %v6485 = vpop.f32.mrf.mxu0
      %6486 = vmatprep.mubr.f32.mxu0 0.0
      %6487 = vmatmul.mubr.f32.gmra.mxu0 %v5821
      %v6488 = vpop.f32.mrf.mxu0
      %v6489 = vadd.f32 0.0, %v6488
      %v6490 = vpop.f32.mrf.mxu0
      %6491 = vmatprep.mubr.f32.mxu0 0.0
      %6492 = vmatmul.mubr.f32.gmra.mxu0 %v5824
      %v6493 = vpop.f32.mrf.mxu0
      %v6494 = vadd.f32 0.0, %v6493
      %v6495 = vpop.f32.mrf.mxu0
      %6496 = vmatprep.mubr.f32.mxu0 0.0
      %6497 = vmatmul.mubr.f32.gmra.mxu0 %v5827
      %v6498 = vpop.f32.mrf.mxu0
      %v6499 = vadd.f32 0.0, %v6498
      %v6500 = vpop.f32.mrf.mxu0
      %6501 = vmatprep.mubr.f32.mxu0 0.0
      %6502 = vmatmul.mubr.f32.gmra.mxu0 %v5830
      %v6503 = vpop.f32.mrf.mxu0
      %v6504 = vadd.f32 0.0, %v6503
      %v6505 = vpop.f32.mrf.mxu0
      %6506 = vmatprep.mubr.f32.mxu0 0.0
      %6507 = vmatmul.mubr.f32.gmra.mxu0 %v5833
      %v6508 = vpop.f32.mrf.mxu0
      %v6509 = vadd.f32 0.0, %v6508
      %v6510 = vpop.f32.mrf.mxu0
      %6511 = vmatprep.mubr.f32.mxu0 0.0
      %6512 = vmatmul.mubr.f32.gmra.mxu0 %v5836
      %v6513 = vpop.f32.mrf.mxu0
      %v6514 = vadd.f32 0.0, %v6513
      %v6515 = vpop.f32.mrf.mxu0
      %6516 = vmatprep.mubr.f32.mxu0 0.0
      %6517 = vmatmul.mubr.f32.gmra.mxu0 %v5839
      %v6518 = vpop.f32.mrf.mxu0
      %v6519 = vadd.f32 0.0, %v6518
      %v6520 = vpop.f32.mrf.mxu0
      %6521 = vmatprep.mubr.f32.mxu0 0.0
      %6522 = vmatmul.mubr.f32.gmra.mxu0 %v5842
      %v6523 = vpop.f32.mrf.mxu0
      %v6524 = vadd.f32 0.0, %v6523
      %v6525 = vpop.f32.mrf.mxu0
      %6526 = vmatprep.mubr.f32.mxu0 0.0
      %6527 = vmatmul.mubr.f32.gmra.mxu0 %v5845
      %v6528 = vpop.f32.mrf.mxu0
      %v6529 = vadd.f32 0.0, %v6528
      %v6530 = vpop.f32.mrf.mxu0
      %6531 = vmatprep.mubr.f32.mxu0 0.0
      %6532 = vmatmul.mubr.f32.gmra.mxu0 %v5848
      %v6533 = vpop.f32.mrf.mxu0
      %v6534 = vadd.f32 0.0, %v6533
      %v6535 = vpop.f32.mrf.mxu0
      %6536 = vmatprep.mubr.f32.mxu0 0.0
      %6537 = vmatmul.mubr.f32.gmra.mxu0 %v5851
      %v6538 = vpop.f32.mrf.mxu0
      %v6539 = vadd.f32 0.0, %v6538
      %v6540 = vpop.f32.mrf.mxu0
      %6541 = vmatprep.mubr.f32.mxu0 0.0
      %6542 = vmatmul.mubr.f32.gmra.mxu0 %v5854
      %v6543 = vpop.f32.mrf.mxu0
      %v6544 = vadd.f32 0.0, %v6543
      %v6545 = vpop.f32.mrf.mxu0
      %6546 = vmatprep.mubr.f32.mxu0 0.0
      %6547 = vmatmul.mubr.f32.gmra.mxu0 %v5857
      %v6548 = vpop.f32.mrf.mxu0
      %v6549 = vadd.f32 0.0, %v6548
      %v6550 = vpop.f32.mrf.mxu0
      %6551 = vmatprep.mubr.f32.mxu0 0.0
      %6552 = vmatmul.mubr.f32.gmra.mxu0 %v5860
      %v6553 = vpop.f32.mrf.mxu0
      %v6554 = vadd.f32 0.0, %v6553
      %v6555 = vpop.f32.mrf.mxu0
      %6556 = vmatprep.mubr.f32.mxu0 0.0
      %6557 = vmatmul.mubr.f32.gmra.mxu0 %v5863
      %v6558 = vpop.f32.mrf.mxu0
      %v6559 = vadd.f32 0.0, %v6558
      %v6560 = vpop.f32.mrf.mxu0
      %6561 = vmatprep.mubr.f32.mxu0 0.0
      %6562 = vmatmul.mubr.f32.gmra.mxu0 %v5866
      %v6563 = vpop.f32.mrf.mxu0
      %v6564 = vadd.f32 0.0, %v6563
      %v6565 = vpop.f32.mrf.mxu0
      %6566 = vmatprep.mubr.f32.mxu0 0.0
      %6567 = vmatmul.mubr.f32.gmra.mxu0 %v5869
      %v6568 = vpop.f32.mrf.mxu0
      %v6569 = vadd.f32 0.0, %v6568
      %v6570 = vpop.f32.mrf.mxu0
      %6571 = vmatprep.mubr.f32.mxu0 0.0
      %6572 = vmatmul.mubr.f32.gmra.mxu0 %v5872
      %v6573 = vpop.f32.mrf.mxu0
      %v6574 = vadd.f32 0.0, %v6573
      %v6575 = vpop.f32.mrf.mxu0
      %6576 = vmatprep.mubr.f32.mxu0 0.0
      %6577 = vmatmul.mubr.f32.gmra.mxu0 %v5875
      %v6578 = vpop.f32.mrf.mxu0
      %v6579 = vadd.f32 0.0, %v6578
      %v6580 = vpop.f32.mrf.mxu0
      %6581 = vmatprep.mubr.f32.mxu0 0.0
      %6582 = vmatmul.mubr.f32.gmra.mxu0 %v5878
      %v6583 = vpop.f32.mrf.mxu0
      %v6584 = vadd.f32 0.0, %v6583
      %v6585 = vpop.f32.mrf.mxu0
      %6586 = vmatprep.mubr.f32.mxu0 0.0
      %6587 = vmatmul.mubr.f32.gmra.mxu0 %v5881
      %v6588 = vpop.f32.mrf.mxu0
      %v6589 = vadd.f32 0.0, %v6588
      %v6590 = vpop.f32.mrf.mxu0
      %6591 = vdwg.mxu0
      %v6592 = vadd.f32 %v259, %v5954
      %v6593 = vadd.f32 %v260, %v5959
      %v6594 = vadd.f32 %v261, %v5964
      %v6595 = vadd.f32 %v262, %v5969
      %v6596 = vadd.f32 %v263, %v5974
      %v6597 = vadd.f32 %v264, %v5979
      %v6598 = vadd.f32 %v265, %v5984
      %v6599 = vadd.f32 %v266, %v5989
      %v6600 = vadd.f32 %v267, %v5994
      %v6601 = vadd.f32 %v268, %v5999
      %v6602 = vadd.f32 %v269, %v6004
      %v6603 = vadd.f32 %v270, %v6009
      %v6604 = vadd.f32 %v271, %v6014
      %v6605 = vadd.f32 %v272, %v6019
      %v6606 = vadd.f32 %v273, %v6024
      %v6607 = vadd.f32 %v274, %v6029
      %v6608 = vadd.f32 %v275, %v6034
      %v6609 = vadd.f32 %v276, %v6039
      %v6610 = vadd.f32 %v277, %v6044
      %v6611 = vadd.f32 %v278, %v6049
      %v6612 = vadd.f32 %v279, %v6054
      %v6613 = vadd.f32 %v280, %v6059
      %v6614 = vadd.f32 %v281, %v6064
      %v6615 = vadd.f32 %v282, %v6069
      %v6616 = vadd.f32 %v283, %v6074
      %v6617 = vadd.f32 %v284, %v6079
      %v6618 = vadd.f32 %v285, %v6084
      %v6619 = vadd.f32 %v286, %v6089
      %v6620 = vadd.f32 %v287, %v6094
      %v6621 = vadd.f32 %v288, %v6099
      %v6622 = vadd.f32 %v289, %v6104
      %v6623 = vadd.f32 %v290, %v6109
      %v6624 = vadd.f32 %v291, %v6114
      %v6625 = vadd.f32 %v292, %v6119
      %v6626 = vadd.f32 %v293, %v6124
      %v6627 = vadd.f32 %v294, %v6129
      %v6628 = vadd.f32 %v295, %v6134
      %v6629 = vadd.f32 %v296, %v6139
      %v6630 = vadd.f32 %v297, %v6144
      %v6631 = vadd.f32 %v298, %v6149
      %v6632 = vadd.f32 %v299, %v6154
      %v6633 = vadd.f32 %v300, %v6159
      %v6634 = vadd.f32 %v301, %v6164
      %v6635 = vadd.f32 %v302, %v6169
      %v6636 = vadd.f32 %v303, %v6174
      %v6637 = vadd.f32 %v304, %v6179
      %v6638 = vadd.f32 %v305, %v6184
      %v6639 = vadd.f32 %v306, %v6189
      %v6640 = vadd.f32 %v307, %v6194
      %v6641 = vadd.f32 %v308, %v6199
      %v6642 = vadd.f32 %v309, %v6204
      %v6643 = vadd.f32 %v310, %v6209
      %v6644 = vadd.f32 %v311, %v6214
      %v6645 = vadd.f32 %v312, %v6219
      %v6646 = vadd.f32 %v313, %v6224
      %v6647 = vadd.f32 %v314, %v6229
      %v6648 = vadd.f32 %v315, %v6234
      %v6649 = vadd.f32 %v316, %v6239
      %v6650 = vadd.f32 %v317, %v6244
      %v6651 = vadd.f32 %v318, %v6249
      %v6652 = vadd.f32 %v319, %v6254
      %v6653 = vadd.f32 %v320, %v6259
      %v6654 = vadd.f32 %v321, %v6264
      %v6655 = vadd.f32 %v322, %v6269
      %v6656 = vadd.f32 %v323, %v6274
      %v6657 = vadd.f32 %v324, %v6279
      %v6658 = vadd.f32 %v325, %v6284
      %v6659 = vadd.f32 %v326, %v6289
      %v6660 = vadd.f32 %v327, %v6294
      %v6661 = vadd.f32 %v328, %v6299
      %v6662 = vadd.f32 %v329, %v6304
      %v6663 = vadd.f32 %v330, %v6309
      %v6664 = vadd.f32 %v331, %v6314
      %v6665 = vadd.f32 %v332, %v6319
      %v6666 = vadd.f32 %v333, %v6324
      %v6667 = vadd.f32 %v334, %v6329
      %v6668 = vadd.f32 %v335, %v6334
      %v6669 = vadd.f32 %v336, %v6339
      %v6670 = vadd.f32 %v337, %v6344
      %v6671 = vadd.f32 %v338, %v6349
      %v6672 = vadd.f32 %v339, %v6354
      %v6673 = vadd.f32 %v340, %v6359
      %v6674 = vadd.f32 %v341, %v6364
      %v6675 = vadd.f32 %v342, %v6369
      %v6676 = vadd.f32 %v343, %v6374
      %v6677 = vadd.f32 %v344, %v6379
      %v6678 = vadd.f32 %v345, %v6384
      %v6679 = vadd.f32 %v346, %v6389
      %v6680 = vadd.f32 %v347, %v6394
      %v6681 = vadd.f32 %v348, %v6399
      %v6682 = vadd.f32 %v349, %v6404
      %v6683 = vadd.f32 %v350, %v6409
      %v6684 = vadd.f32 %v351, %v6414
      %v6685 = vadd.f32 %v352, %v6419
      %v6686 = vadd.f32 %v353, %v6424
      %v6687 = vadd.f32 %v354, %v6429
      %v6688 = vadd.f32 %v355, %v6434
      %v6689 = vadd.f32 %v356, %v6439
      %v6690 = vadd.f32 %v357, %v6444
      %v6691 = vadd.f32 %v358, %v6449
      %v6692 = vadd.f32 %v359, %v6454
      %v6693 = vadd.f32 %v360, %v6459
      %v6694 = vadd.f32 %v361, %v6464
      %v6695 = vadd.f32 %v362, %v6469
      %v6696 = vadd.f32 %v363, %v6474
      %v6697 = vadd.f32 %v364, %v6479
      %v6698 = vadd.f32 %v365, %v6484
      %v6699 = vadd.f32 %v366, %v6489
      %v6700 = vadd.f32 %v367, %v6494
      %v6701 = vadd.f32 %v368, %v6499
      %v6702 = vadd.f32 %v369, %v6504
      %v6703 = vadd.f32 %v370, %v6509
      %v6704 = vadd.f32 %v371, %v6514
      %v6705 = vadd.f32 %v372, %v6519
      %v6706 = vadd.f32 %v373, %v6524
      %v6707 = vadd.f32 %v374, %v6529
      %v6708 = vadd.f32 %v375, %v6534
      %v6709 = vadd.f32 %v376, %v6539
      %v6710 = vadd.f32 %v377, %v6544
      %v6711 = vadd.f32 %v378, %v6549
      %v6712 = vadd.f32 %v379, %v6554
      %v6713 = vadd.f32 %v380, %v6559
      %v6714 = vadd.f32 %v381, %v6564
      %v6715 = vadd.f32 %v382, %v6569
      %v6716 = vadd.f32 %v383, %v6574
      %v6717 = vadd.f32 %v384, %v6579
      %v6718 = vadd.f32 %v385, %v6584
      %v6719 = vadd.f32 %v386, %v6589
      %6720 = vxpose.xlu0.b32.start [1/16] %v6592, 128
      %6721 = vxpose.xlu0.b32.cont [2/16] %v6593, 128
      %6722 = vxpose.xlu0.b32.cont [3/16] %v6594, 128
      %6723 = vxpose.xlu0.b32.cont [4/16] %v6595, 128
      %6724 = vxpose.xlu0.b32.cont [5/16] %v6596, 128
      %6725 = vxpose.xlu0.b32.cont [6/16] %v6597, 128
      %6726 = vxpose.xlu0.b32.cont [7/16] %v6598, 128
      %6727 = vxpose.xlu0.b32.cont [8/16] %v6599, 128
      %6728 = vxpose.xlu0.b32.cont [9/16] %v6600, 128
      %6729 = vxpose.xlu0.b32.cont [10/16] %v6601, 128
      %6730 = vxpose.xlu0.b32.cont [11/16] %v6602, 128
      %6731 = vxpose.xlu0.b32.cont [12/16] %v6603, 128
      %6732 = vxpose.xlu0.b32.cont [13/16] %v6604, 128
      %6733 = vxpose.xlu0.b32.cont [14/16] %v6605, 128
      %6734 = vxpose.xlu0.b32.cont [15/16] %v6606, 128
      %6735 = vxpose.xlu0.b32.end [16/16] %v6607, 128
      %v6736 = vpop.trf.xlu0
      %v6737 = vpop.trf.xlu0
      %v6738 = vpop.trf.xlu0
      %v6739 = vpop.trf.xlu0
      %v6740 = vpop.trf.xlu0
      %v6741 = vpop.trf.xlu0
      %v6742 = vpop.trf.xlu0
      %v6743 = vpop.trf.xlu0
      %v6744 = vpop.trf.xlu0
      %v6745 = vpop.trf.xlu0
      %v6746 = vpop.trf.xlu0
      %v6747 = vpop.trf.xlu0
      %v6748 = vpop.trf.xlu0
      %v6749 = vpop.trf.xlu0
      %v6750 = vpop.trf.xlu0
      %v6751 = vpop.trf.xlu0
      %6752 = vst [vmem:[%s256] sm:$0xff] %v6736
      %6753 = vst [vmem:[%s256 + $0x8] sm:$0x1] %v6737
      %6754 = vxpose.xlu0.b32.start [1/16] %v6608, 128
      %6755 = vxpose.xlu0.b32.cont [2/16] %v6609, 128
      %6756 = vxpose.xlu0.b32.cont [3/16] %v6610, 128
      %6757 = vxpose.xlu0.b32.cont [4/16] %v6611, 128
      %6758 = vxpose.xlu0.b32.cont [5/16] %v6612, 128
      %6759 = vxpose.xlu0.b32.cont [6/16] %v6613, 128
      %6760 = vxpose.xlu0.b32.cont [7/16] %v6614, 128
      %6761 = vxpose.xlu0.b32.cont [8/16] %v6615, 128
      %6762 = vxpose.xlu0.b32.cont [9/16] %v6616, 128
      %6763 = vxpose.xlu0.b32.cont [10/16] %v6617, 128
      %6764 = vxpose.xlu0.b32.cont [11/16] %v6618, 128
      %6765 = vxpose.xlu0.b32.cont [12/16] %v6619, 128
      %6766 = vxpose.xlu0.b32.cont [13/16] %v6620, 128
      %6767 = vxpose.xlu0.b32.cont [14/16] %v6621, 128
      %6768 = vxpose.xlu0.b32.cont [15/16] %v6622, 128
      %6769 = vxpose.xlu0.b32.end [16/16] %v6623, 128
      %v6770 = vpop.trf.xlu0
      %v6771 = vpop.trf.xlu0
      %v6772 = vpop.trf.xlu0
      %v6773 = vpop.trf.xlu0
      %v6774 = vpop.trf.xlu0
      %v6775 = vpop.trf.xlu0
      %v6776 = vpop.trf.xlu0
      %v6777 = vpop.trf.xlu0
      %v6778 = vpop.trf.xlu0
      %v6779 = vpop.trf.xlu0
      %v6780 = vpop.trf.xlu0
      %v6781 = vpop.trf.xlu0
      %v6782 = vpop.trf.xlu0
      %v6783 = vpop.trf.xlu0
      %v6784 = vpop.trf.xlu0
      %v6785 = vpop.trf.xlu0
      %s6786 = scalar_lea.vmem %s256, 16
      %6787 = vst [vmem:[%s6786] sm:$0xff] %v6770
      %6788 = vst [vmem:[%s6786 + $0x8] sm:$0x1] %v6771
      %6789 = vxpose.xlu0.b32.start [1/16] %v6624, 128
      %6790 = vxpose.xlu0.b32.cont [2/16] %v6625, 128
      %6791 = vxpose.xlu0.b32.cont [3/16] %v6626, 128
      %6792 = vxpose.xlu0.b32.cont [4/16] %v6627, 128
      %6793 = vxpose.xlu0.b32.cont [5/16] %v6628, 128
      %6794 = vxpose.xlu0.b32.cont [6/16] %v6629, 128
      %6795 = vxpose.xlu0.b32.cont [7/16] %v6630, 128
      %6796 = vxpose.xlu0.b32.cont [8/16] %v6631, 128
      %6797 = vxpose.xlu0.b32.cont [9/16] %v6632, 128
      %6798 = vxpose.xlu0.b32.cont [10/16] %v6633, 128
      %6799 = vxpose.xlu0.b32.cont [11/16] %v6634, 128
      %6800 = vxpose.xlu0.b32.cont [12/16] %v6635, 128
      %6801 = vxpose.xlu0.b32.cont [13/16] %v6636, 128
      %6802 = vxpose.xlu0.b32.cont [14/16] %v6637, 128
      %6803 = vxpose.xlu0.b32.cont [15/16] %v6638, 128
      %6804 = vxpose.xlu0.b32.end [16/16] %v6639, 128
      %v6805 = vpop.trf.xlu0
      %v6806 = vpop.trf.xlu0
      %v6807 = vpop.trf.xlu0
      %v6808 = vpop.trf.xlu0
      %v6809 = vpop.trf.xlu0
      %v6810 = vpop.trf.xlu0
      %v6811 = vpop.trf.xlu0
      %v6812 = vpop.trf.xlu0
      %v6813 = vpop.trf.xlu0
      %v6814 = vpop.trf.xlu0
      %v6815 = vpop.trf.xlu0
      %v6816 = vpop.trf.xlu0
      %v6817 = vpop.trf.xlu0
      %v6818 = vpop.trf.xlu0
      %v6819 = vpop.trf.xlu0
      %v6820 = vpop.trf.xlu0
      %s6821 = scalar_lea.vmem %s256, 32
      %6822 = vst [vmem:[%s6821] sm:$0xff] %v6805
      %6823 = vst [vmem:[%s6821 + $0x8] sm:$0x1] %v6806
      %6824 = vxpose.xlu0.b32.start [1/16] %v6640, 128
      %6825 = vxpose.xlu0.b32.cont [2/16] %v6641, 128
      %6826 = vxpose.xlu0.b32.cont [3/16] %v6642, 128
      %6827 = vxpose.xlu0.b32.cont [4/16] %v6643, 128
      %6828 = vxpose.xlu0.b32.cont [5/16] %v6644, 128
      %6829 = vxpose.xlu0.b32.cont [6/16] %v6645, 128
      %6830 = vxpose.xlu0.b32.cont [7/16] %v6646, 128
      %6831 = vxpose.xlu0.b32.cont [8/16] %v6647, 128
      %6832 = vxpose.xlu0.b32.cont [9/16] %v6648, 128
      %6833 = vxpose.xlu0.b32.cont [10/16] %v6649, 128
      %6834 = vxpose.xlu0.b32.cont [11/16] %v6650, 128
      %6835 = vxpose.xlu0.b32.cont [12/16] %v6651, 128
      %6836 = vxpose.xlu0.b32.cont [13/16] %v6652, 128
      %6837 = vxpose.xlu0.b32.cont [14/16] %v6653, 128
      %6838 = vxpose.xlu0.b32.cont [15/16] %v6654, 128
      %6839 = vxpose.xlu0.b32.end [16/16] %v6655, 128
      %v6840 = vpop.trf.xlu0
      %v6841 = vpop.trf.xlu0
      %v6842 = vpop.trf.xlu0
      %v6843 = vpop.trf.xlu0
      %v6844 = vpop.trf.xlu0
      %v6845 = vpop.trf.xlu0
      %v6846 = vpop.trf.xlu0
      %v6847 = vpop.trf.xlu0
      %v6848 = vpop.trf.xlu0
      %v6849 = vpop.trf.xlu0
      %v6850 = vpop.trf.xlu0
      %v6851 = vpop.trf.xlu0
      %v6852 = vpop.trf.xlu0
      %v6853 = vpop.trf.xlu0
      %v6854 = vpop.trf.xlu0
      %v6855 = vpop.trf.xlu0
      %s6856 = scalar_lea.vmem %s256, 48
      %6857 = vst [vmem:[%s6856] sm:$0xff] %v6840
      %6858 = vst [vmem:[%s6856 + $0x8] sm:$0x1] %v6841
      %6859 = vxpose.xlu0.b32.start [1/16] %v6656, 128
      %6860 = vxpose.xlu0.b32.cont [2/16] %v6657, 128
      %6861 = vxpose.xlu0.b32.cont [3/16] %v6658, 128
      %6862 = vxpose.xlu0.b32.cont [4/16] %v6659, 128
      %6863 = vxpose.xlu0.b32.cont [5/16] %v6660, 128
      %6864 = vxpose.xlu0.b32.cont [6/16] %v6661, 128
      %6865 = vxpose.xlu0.b32.cont [7/16] %v6662, 128
      %6866 = vxpose.xlu0.b32.cont [8/16] %v6663, 128
      %6867 = vxpose.xlu0.b32.cont [9/16] %v6664, 128
      %6868 = vxpose.xlu0.b32.cont [10/16] %v6665, 128
      %6869 = vxpose.xlu0.b32.cont [11/16] %v6666, 128
      %6870 = vxpose.xlu0.b32.cont [12/16] %v6667, 128
      %6871 = vxpose.xlu0.b32.cont [13/16] %v6668, 128
      %6872 = vxpose.xlu0.b32.cont [14/16] %v6669, 128
      %6873 = vxpose.xlu0.b32.cont [15/16] %v6670, 128
      %6874 = vxpose.xlu0.b32.end [16/16] %v6671, 128
      %v6875 = vpop.trf.xlu0
      %v6876 = vpop.trf.xlu0
      %v6877 = vpop.trf.xlu0
      %v6878 = vpop.trf.xlu0
      %v6879 = vpop.trf.xlu0
      %v6880 = vpop.trf.xlu0
      %v6881 = vpop.trf.xlu0
      %v6882 = vpop.trf.xlu0
      %v6883 = vpop.trf.xlu0
      %v6884 = vpop.trf.xlu0
      %v6885 = vpop.trf.xlu0
      %v6886 = vpop.trf.xlu0
      %v6887 = vpop.trf.xlu0
      %v6888 = vpop.trf.xlu0
      %v6889 = vpop.trf.xlu0
      %v6890 = vpop.trf.xlu0
      %s6891 = scalar_lea.vmem %s256, 64
      %6892 = vst [vmem:[%s6891] sm:$0xff] %v6875
      %6893 = vst [vmem:[%s6891 + $0x8] sm:$0x1] %v6876
      %6894 = vxpose.xlu0.b32.start [1/16] %v6672, 128
      %6895 = vxpose.xlu0.b32.cont [2/16] %v6673, 128
      %6896 = vxpose.xlu0.b32.cont [3/16] %v6674, 128
      %6897 = vxpose.xlu0.b32.cont [4/16] %v6675, 128
      %6898 = vxpose.xlu0.b32.cont [5/16] %v6676, 128
      %6899 = vxpose.xlu0.b32.cont [6/16] %v6677, 128
      %6900 = vxpose.xlu0.b32.cont [7/16] %v6678, 128
      %6901 = vxpose.xlu0.b32.cont [8/16] %v6679, 128
      %6902 = vxpose.xlu0.b32.cont [9/16] %v6680, 128
      %6903 = vxpose.xlu0.b32.cont [10/16] %v6681, 128
      %6904 = vxpose.xlu0.b32.cont [11/16] %v6682, 128
      %6905 = vxpose.xlu0.b32.cont [12/16] %v6683, 128
      %6906 = vxpose.xlu0.b32.cont [13/16] %v6684, 128
      %6907 = vxpose.xlu0.b32.cont [14/16] %v6685, 128
      %6908 = vxpose.xlu0.b32.cont [15/16] %v6686, 128
      %6909 = vxpose.xlu0.b32.end [16/16] %v6687, 128
      %v6910 = vpop.trf.xlu0
      %v6911 = vpop.trf.xlu0
      %v6912 = vpop.trf.xlu0
      %v6913 = vpop.trf.xlu0
      %v6914 = vpop.trf.xlu0
      %v6915 = vpop.trf.xlu0
      %v6916 = vpop.trf.xlu0
      %v6917 = vpop.trf.xlu0
      %v6918 = vpop.trf.xlu0
      %v6919 = vpop.trf.xlu0
      %v6920 = vpop.trf.xlu0
      %v6921 = vpop.trf.xlu0
      %v6922 = vpop.trf.xlu0
      %v6923 = vpop.trf.xlu0
      %v6924 = vpop.trf.xlu0
      %v6925 = vpop.trf.xlu0
      %s6926 = scalar_lea.vmem %s256, 80
      %6927 = vst [vmem:[%s6926] sm:$0xff] %v6910
      %6928 = vst [vmem:[%s6926 + $0x8] sm:$0x1] %v6911
      %6929 = vxpose.xlu0.b32.start [1/16] %v6688, 128
      %6930 = vxpose.xlu0.b32.cont [2/16] %v6689, 128
      %6931 = vxpose.xlu0.b32.cont [3/16] %v6690, 128
      %6932 = vxpose.xlu0.b32.cont [4/16] %v6691, 128
      %6933 = vxpose.xlu0.b32.cont [5/16] %v6692, 128
      %6934 = vxpose.xlu0.b32.cont [6/16] %v6693, 128
      %6935 = vxpose.xlu0.b32.cont [7/16] %v6694, 128
      %6936 = vxpose.xlu0.b32.cont [8/16] %v6695, 128
      %6937 = vxpose.xlu0.b32.cont [9/16] %v6696, 128
      %6938 = vxpose.xlu0.b32.cont [10/16] %v6697, 128
      %6939 = vxpose.xlu0.b32.cont [11/16] %v6698, 128
      %6940 = vxpose.xlu0.b32.cont [12/16] %v6699, 128
      %6941 = vxpose.xlu0.b32.cont [13/16] %v6700, 128
      %6942 = vxpose.xlu0.b32.cont [14/16] %v6701, 128
      %6943 = vxpose.xlu0.b32.cont [15/16] %v6702, 128
      %6944 = vxpose.xlu0.b32.end [16/16] %v6703, 128
      %v6945 = vpop.trf.xlu0
      %v6946 = vpop.trf.xlu0
      %v6947 = vpop.trf.xlu0
      %v6948 = vpop.trf.xlu0
      %v6949 = vpop.trf.xlu0
      %v6950 = vpop.trf.xlu0
      %v6951 = vpop.trf.xlu0
      %v6952 = vpop.trf.xlu0
      %v6953 = vpop.trf.xlu0
      %v6954 = vpop.trf.xlu0
      %v6955 = vpop.trf.xlu0
      %v6956 = vpop.trf.xlu0
      %v6957 = vpop.trf.xlu0
      %v6958 = vpop.trf.xlu0
      %v6959 = vpop.trf.xlu0
      %v6960 = vpop.trf.xlu0
      %s6961 = scalar_lea.vmem %s256, 96
      %6962 = vst [vmem:[%s6961] sm:$0xff] %v6945
      %6963 = vst [vmem:[%s6961 + $0x8] sm:$0x1] %v6946
      %6964 = vxpose.xlu0.b32.start [1/16] %v6704, 128
      %6965 = vxpose.xlu0.b32.cont [2/16] %v6705, 128
      %6966 = vxpose.xlu0.b32.cont [3/16] %v6706, 128
      %6967 = vxpose.xlu0.b32.cont [4/16] %v6707, 128
      %6968 = vxpose.xlu0.b32.cont [5/16] %v6708, 128
      %6969 = vxpose.xlu0.b32.cont [6/16] %v6709, 128
      %6970 = vxpose.xlu0.b32.cont [7/16] %v6710, 128
      %6971 = vxpose.xlu0.b32.cont [8/16] %v6711, 128
      %6972 = vxpose.xlu0.b32.cont [9/16] %v6712, 128
      %6973 = vxpose.xlu0.b32.cont [10/16] %v6713, 128
      %6974 = vxpose.xlu0.b32.cont [11/16] %v6714, 128
      %6975 = vxpose.xlu0.b32.cont [12/16] %v6715, 128
      %6976 = vxpose.xlu0.b32.cont [13/16] %v6716, 128
      %6977 = vxpose.xlu0.b32.cont [14/16] %v6717, 128
      %6978 = vxpose.xlu0.b32.cont [15/16] %v6718, 128
      %6979 = vxpose.xlu0.b32.end [16/16] %v6719, 128
      %v6980 = vpop.trf.xlu0
      %v6981 = vpop.trf.xlu0
      %v6982 = vpop.trf.xlu0
      %v6983 = vpop.trf.xlu0
      %v6984 = vpop.trf.xlu0
      %v6985 = vpop.trf.xlu0
      %v6986 = vpop.trf.xlu0
      %v6987 = vpop.trf.xlu0
      %v6988 = vpop.trf.xlu0
      %v6989 = vpop.trf.xlu0
      %v6990 = vpop.trf.xlu0
      %v6991 = vpop.trf.xlu0
      %v6992 = vpop.trf.xlu0
      %v6993 = vpop.trf.xlu0
      %v6994 = vpop.trf.xlu0
      %v6995 = vpop.trf.xlu0
      %s6996 = scalar_lea.vmem %s256, 112
      %6997 = vst [vmem:[%s6996] sm:$0xff] %v6980
      %6998 = vst [vmem:[%s6996 + $0x8] sm:$0x1] %v6981
      %s6999 = smul.u32 8, %s16
      %p7000 = scmp.lt.s32.totalorder %s6999, 15
      %s7001 = scalar_select %p7000, %s6999, 15
      %s7002 = smul.addr %s7001, 2
      %s7003 = smul.addr %s7002, 8
      %s7004 = scalar_lea.vmem %s5, %s7003
      // Predicated region
      $region41: #{tpu_custom_call.1} parent=39 // pred_check
        %p7005 = pneg %p149
      $region42: #{tpu_custom_call.1} parent=39 // pred_check_branch
        %7007 = sbr.rel (%p7005) target = $region44
      $region43: #{tpu_custom_call.1} parent=39 // pred_region
        %s7008 = smul.u32 8, %s16
      $region44: #{tpu_custom_call.1} parent=39 // pred_fallthru
        _
    $region40: #{tpu_custom_call.1} parent=5 // pred_fallthru
      _
    %p7009 = scmp.le.s32.totalorder 2, %s11
    // Predicated region
    $region45: #{tpu_custom_call.1} parent=5 // pred_check
      %p7010 = pneg %p7009
    $region46: #{tpu_custom_call.1} parent=5 // pred_check_branch
      %7012 = sbr.rel (%p7010) target = $region48
    $region47: #{tpu_custom_call.1} parent=5 // pred_region
      %s7013 = ssub.s32 %s11, 2
      // Predicated region
      $region49: #{tpu_custom_call.1} parent=47 // pred_check
        %p7014 = pneg %p155
      $region50: #{tpu_custom_call.1} parent=47 // pred_check_branch
        %7016 = sbr.rel (%p7014) target = $region52
      $region51: #{tpu_custom_call.1} parent=47 // pred_region
        %s7017 = smul.u32 8, %s17
        %p7018 = scmp.lt.s32.totalorder %s7017, 15
        %s7019 = scalar_select %p7018, %s7017, 15
        %s7020 = smul.addr %s7019, 2
        %s7021 = smul.addr %s7020, 8
        %s7022 = scalar_lea.vmem %s5, %s7021
      $region52: #{tpu_custom_call.1} parent=47 // pred_fallthru
        _
    $region48: #{tpu_custom_call.1} parent=5 // pred_fallthru
      _
  $region6: #{tpu_custom_call.1} parent=0 // loop_footer
    %s15 = sadd.s32 1, %s11
  $region7: #{tpu_custom_call.1} parent=0 // loop_footer_branch
    %10 = sbr.rel target = $region3
  $region8: #{tpu_custom_call.1} parent=0 // loop_exit
    _

</llo_original>
